<compile_context>
chip_gen: v7x
topology: tpu7x:2x2x1
jax: 0.10.0
libtpu: 0.0.40
codegen_flags: <defaults>
</compile_context>

<pallas_src>
import jax
import jax.numpy as jnp
from jax import lax
from jax.experimental import pallas as pl
from jax.experimental.pallas import tpu as pltpu

RMS_EPS = 1e-6  # TODO(synk): RMSNorm class not given in source; standard eps=1e-6, weight init = 1.


def _sigmoid(x):
    return 1.0 / (1.0 + jnp.exp(-x))


def _softplus(x):
    # numerically stable softplus: max(x,0) + log(1 + exp(-|x|))
    return jnp.maximum(x, 0.0) + jnp.log(1.0 + jnp.exp(-jnp.abs(x)))


def _round_up(v, m):
    return ((v + m - 1) // m) * m


def _pick_w_tile(W):
    """Largest lane tile in {512,256,128} dividing W, else full W (small configs)."""
    for cand in (512, 256, 128):
        if W % cand == 0:
            return cand
    return W


def _make_kernel(TC, D, W, N, DTP, NP, K, add_residual, w_tile, group):
    assert W % w_tile == 0 and TC % group == 0
    n_wtiles = W // w_tile
    n_groups = TC // group

    def kernel(x_ref, nw_ref, win_ref, bin_ref, cw_ref, cb_ref, at_ref,
               wdbc_ref, bdbc_ref, wdr_ref, bdr_ref, wout_ref, bout_ref,
               o_ref,
               dl_ref, dxc_ref, bm_ref, cm_ref, y_ref, g_ref, h_ref, cst_ref):
        c_idx = pl.program_id(1)

        # Reset carried SSM state + conv tail at the first time chunk of each batch.
        # (chunk axis is "arbitrary" and iterated in order per batch element)
        @pl.when(c_idx == 0)
        def _():
            h_ref[...] = jnp.zeros_like(h_ref)
            cst_ref[...] = jnp.zeros_like(cst_ref)

        x = x_ref[...]                                            # (TC, D) f32

        # ---- RMSNorm ----
        ms = jnp.mean(x * x, axis=-1, keepdims=True)
        xn = x * lax.rsqrt(ms + RMS_EPS) * nw_ref[...]

        # ---- input projection (bf16 MXU, f32 acc), split into conv path / gate ----
        xg = jnp.dot(xn.astype(jnp.bfloat16), win_ref[...],
                     preferred_element_type=jnp.float32) + bin_ref[...]
        xp = xg[:, :W]                                            # (TC, W)
        g_ref[...] = xg[:, W:]                                    # gate, used after the scan

        # ---- causal depthwise conv (Conv1d groups=W, padding=K-1, truncated) ----
        # Conv tail from the previous chunk is carried in cst_ref (zeros at chunk 0).
        xp_ext = jnp.concatenate([cst_ref[...], xp], axis=0)      # (TC+K-1, W)
        acc = cb_ref[...]
        for k in range(K):
            acc = acc + cw_ref[k:k + 1, :] * xp_ext[k:k + TC, :]
        cst_ref[...] = xp_ext[TC:TC + K - 1, :]                   # carry last K-1 inputs
        xc = acc * _sigmoid(acc)                                  # SiLU, (TC, W)

        # ---- DBC projection (columns padded: delta @0, B @DTP, C @DTP+NP) ----
        dbc = jnp.dot(xc.astype(jnp.bfloat16), wdbc_ref[...],
                      preferred_element_type=jnp.float32) + bdbc_ref[...]
        bm_ref[...] = dbc[:, DTP:DTP + N][:, :, None]             # (TC, N, 1)
        cm_ref[...] = dbc[:, DTP + NP:DTP + NP + N][:, :, None]   # (TC, N, 1)

        # ---- delta up-rank (bf16 MXU; rows >= DT of w_dr are zero) + softplus ----
        delta = _softplus(jnp.dot(dbc[:, :DTP].astype(jnp.bfloat16), wdr_ref[...],
                                  preferred_element_type=jnp.float32) + bdr_ref[...])
        dl_ref[...] = delta                                       # (TC, W)
        dxc_ref[...] = delta * xc                                 # (TC, W)

        # ---- selective scan, W-tiled; h:(N, w_tile) carried in vregs ----
        # dA = exp(delta*A) and dB*x are formed per step (no (TC,N,W) buffers);
        # y rows are accumulated and stored as aligned (group, w_tile) slabs.
        for wt in range(n_wtiles):
            w0 = wt * w_tile
            a_tile = at_ref[:, pl.ds(w0, w_tile)]                 # (N, w_tile)

            def group_body(gi, h, w0=w0, a_tile=a_tile):
                t0 = pl.multiple_of(gi * group, group)
                rows = []
                for j in range(group):
                    t = t0 + j
                    dl_row = dl_ref[pl.ds(t, 1), pl.ds(w0, w_tile)]    # (1, w_tile)
                    dxc_row = dxc_ref[pl.ds(t, 1), pl.ds(w0, w_tile)]  # (1, w_tile)
                    # h[n,w] = exp(delta[t,w]*A[n,w]) * h[n,w] + delta[t,w]*x[t,w]*B[t,n]
                    h = jnp.exp(dl_row * a_tile) * h + dxc_row * bm_ref[t]
                    # y[t,w] = sum_n C[t,n] * h[n,w]
                    rows.append(jnp.sum(h * cm_ref[t], axis=0, keepdims=True))
                y_ref[pl.ds(t0, group), pl.ds(w0, w_tile)] = jnp.concatenate(rows, axis=0)
                return h

            h_fin = lax.fori_loop(0, n_groups, group_body, h_ref[:, pl.ds(w0, w_tile)])
            h_ref[:, pl.ds(w0, w_tile)] = h_fin                   # persist across chunks

        # ---- gate + output projection (+ residual) ----
        g = g_ref[...]
        yo = (g * _sigmoid(g)) * y_ref[...]
        out = jnp.dot(yo.astype(jnp.bfloat16), wout_ref[...],
                      preferred_element_type=jnp.float32) + bout_ref[...]
        if add_residual:
            out = out + x
        # TODO(synk): for configs with D_out / W < 128, a lane-dense packed output layout
        # (folding rows into lanes) would avoid masked partial stores.
        o_ref[...] = out

    return kernel


def mamba_block(x, p, *, expansion, state_dim, fraction_d, conv_kernel,
                layer_out=None, time_chunk=None):
    B, T, D = x.shape
    W = D * expansion
    N = state_dim
    DT = W // fraction_d
    K = conv_kernel
    D_out = layer_out if layer_out is not None else D
    add_residual = (D_out == D)

    # --- padded column layout for the DBC projection (128-lane aligned segments) ---
    DTP = _round_up(max(DT, 1), 128)
    NP = _round_up(N, 128)
    DBCP = DTP + 2 * NP

    f32 = jnp.float32
    w_in = p["w_in"].astype(jnp.bfloat16)
    w_out = p["w_out"].astype(jnp.bfloat16)
    a_t = (-jnp.exp(p["a_log"])).T.astype(f32)                    # (N, W)

    w_dbc_p = jnp.zeros((W, DBCP), f32)
    w_dbc_p = w_dbc_p.at[:, 0:DT].set(p["w_dbc"][:, 0:DT])
    w_dbc_p = w_dbc_p.at[:, DTP:DTP + N].set(p["w_dbc"][:, DT:DT + N])
    w_dbc_p = w_dbc_p.at[:, DTP + NP:DTP + NP + N].set(p["w_dbc"][:, DT + N:DT + 2 * N])
    w_dbc_p = w_dbc_p.astype(jnp.bfloat16)

    b_dbc_p = jnp.zeros((1, DBCP), f32)
    b_dbc_p = b_dbc_p.at[:, 0:DT].set(p["b_dbc"][:, 0:DT])
    b_dbc_p = b_dbc_p.at[:, DTP:DTP + N].set(p["b_dbc"][:, DT:DT + N])
    b_dbc_p = b_dbc_p.at[:, DTP + NP:DTP + NP + N].set(p["b_dbc"][:, DT + N:DT + 2 * N])

    w_dr_p = jnp.zeros((DTP, W), f32).at[0:DT, :].set(p["w_dr"]).astype(jnp.bfloat16)

    weights = (p["norm_w"], w_in, p["b_in"], p["conv_w"], p["conv_b"], a_t,
               w_dbc_p, b_dbc_p, w_dr_p, p["b_dr"], w_out, p["b_out"])
    weight_bytes = sum(int(w.size) * w.dtype.itemsize for w in weights)

    # --- generation-aware VMEM budget (v7x: 64 MiB physical, v5e/v6e: 128 MiB) ---
    vmem_phys = 64 * 1024 * 1024
    try:
        info = pltpu.get_tpu_info()
        vmem_phys = int(getattr(info, "vmem_capacity_bytes", vmem_phys))
    except Exception:
        pass
    vmem_limit = max(min(int(vmem_phys * 0.85), vmem_phys - (4 << 20)), 32 << 20)

    # --- time chunk from the remaining VMEM budget ---
    # per-timestep bytes: 4 x (TC,W) f32 scratches + projection temps + 2x-buffered io rows
    per_row = 4 * (6 * W + DBCP + 2 * (D + D_out))
    if time_chunk is None:
        avail = vmem_limit - weight_bytes - (4 << 20)
        tc = int(max(8, min(avail // max(per_row, 1), 256)))
    else:
        tc = int(time_chunk)
    T8 = _round_up(T, 8)
    TC = max(8, min((tc // 8) * 8, T8))
    n_chunks = -(-T // TC)
    T_pad = n_chunks * TC
    x_in = x if T_pad == T else jnp.pad(x, ((0, 0), (0, T_pad - T), (0, 0)))

    W_TILE = _pick_w_tile(W)
    GROUP = 8

    kernel = _make_kernel(TC, D, W, N, DTP, NP, K, add_residual, W_TILE, GROUP)

    def build(single_buffer_weights):
        pm = {"pipeline_mode": pl.Buffered(1)} if single_buffer_weights else {}

        def wfull(shape):
            return pl.BlockSpec(shape, lambda b, c, _n=len(shape): (0,) * _n, **pm)

        grid_spec = pltpu.PrefetchScalarGridSpec(
            num_scalar_prefetch=0,
            # NOTE: chunk axis must stay "arbitrary" (state carried across chunks).
            grid=(B, n_chunks),
            in_specs=[
                pl.BlockSpec((None, TC, D), lambda b, c: (b, c, 0)),   # x
                wfull((1, D)),                                          # RMSNorm weight
                wfull((D, 2 * W)), wfull((1, 2 * W)),                   # in projection
                wfull((K, W)), wfull((1, W)),                           # depthwise conv
                wfull((N, W)),                                          # A^T = (-exp(A_log))^T
                wfull((W, DBCP)), wfull((1, DBCP)),                     # DBC projection (padded cols)
                wfull((DTP, W)), wfull((1, W)),                         # delta up-rank (padded rows)
                wfull((W, D_out)), wfull((1, D_out)),                   # out projection
            ],
            out_specs=pl.BlockSpec((None, TC, D_out), lambda b, c: (b, c, 0)),
            scratch_shapes=[
                pltpu.VMEM((TC, W), jnp.float32),      # delta
                pltpu.VMEM((TC, W), jnp.float32),      # delta * x_conv
                pltpu.VMEM((TC, N, 1), jnp.float32),   # B per timestep (sublane layout)
                pltpu.VMEM((TC, N, 1), jnp.float32),   # C per timestep (sublane layout)
                pltpu.VMEM((TC, W), jnp.float32),      # y
                pltpu.VMEM((TC, W), jnp.float32),      # gate (live across the scan)
                pltpu.VMEM((N, W), jnp.float32),       # running SSM state (persists over chunks)
                pltpu.VMEM((K - 1, W), jnp.float32),   # conv tail        (persists over chunks)
            ],
        )
        return pl.pallas_call(
            kernel,
            out_shape=jax.ShapeDtypeStruct((B, T_pad, D_out), jnp.float32),
            grid_spec=grid_spec,
            compiler_params=pltpu.CompilerParams(
                # batch axis "parallel" => sharded over v7x's 2 TensorCores when B >= 2
                dimension_semantics=("parallel", "arbitrary"),
                vmem_limit_bytes=int(vmem_limit),
            ),
        )

    args = (x_in, p["norm_w"], w_in, p["b_in"], p["conv_w"], p["conv_b"], a_t,
            w_dbc_p, b_dbc_p, w_dr_p, p["b_dr"], w_out, p["b_out"])
    try:
        out = build(True)(*args)          # single-buffered (constant) weights
    except Exception:
        out = build(False)(*args)         # fallback: default double-buffered weights
    return out if T_pad == T else out[:, :T]


def init_params(key, D, W, N, DT, K, D_out):
    keys = jax.random.split(key, 10)

    def rnd(k, shape, scale):
        return jax.random.normal(k, shape, jnp.float32) * scale

    return dict(
        norm_w=jnp.ones((1, D), jnp.float32),
        w_in=rnd(keys[0], (D, 2 * W), 0.1),          # stored transposed: (in, out)
        b_in=rnd(keys[1], (1, 2 * W), 0.05),
        conv_w=rnd(keys[2], (K, W), 0.2),            # conv_w[k, c] == torch weight[c, 0, k]
        conv_b=rnd(keys[3], (1, W), 0.05),
        a_log=jnp.log(jnp.broadcast_to(jnp.arange(1, N + 1, dtype=jnp.float32), (W, N))),
        w_dbc=rnd(keys[4], (W, DT + 2 * N), 0.1),
        b_dbc=rnd(keys[5], (1, DT + 2 * N), 0.05),
        w_dr=rnd(keys[6], (DT, W), 0.1),
        b_dr=rnd(keys[7], (1, W), 0.05),
        w_out=rnd(keys[8], (W, D_out), 0.1),
        b_out=rnd(keys[9], (1, D_out), 0.05),
    )


def mamba_ref(x, p, *, expansion, state_dim, fraction_d, conv_kernel, layer_out=None):
    """Pure-JAX reference matching the PyTorch forward semantics (f32, HIGHEST)."""
    B, T, D = x.shape
    W = D * expansion
    N = state_dim
    DT = W // fraction_d
    K = conv_kernel
    D_out = layer_out if layer_out is not None else D
    hp = jax.lax.Precision.HIGHEST

    residual = x
    ms = jnp.mean(x * x, axis=-1, keepdims=True)
    xn = x * jax.lax.rsqrt(ms + RMS_EPS) * p["norm_w"][0]
    xg = jnp.einsum("btd,de->bte", xn, p["w_in"], precision=hp) + p["b_in"][0]
    xp, g = xg[..., :W], xg[..., W:]
    xp_pad = jnp.pad(xp, ((0, 0), (K - 1, 0), (0, 0)))
    acc = jnp.zeros((B, T, W), jnp.float32)
    for k in range(K):
        acc = acc + p["conv_w"][k] * xp_pad[:, k:k + T, :]
    acc = acc + p["conv_b"][0]
    xc = acc * _sigmoid(acc)

    dbc = jnp.einsum("btw,we->bte", xc, p["w_dbc"], precision=hp) + p["b_dbc"][0]
    dlow, Bm, Cm = dbc[..., :DT], dbc[..., DT:DT + N], dbc[..., DT + N:DT + 2 * N]
    delta = _softplus(jnp.einsum("btr,rw->btw", dlow, p["w_dr"], precision=hp) + p["b_dr"][0])
    A = -jnp.exp(p["a_log"])
    dA = jnp.exp(delta[..., None] * A)
    dBx = delta[..., None] * Bm[:, :, None, :] * xc[..., None]

    def step(h, inp):
        da_t, dbx_t = inp
        h = da_t * h + dbx_t
        return h, h

    h0 = jnp.zeros((B, W, N), jnp.float32)
    _, hs = jax.lax.scan(step, h0, (jnp.swapaxes(dA, 0, 1), jnp.swapaxes(dBx, 0, 1)))
    hs = jnp.swapaxes(hs, 0, 1)                               # (B, T, W, N)
    y = jnp.sum(hs * Cm[:, :, None, :], axis=-1)              # (B, T, W)
    out = jnp.einsum("btw,wo->bto", (g * _sigmoid(g)) * y, p["w_out"], precision=hp) + p["b_out"][0]
    if D_out == D:
        out = out + residual
    return out


if __name__ == "__main__":
    # small config consistent with MiniMambaBlockConfig
    B, T = 2, 8
    layer_input = 32
    expansion = 2
    state_dim = 16
    fraction_d = 4
    conv_kernel = 4
    W = layer_input * expansion
    DT = W // fraction_d

    key = jax.random.PRNGKey(0)
    kx, kp = jax.random.split(key)
    x = jax.random.normal(kx, (B, T, layer_input), jnp.float32) * 0.5
    params = init_params(kp, layer_input, W, state_dim, DT, conv_kernel, layer_input)

    out = mamba_block(x, params, expansion=expansion, state_dim=state_dim,
                      fraction_d=fraction_d, conv_kernel=conv_kernel)
    out = jax.block_until_ready(out)

    ref = mamba_ref(x, params, expansion=expansion, state_dim=state_dim,
                    fraction_d=fraction_d, conv_kernel=conv_kernel)
    ref = jax.block_until_ready(ref)

    assert out.shape == (B, T, layer_input), out.shape
    max_err = float(jnp.max(jnp.abs(out - ref)))
    tol = 2e-2 * (1.0 + float(jnp.max(jnp.abs(ref))))     # bf16 MXU projections + bf16 delta matmul
    assert max_err < tol, f"mismatch: {max_err} vs tol {tol}"
    print("KERNEL_OK")
</pallas_src>

<mosaic_0001>
module attributes {stable_mosaic.version = 11 : i64} {
  func.func @kernel(%arg0: i32, %arg1: i32, %arg2: memref<1x8x32xf32, #tpu.memory_space<vmem>>, %arg3: memref<1x32xf32, #tpu.memory_space<vmem>>, %arg4: memref<32x128xbf16, #tpu.memory_space<vmem>>, %arg5: memref<1x128xf32, #tpu.memory_space<vmem>>, %arg6: memref<4x64xf32, #tpu.memory_space<vmem>>, %arg7: memref<1x64xf32, #tpu.memory_space<vmem>>, %arg8: memref<16x64xf32, #tpu.memory_space<vmem>>, %arg9: memref<64x384xbf16, #tpu.memory_space<vmem>>, %arg10: memref<1x384xf32, #tpu.memory_space<vmem>>, %arg11: memref<128x64xbf16, #tpu.memory_space<vmem>>, %arg12: memref<1x64xf32, #tpu.memory_space<vmem>>, %arg13: memref<64x32xbf16, #tpu.memory_space<vmem>>, %arg14: memref<1x32xf32, #tpu.memory_space<vmem>>, %arg15: memref<1x8x32xf32, #tpu.memory_space<vmem>>, %arg16: memref<8x64xf32, #tpu.memory_space<vmem>>, %arg17: memref<8x64xf32, #tpu.memory_space<vmem>>, %arg18: memref<8x16x1xf32, #tpu.memory_space<vmem>>, %arg19: memref<8x16x1xf32, #tpu.memory_space<vmem>>, %arg20: memref<8x64xf32, #tpu.memory_space<vmem>>, %arg21: memref<8x64xf32, #tpu.memory_space<vmem>>, %arg22: memref<16x64xf32, #tpu.memory_space<vmem>>, %arg23: memref<3x64xf32, #tpu.memory_space<vmem>>) attributes {dimension_semantics = [#tpu.dimension_semantics<parallel>, #tpu.dimension_semantics<arbitrary>], iteration_bounds = array<i64: 2, 1>, scalar_prefetch = 0 : i64, scratch_operands = 8 : i64, tpu.core_type = #tpu.core_type<tc>, window_params = [{transform_indices = @transform_0, window_bounds = array<i64: 1, 8, 32>}, {pipeline_mode = #tpu.pipeline_mode<synchronous>, transform_indices = @transform_1, window_bounds = array<i64: 1, 32>}, {pipeline_mode = #tpu.pipeline_mode<synchronous>, transform_indices = @transform_2, window_bounds = array<i64: 32, 128>}, {pipeline_mode = #tpu.pipeline_mode<synchronous>, transform_indices = @transform_3, window_bounds = array<i64: 1, 128>}, {pipeline_mode = #tpu.pipeline_mode<synchronous>, transform_indices = @transform_4, window_bounds = array<i64: 4, 64>}, {pipeline_mode = #tpu.pipeline_mode<synchronous>, transform_indices = @transform_5, window_bounds = array<i64: 1, 64>}, {pipeline_mode = #tpu.pipeline_mode<synchronous>, transform_indices = @transform_6, window_bounds = array<i64: 16, 64>}, {pipeline_mode = #tpu.pipeline_mode<synchronous>, transform_indices = @transform_7, window_bounds = array<i64: 64, 384>}, {pipeline_mode = #tpu.pipeline_mode<synchronous>, transform_indices = @transform_8, window_bounds = array<i64: 1, 384>}, {pipeline_mode = #tpu.pipeline_mode<synchronous>, transform_indices = @transform_9, window_bounds = array<i64: 128, 64>}, {pipeline_mode = #tpu.pipeline_mode<synchronous>, transform_indices = @transform_10, window_bounds = array<i64: 1, 64>}, {pipeline_mode = #tpu.pipeline_mode<synchronous>, transform_indices = @transform_11, window_bounds = array<i64: 64, 32>}, {pipeline_mode = #tpu.pipeline_mode<synchronous>, transform_indices = @transform_12, window_bounds = array<i64: 1, 32>}, {transform_indices = @transform_13, window_bounds = array<i64: 1, 8, 32>}]} {
    %c0_i32 = arith.constant 0 : i32
    %0 = arith.cmpi eq, %arg1, %c0_i32 : i32
    %1 = arith.extui %0 : i1 to i32
    %c0_i32_0 = arith.constant 0 : i32
    %2 = arith.cmpi ne, %1, %c0_i32_0 : i32
    scf.if %2 {
      %cst_132 = arith.constant 0.000000e+00 : f32
      %306 = vector.broadcast %cst_132 : f32 to vector<16x64xf32>
      %c0_133 = arith.constant 0 : index
      %c0_134 = arith.constant 0 : index
      %307 = vector.load %arg22[%c0_133, %c0_134] : memref<16x64xf32, #tpu.memory_space<vmem>>, vector<16x64xf32>
      tpu.vector_store %arg22[%c0_133, %c0_134], %306 {strides = array<i32>} : memref<16x64xf32, #tpu.memory_space<vmem>>, vector<16x64xf32>,
      %cst_135 = arith.constant 0.000000e+00 : f32
      %308 = vector.broadcast %cst_135 : f32 to vector<3x64xf32>
      %c0_136 = arith.constant 0 : index
      %c0_137 = arith.constant 0 : index
      %309 = vector.load %arg23[%c0_136, %c0_137] : memref<3x64xf32, #tpu.memory_space<vmem>>, vector<3x64xf32>
      tpu.vector_store %arg23[%c0_136, %c0_137], %308 {strides = array<i32>} : memref<3x64xf32, #tpu.memory_space<vmem>>, vector<3x64xf32>,
    } else {
    }
    %c0 = arith.constant 0 : index
    %c0_1 = arith.constant 0 : index
    %c0_2 = arith.constant 0 : index
    %3 = vector.load %arg2[%c0, %c0_1, %c0_2] : memref<1x8x32xf32, #tpu.memory_space<vmem>>, vector<1x8x32xf32>
    %4 = vector.shape_cast %3 : vector<1x8x32xf32> to vector<8x32xf32>
    %5 = arith.mulf %4, %4 : vector<8x32xf32>
    %cst = arith.constant dense<0.000000e+00> : vector<8xf32>
    %6 = vector.multi_reduction <add>, %5, %cst [1] : vector<8x32xf32> to vector<8xf32>
    %7 = vector.shape_cast %6 : vector<8xf32> to vector<8x1xf32>
    %cst_3 = arith.constant 3.200000e+01 : f32
    %8 = vector.broadcast %cst_3 : f32 to vector<8x1xf32>
    %9 = arith.divf %7, %8 : vector<8x1xf32>
    %cst_4 = arith.constant 9.99999997E-7 : f32
    %10 = vector.broadcast %cst_4 : f32 to vector<8x1xf32>
    %11 = arith.addf %9, %10 : vector<8x1xf32>
    %12 = math.rsqrt %11 : vector<8x1xf32>
    %13 = vector.broadcast %12 : vector<8x1xf32> to vector<8x32xf32>
    %14 = arith.mulf %4, %13 : vector<8x32xf32>
    %c0_5 = arith.constant 0 : index
    %c0_6 = arith.constant 0 : index
    %15 = vector.load %arg3[%c0_5, %c0_6] : memref<1x32xf32, #tpu.memory_space<vmem>>, vector<1x32xf32>
    %16 = vector.broadcast %15 : vector<1x32xf32> to vector<8x32xf32>
    %17 = arith.mulf %14, %16 : vector<8x32xf32>
    %18 = arith.truncf %17 : vector<8x32xf32> to vector<8x32xbf16>
    %c0_7 = arith.constant 0 : index
    %c0_8 = arith.constant 0 : index
    %19 = vector.load %arg4[%c0_7, %c0_8] : memref<32x128xbf16, #tpu.memory_space<vmem>>, vector<32x128xbf16>
    %cst_9 = arith.constant dense<0.000000e+00> : vector<8x128xf32>
    %20 = tpu.matmul %18, %19, %cst_9 {dimension_numbers = #tpu.dot_dimension_numbers<[1], [0], [0], [1], [0, 0, 1, 1], [], []>} : vector<8x32xbf16>, vector<32x128xbf16>, vector<8x128xf32> -> vector<8x128xf32>
    %c0_10 = arith.constant 0 : index
    %c0_11 = arith.constant 0 : index
    %21 = vector.load %arg5[%c0_10, %c0_11] : memref<1x128xf32, #tpu.memory_space<vmem>>, vector<1x128xf32>
    %22 = vector.broadcast %21 : vector<1x128xf32> to vector<8x128xf32>
    %23 = arith.addf %20, %22 : vector<8x128xf32>
    %24 = vector.extract_strided_slice %23 {offsets = [0, 0], sizes = [8, 64], strides = [1, 1]} : vector<8x128xf32> to vector<8x64xf32>
    %25 = vector.extract_strided_slice %23 {offsets = [0, 64], sizes = [8, 64], strides = [1, 1]} : vector<8x128xf32> to vector<8x64xf32>
    %c0_12 = arith.constant 0 : index
    %c0_13 = arith.constant 0 : index
    %26 = vector.load %arg21[%c0_12, %c0_13] : memref<8x64xf32, #tpu.memory_space<vmem>>, vector<8x64xf32>
    tpu.vector_store %arg21[%c0_12, %c0_13], %25 {strides = array<i32>} : memref<8x64xf32, #tpu.memory_space<vmem>>, vector<8x64xf32>,
    %c0_14 = arith.constant 0 : index
    %c0_15 = arith.constant 0 : index
    %27 = vector.load %arg23[%c0_14, %c0_15] : memref<3x64xf32, #tpu.memory_space<vmem>>, vector<3x64xf32>
    %28 = tpu.concatenate %27, %24 in 0 : vector<3x64xf32>, vector<8x64xf32> -> vector<11x64xf32>
    %c0_16 = arith.constant 0 : index
    %c0_17 = arith.constant 0 : index
    %29 = vector.load %arg7[%c0_16, %c0_17] : memref<1x64xf32, #tpu.memory_space<vmem>>, vector<1x64xf32>
    %c0_18 = arith.constant 0 : index
    %c0_19 = arith.constant 0 : index
    %30 = vector.load %arg6[%c0_18, %c0_19] : memref<4x64xf32, #tpu.memory_space<vmem>>, vector<1x64xf32>
    %31 = vector.extract_strided_slice %28 {offsets = [0, 0], sizes = [8, 64], strides = [1, 1]} : vector<11x64xf32> to vector<8x64xf32>
    %32 = vector.broadcast %30 : vector<1x64xf32> to vector<8x64xf32>
    %33 = arith.mulf %32, %31 : vector<8x64xf32>
    %34 = vector.broadcast %29 : vector<1x64xf32> to vector<8x64xf32>
    %35 = arith.addf %34, %33 : vector<8x64xf32>
    %c1 = arith.constant 1 : index
    %c0_20 = arith.constant 0 : index
    %36 = vector.load %arg6[%c1, %c0_20] : memref<4x64xf32, #tpu.memory_space<vmem>>, vector<1x64xf32>
    %37 = vector.extract_strided_slice %28 {offsets = [1, 0], sizes = [8, 64], strides = [1, 1]} : vector<11x64xf32> to vector<8x64xf32>
    %38 = vector.broadcast %36 : vector<1x64xf32> to vector<8x64xf32>
    %39 = arith.mulf %38, %37 : vector<8x64xf32>
    %40 = arith.addf %35, %39 : vector<8x64xf32>
    %c2 = arith.constant 2 : index
    %c0_21 = arith.constant 0 : index
    %41 = vector.load %arg6[%c2, %c0_21] : memref<4x64xf32, #tpu.memory_space<vmem>>, vector<1x64xf32>
    %42 = vector.extract_strided_slice %28 {offsets = [2, 0], sizes = [8, 64], strides = [1, 1]} : vector<11x64xf32> to vector<8x64xf32>
    %43 = vector.broadcast %41 : vector<1x64xf32> to vector<8x64xf32>
    %44 = arith.mulf %43, %42 : vector<8x64xf32>
    %45 = arith.addf %40, %44 : vector<8x64xf32>
    %c3 = arith.constant 3 : index
    %c0_22 = arith.constant 0 : index
    %46 = vector.load %arg6[%c3, %c0_22] : memref<4x64xf32, #tpu.memory_space<vmem>>, vector<1x64xf32>
    %47 = vector.extract_strided_slice %28 {offsets = [3, 0], sizes = [8, 64], strides = [1, 1]} : vector<11x64xf32> to vector<8x64xf32>
    %48 = vector.broadcast %46 : vector<1x64xf32> to vector<8x64xf32>
    %49 = arith.mulf %48, %47 : vector<8x64xf32>
    %50 = arith.addf %45, %49 : vector<8x64xf32>
    %51 = vector.extract_strided_slice %28 {offsets = [8, 0], sizes = [3, 64], strides = [1, 1]} : vector<11x64xf32> to vector<3x64xf32>
    %c0_23 = arith.constant 0 : index
    %c0_24 = arith.constant 0 : index
    %52 = vector.load %arg23[%c0_23, %c0_24] : memref<3x64xf32, #tpu.memory_space<vmem>>, vector<3x64xf32>
    tpu.vector_store %arg23[%c0_23, %c0_24], %51 {strides = array<i32>} : memref<3x64xf32, #tpu.memory_space<vmem>>, vector<3x64xf32>,
    %cst_25 = arith.constant 0.000000e+00 : f32
    %53 = vector.broadcast %cst_25 : f32 to vector<8x64xf32>
    %54 = arith.subf %53, %50 : vector<8x64xf32>
    %55 = math.exp %54 : vector<8x64xf32>
    %cst_26 = arith.constant 1.000000e+00 : f32
    %56 = vector.broadcast %cst_26 : f32 to vector<8x64xf32>
    %57 = arith.addf %56, %55 : vector<8x64xf32>
    %cst_27 = arith.constant 1.000000e+00 : f32
    %58 = vector.broadcast %cst_27 : f32 to vector<8x64xf32>
    %59 = arith.divf %58, %57 : vector<8x64xf32>
    %60 = arith.mulf %50, %59 : vector<8x64xf32>
    %61 = arith.truncf %60 : vector<8x64xf32> to vector<8x64xbf16>
    %c0_28 = arith.constant 0 : index
    %c0_29 = arith.constant 0 : index
    %62 = vector.load %arg9[%c0_28, %c0_29] : memref<64x384xbf16, #tpu.memory_space<vmem>>, vector<64x384xbf16>
    %cst_30 = arith.constant dense<0.000000e+00> : vector<8x384xf32>
    %63 = tpu.matmul %61, %62, %cst_30 {dimension_numbers = #tpu.dot_dimension_numbers<[1], [0], [0], [1], [0, 0, 1, 1], [], []>} : vector<8x64xbf16>, vector<64x384xbf16>, vector<8x384xf32> -> vector<8x384xf32>
    %c0_31 = arith.constant 0 : index
    %c0_32 = arith.constant 0 : index
    %64 = vector.load %arg10[%c0_31, %c0_32] : memref<1x384xf32, #tpu.memory_space<vmem>>, vector<1x384xf32>
    %65 = vector.broadcast %64 : vector<1x384xf32> to vector<8x384xf32>
    %66 = arith.addf %63, %65 : vector<8x384xf32>
    %67 = vector.extract_strided_slice %66 {offsets = [0, 128], sizes = [8, 16], strides = [1, 1]} : vector<8x384xf32> to vector<8x16xf32>
    %68 = vector.shape_cast %67 : vector<8x16xf32> to vector<8x16x1xf32>
    %c0_33 = arith.constant 0 : index
    %c0_34 = arith.constant 0 : index
    %c0_35 = arith.constant 0 : index
    %69 = vector.load %arg18[%c0_33, %c0_34, %c0_35] : memref<8x16x1xf32, #tpu.memory_space<vmem>>, vector<8x16x1xf32>
    tpu.vector_store %arg18[%c0_33, %c0_34, %c0_35], %68 {strides = array<i32>} : memref<8x16x1xf32, #tpu.memory_space<vmem>>, vector<8x16x1xf32>,
    %70 = vector.extract_strided_slice %66 {offsets = [0, 256], sizes = [8, 16], strides = [1, 1]} : vector<8x384xf32> to vector<8x16xf32>
    %71 = vector.shape_cast %70 : vector<8x16xf32> to vector<8x16x1xf32>
    %c0_36 = arith.constant 0 : index
    %c0_37 = arith.constant 0 : index
    %c0_38 = arith.constant 0 : index
    %72 = vector.load %arg19[%c0_36, %c0_37, %c0_38] : memref<8x16x1xf32, #tpu.memory_space<vmem>>, vector<8x16x1xf32>
    tpu.vector_store %arg19[%c0_36, %c0_37, %c0_38], %71 {strides = array<i32>} : memref<8x16x1xf32, #tpu.memory_space<vmem>>, vector<8x16x1xf32>,
    %73 = vector.extract_strided_slice %66 {offsets = [0, 0], sizes = [8, 128], strides = [1, 1]} : vector<8x384xf32> to vector<8x128xf32>
    %74 = arith.truncf %73 : vector<8x128xf32> to vector<8x128xbf16>
    %c0_39 = arith.constant 0 : index
    %c0_40 = arith.constant 0 : index
    %75 = vector.load %arg11[%c0_39, %c0_40] : memref<128x64xbf16, #tpu.memory_space<vmem>>, vector<128x64xbf16>
    %cst_41 = arith.constant dense<0.000000e+00> : vector<8x64xf32>
    %76 = tpu.matmul %74, %75, %cst_41 {dimension_numbers = #tpu.dot_dimension_numbers<[1], [0], [0], [1], [0, 0, 1, 1], [], []>} : vector<8x128xbf16>, vector<128x64xbf16>, vector<8x64xf32> -> vector<8x64xf32>
    %c0_42 = arith.constant 0 : index
    %c0_43 = arith.constant 0 : index
    %77 = vector.load %arg12[%c0_42, %c0_43] : memref<1x64xf32, #tpu.memory_space<vmem>>, vector<1x64xf32>
    %78 = vector.broadcast %77 : vector<1x64xf32> to vector<8x64xf32>
    %79 = arith.addf %76, %78 : vector<8x64xf32>
    %cst_44 = arith.constant 0.000000e+00 : f32
    %80 = vector.broadcast %cst_44 : f32 to vector<8x64xf32>
    %81 = arith.maximumf %79, %80 : vector<8x64xf32>
    %82 = math.absf %79 : vector<8x64xf32>
    %cst_45 = arith.constant 0.000000e+00 : f32
    %83 = vector.broadcast %cst_45 : f32 to vector<8x64xf32>
    %84 = arith.subf %83, %82 : vector<8x64xf32>
    %85 = math.exp %84 : vector<8x64xf32>
    %cst_46 = arith.constant 1.000000e+00 : f32
    %86 = vector.broadcast %cst_46 : f32 to vector<8x64xf32>
    %87 = arith.addf %86, %85 : vector<8x64xf32>
    %88 = math.log %87 : vector<8x64xf32>
    %89 = arith.addf %81, %88 : vector<8x64xf32>
    %c0_47 = arith.constant 0 : index
    %c0_48 = arith.constant 0 : index
    %90 = vector.load %arg16[%c0_47, %c0_48] : memref<8x64xf32, #tpu.memory_space<vmem>>, vector<8x64xf32>
    tpu.vector_store %arg16[%c0_47, %c0_48], %89 {strides = array<i32>} : memref<8x64xf32, #tpu.memory_space<vmem>>, vector<8x64xf32>,
    %91 = arith.mulf %89, %60 : vector<8x64xf32>
    %c0_49 = arith.constant 0 : index
    %c0_50 = arith.constant 0 : index
    %92 = vector.load %arg17[%c0_49, %c0_50] : memref<8x64xf32, #tpu.memory_space<vmem>>, vector<8x64xf32>
    tpu.vector_store %arg17[%c0_49, %c0_50], %91 {strides = array<i32>} : memref<8x64xf32, #tpu.memory_space<vmem>>, vector<8x64xf32>,
    %c0_51 = arith.constant 0 : index
    %c0_52 = arith.constant 0 : index
    %93 = vector.load %arg8[%c0_51, %c0_52] : memref<16x64xf32, #tpu.memory_space<vmem>>, vector<16x64xf32>
    %c0_53 = arith.constant 0 : index
    %c0_54 = arith.constant 0 : index
    %94 = vector.load %arg22[%c0_53, %c0_54] : memref<16x64xf32, #tpu.memory_space<vmem>>, vector<16x64xf32>
    %c0_i32_55 = arith.constant 0 : i32
    %c8_i32 = arith.constant 8 : i32
    %95 = arith.muli %c0_i32_55, %c8_i32 : i32
    %96 = tpu.assume_multiple %95, 8 : i32
    %c0_i32_56 = arith.constant 0 : i32
    %97 = arith.addi %96, %c0_i32_56 : i32
    %98 = arith.index_cast %97 : i32 to index
    %c0_57 = arith.constant 0 : index
    %99 = vector.load %arg16[%98, %c0_57] : memref<8x64xf32, #tpu.memory_space<vmem>>, vector<1x64xf32>
    %100 = arith.index_cast %97 : i32 to index
    %c0_58 = arith.constant 0 : index
    %101 = vector.load %arg17[%100, %c0_58] : memref<8x64xf32, #tpu.memory_space<vmem>>, vector<1x64xf32>
    %102 = vector.broadcast %99 : vector<1x64xf32> to vector<16x64xf32>
    %103 = arith.mulf %102, %93 : vector<16x64xf32>
    %104 = math.exp %103 : vector<16x64xf32>
    %105 = arith.mulf %104, %94 : vector<16x64xf32>
    %106 = arith.index_cast %97 : i32 to index
    %c0_59 = arith.constant 0 : index
    %c0_60 = arith.constant 0 : index
    %107 = vector.load %arg18[%106, %c0_59, %c0_60] : memref<8x16x1xf32, #tpu.memory_space<vmem>>, vector<1x16x1xf32>
    %108 = vector.shape_cast %107 : vector<1x16x1xf32> to vector<16x1xf32>
    %109 = vector.broadcast %101 : vector<1x64xf32> to vector<16x64xf32>
    %110 = vector.broadcast %108 : vector<16x1xf32> to vector<16x64xf32>
    %111 = arith.mulf %109, %110 : vector<16x64xf32>
    %112 = arith.addf %105, %111 : vector<16x64xf32>
    %113 = arith.index_cast %97 : i32 to index
    %c0_61 = arith.constant 0 : index
    %c0_62 = arith.constant 0 : index
    %114 = vector.load %arg19[%113, %c0_61, %c0_62] : memref<8x16x1xf32, #tpu.memory_space<vmem>>, vector<1x16x1xf32>
    %115 = vector.shape_cast %114 : vector<1x16x1xf32> to vector<16x1xf32>
    %116 = vector.broadcast %115 : vector<16x1xf32> to vector<16x64xf32>
    %117 = arith.mulf %112, %116 : vector<16x64xf32>
    %cst_63 = arith.constant dense<0.000000e+00> : vector<64xf32>
    %118 = vector.multi_reduction <add>, %117, %cst_63 [0] : vector<16x64xf32> to vector<64xf32>
    %119 = vector.shape_cast %118 : vector<64xf32> to vector<1x64xf32>
    %c1_i32 = arith.constant 1 : i32
    %120 = arith.addi %96, %c1_i32 : i32
    %121 = arith.index_cast %120 : i32 to index
    %c0_64 = arith.constant 0 : index
    %122 = vector.load %arg16[%121, %c0_64] : memref<8x64xf32, #tpu.memory_space<vmem>>, vector<1x64xf32>
    %123 = arith.index_cast %120 : i32 to index
    %c0_65 = arith.constant 0 : index
    %124 = vector.load %arg17[%123, %c0_65] : memref<8x64xf32, #tpu.memory_space<vmem>>, vector<1x64xf32>
    %125 = vector.broadcast %122 : vector<1x64xf32> to vector<16x64xf32>
    %126 = arith.mulf %125, %93 : vector<16x64xf32>
    %127 = math.exp %126 : vector<16x64xf32>
    %128 = arith.mulf %127, %112 : vector<16x64xf32>
    %129 = arith.index_cast %120 : i32 to index
    %c0_66 = arith.constant 0 : index
    %c0_67 = arith.constant 0 : index
    %130 = vector.load %arg18[%129, %c0_66, %c0_67] : memref<8x16x1xf32, #tpu.memory_space<vmem>>, vector<1x16x1xf32>
    %131 = vector.shape_cast %130 : vector<1x16x1xf32> to vector<16x1xf32>
    %132 = vector.broadcast %124 : vector<1x64xf32> to vector<16x64xf32>
    %133 = vector.broadcast %131 : vector<16x1xf32> to vector<16x64xf32>
    %134 = arith.mulf %132, %133 : vector<16x64xf32>
    %135 = arith.addf %128, %134 : vector<16x64xf32>
    %136 = arith.index_cast %120 : i32 to index
    %c0_68 = arith.constant 0 : index
    %c0_69 = arith.constant 0 : index
    %137 = vector.load %arg19[%136, %c0_68, %c0_69] : memref<8x16x1xf32, #tpu.memory_space<vmem>>, vector<1x16x1xf32>
    %138 = vector.shape_cast %137 : vector<1x16x1xf32> to vector<16x1xf32>
    %139 = vector.broadcast %138 : vector<16x1xf32> to vector<16x64xf32>
    %140 = arith.mulf %135, %139 : vector<16x64xf32>
    %cst_70 = arith.constant dense<0.000000e+00> : vector<64xf32>
    %141 = vector.multi_reduction <add>, %140, %cst_70 [0] : vector<16x64xf32> to vector<64xf32>
    %142 = vector.shape_cast %141 : vector<64xf32> to vector<1x64xf32>
    %c2_i32 = arith.constant 2 : i32
    %143 = arith.addi %96, %c2_i32 : i32
    %144 = arith.index_cast %143 : i32 to index
    %c0_71 = arith.constant 0 : index
    %145 = vector.load %arg16[%144, %c0_71] : memref<8x64xf32, #tpu.memory_space<vmem>>, vector<1x64xf32>
    %146 = arith.index_cast %143 : i32 to index
    %c0_72 = arith.constant 0 : index
    %147 = vector.load %arg17[%146, %c0_72] : memref<8x64xf32, #tpu.memory_space<vmem>>, vector<1x64xf32>
    %148 = vector.broadcast %145 : vector<1x64xf32> to vector<16x64xf32>
    %149 = arith.mulf %148, %93 : vector<16x64xf32>
    %150 = math.exp %149 : vector<16x64xf32>
    %151 = arith.mulf %150, %135 : vector<16x64xf32>
    %152 = arith.index_cast %143 : i32 to index
    %c0_73 = arith.constant 0 : index
    %c0_74 = arith.constant 0 : index
    %153 = vector.load %arg18[%152, %c0_73, %c0_74] : memref<8x16x1xf32, #tpu.memory_space<vmem>>, vector<1x16x1xf32>
    %154 = vector.shape_cast %153 : vector<1x16x1xf32> to vector<16x1xf32>
    %155 = vector.broadcast %147 : vector<1x64xf32> to vector<16x64xf32>
    %156 = vector.broadcast %154 : vector<16x1xf32> to vector<16x64xf32>
    %157 = arith.mulf %155, %156 : vector<16x64xf32>
    %158 = arith.addf %151, %157 : vector<16x64xf32>
    %159 = arith.index_cast %143 : i32 to index
    %c0_75 = arith.constant 0 : index
    %c0_76 = arith.constant 0 : index
    %160 = vector.load %arg19[%159, %c0_75, %c0_76] : memref<8x16x1xf32, #tpu.memory_space<vmem>>, vector<1x16x1xf32>
    %161 = vector.shape_cast %160 : vector<1x16x1xf32> to vector<16x1xf32>
    %162 = vector.broadcast %161 : vector<16x1xf32> to vector<16x64xf32>
    %163 = arith.mulf %158, %162 : vector<16x64xf32>
    %cst_77 = arith.constant dense<0.000000e+00> : vector<64xf32>
    %164 = vector.multi_reduction <add>, %163, %cst_77 [0] : vector<16x64xf32> to vector<64xf32>
    %165 = vector.shape_cast %164 : vector<64xf32> to vector<1x64xf32>
    %c3_i32 = arith.constant 3 : i32
    %166 = arith.addi %96, %c3_i32 : i32
    %167 = arith.index_cast %166 : i32 to index
    %c0_78 = arith.constant 0 : index
    %168 = vector.load %arg16[%167, %c0_78] : memref<8x64xf32, #tpu.memory_space<vmem>>, vector<1x64xf32>
    %169 = arith.index_cast %166 : i32 to index
    %c0_79 = arith.constant 0 : index
    %170 = vector.load %arg17[%169, %c0_79] : memref<8x64xf32, #tpu.memory_space<vmem>>, vector<1x64xf32>
    %171 = vector.broadcast %168 : vector<1x64xf32> to vector<16x64xf32>
    %172 = arith.mulf %171, %93 : vector<16x64xf32>
    %173 = math.exp %172 : vector<16x64xf32>
    %174 = arith.mulf %173, %158 : vector<16x64xf32>
    %175 = arith.index_cast %166 : i32 to index
    %c0_80 = arith.constant 0 : index
    %c0_81 = arith.constant 0 : index
    %176 = vector.load %arg18[%175, %c0_80, %c0_81] : memref<8x16x1xf32, #tpu.memory_space<vmem>>, vector<1x16x1xf32>
    %177 = vector.shape_cast %176 : vector<1x16x1xf32> to vector<16x1xf32>
    %178 = vector.broadcast %170 : vector<1x64xf32> to vector<16x64xf32>
    %179 = vector.broadcast %177 : vector<16x1xf32> to vector<16x64xf32>
    %180 = arith.mulf %178, %179 : vector<16x64xf32>
    %181 = arith.addf %174, %180 : vector<16x64xf32>
    %182 = arith.index_cast %166 : i32 to index
    %c0_82 = arith.constant 0 : index
    %c0_83 = arith.constant 0 : index
    %183 = vector.load %arg19[%182, %c0_82, %c0_83] : memref<8x16x1xf32, #tpu.memory_space<vmem>>, vector<1x16x1xf32>
    %184 = vector.shape_cast %183 : vector<1x16x1xf32> to vector<16x1xf32>
    %185 = vector.broadcast %184 : vector<16x1xf32> to vector<16x64xf32>
    %186 = arith.mulf %181, %185 : vector<16x64xf32>
    %cst_84 = arith.constant dense<0.000000e+00> : vector<64xf32>
    %187 = vector.multi_reduction <add>, %186, %cst_84 [0] : vector<16x64xf32> to vector<64xf32>
    %188 = vector.shape_cast %187 : vector<64xf32> to vector<1x64xf32>
    %c4_i32 = arith.constant 4 : i32
    %189 = arith.addi %96, %c4_i32 : i32
    %190 = arith.index_cast %189 : i32 to index
    %c0_85 = arith.constant 0 : index
    %191 = vector.load %arg16[%190, %c0_85] : memref<8x64xf32, #tpu.memory_space<vmem>>, vector<1x64xf32>
    %192 = arith.index_cast %189 : i32 to index
    %c0_86 = arith.constant 0 : index
    %193 = vector.load %arg17[%192, %c0_86] : memref<8x64xf32, #tpu.memory_space<vmem>>, vector<1x64xf32>
    %194 = vector.broadcast %191 : vector<1x64xf32> to vector<16x64xf32>
    %195 = arith.mulf %194, %93 : vector<16x64xf32>
    %196 = math.exp %195 : vector<16x64xf32>
    %197 = arith.mulf %196, %181 : vector<16x64xf32>
    %198 = arith.index_cast %189 : i32 to index
    %c0_87 = arith.constant 0 : index
    %c0_88 = arith.constant 0 : index
    %199 = vector.load %arg18[%198, %c0_87, %c0_88] : memref<8x16x1xf32, #tpu.memory_space<vmem>>, vector<1x16x1xf32>
    %200 = vector.shape_cast %199 : vector<1x16x1xf32> to vector<16x1xf32>
    %201 = vector.broadcast %193 : vector<1x64xf32> to vector<16x64xf32>
    %202 = vector.broadcast %200 : vector<16x1xf32> to vector<16x64xf32>
    %203 = arith.mulf %201, %202 : vector<16x64xf32>
    %204 = arith.addf %197, %203 : vector<16x64xf32>
    %205 = arith.index_cast %189 : i32 to index
    %c0_89 = arith.constant 0 : index
    %c0_90 = arith.constant 0 : index
    %206 = vector.load %arg19[%205, %c0_89, %c0_90] : memref<8x16x1xf32, #tpu.memory_space<vmem>>, vector<1x16x1xf32>
    %207 = vector.shape_cast %206 : vector<1x16x1xf32> to vector<16x1xf32>
    %208 = vector.broadcast %207 : vector<16x1xf32> to vector<16x64xf32>
    %209 = arith.mulf %204, %208 : vector<16x64xf32>
    %cst_91 = arith.constant dense<0.000000e+00> : vector<64xf32>
    %210 = vector.multi_reduction <add>, %209, %cst_91 [0] : vector<16x64xf32> to vector<64xf32>
    %211 = vector.shape_cast %210 : vector<64xf32> to vector<1x64xf32>
    %c5_i32 = arith.constant 5 : i32
    %212 = arith.addi %96, %c5_i32 : i32
    %213 = arith.index_cast %212 : i32 to index
    %c0_92 = arith.constant 0 : index
    %214 = vector.load %arg16[%213, %c0_92] : memref<8x64xf32, #tpu.memory_space<vmem>>, vector<1x64xf32>
    %215 = arith.index_cast %212 : i32 to index
    %c0_93 = arith.constant 0 : index
    %216 = vector.load %arg17[%215, %c0_93] : memref<8x64xf32, #tpu.memory_space<vmem>>, vector<1x64xf32>
    %217 = vector.broadcast %214 : vector<1x64xf32> to vector<16x64xf32>
    %218 = arith.mulf %217, %93 : vector<16x64xf32>
    %219 = math.exp %218 : vector<16x64xf32>
    %220 = arith.mulf %219, %204 : vector<16x64xf32>
    %221 = arith.index_cast %212 : i32 to index
    %c0_94 = arith.constant 0 : index
    %c0_95 = arith.constant 0 : index
    %222 = vector.load %arg18[%221, %c0_94, %c0_95] : memref<8x16x1xf32, #tpu.memory_space<vmem>>, vector<1x16x1xf32>
    %223 = vector.shape_cast %222 : vector<1x16x1xf32> to vector<16x1xf32>
    %224 = vector.broadcast %216 : vector<1x64xf32> to vector<16x64xf32>
    %225 = vector.broadcast %223 : vector<16x1xf32> to vector<16x64xf32>
    %226 = arith.mulf %224, %225 : vector<16x64xf32>
    %227 = arith.addf %220, %226 : vector<16x64xf32>
    %228 = arith.index_cast %212 : i32 to index
    %c0_96 = arith.constant 0 : index
    %c0_97 = arith.constant 0 : index
    %229 = vector.load %arg19[%228, %c0_96, %c0_97] : memref<8x16x1xf32, #tpu.memory_space<vmem>>, vector<1x16x1xf32>
    %230 = vector.shape_cast %229 : vector<1x16x1xf32> to vector<16x1xf32>
    %231 = vector.broadcast %230 : vector<16x1xf32> to vector<16x64xf32>
    %232 = arith.mulf %227, %231 : vector<16x64xf32>
    %cst_98 = arith.constant dense<0.000000e+00> : vector<64xf32>
    %233 = vector.multi_reduction <add>, %232, %cst_98 [0] : vector<16x64xf32> to vector<64xf32>
    %234 = vector.shape_cast %233 : vector<64xf32> to vector<1x64xf32>
    %c6_i32 = arith.constant 6 : i32
    %235 = arith.addi %96, %c6_i32 : i32
    %236 = arith.index_cast %235 : i32 to index
    %c0_99 = arith.constant 0 : index
    %237 = vector.load %arg16[%236, %c0_99] : memref<8x64xf32, #tpu.memory_space<vmem>>, vector<1x64xf32>
    %238 = arith.index_cast %235 : i32 to index
    %c0_100 = arith.constant 0 : index
    %239 = vector.load %arg17[%238, %c0_100] : memref<8x64xf32, #tpu.memory_space<vmem>>, vector<1x64xf32>
    %240 = vector.broadcast %237 : vector<1x64xf32> to vector<16x64xf32>
    %241 = arith.mulf %240, %93 : vector<16x64xf32>
    %242 = math.exp %241 : vector<16x64xf32>
    %243 = arith.mulf %242, %227 : vector<16x64xf32>
    %244 = arith.index_cast %235 : i32 to index
    %c0_101 = arith.constant 0 : index
    %c0_102 = arith.constant 0 : index
    %245 = vector.load %arg18[%244, %c0_101, %c0_102] : memref<8x16x1xf32, #tpu.memory_space<vmem>>, vector<1x16x1xf32>
    %246 = vector.shape_cast %245 : vector<1x16x1xf32> to vector<16x1xf32>
    %247 = vector.broadcast %239 : vector<1x64xf32> to vector<16x64xf32>
    %248 = vector.broadcast %246 : vector<16x1xf32> to vector<16x64xf32>
    %249 = arith.mulf %247, %248 : vector<16x64xf32>
    %250 = arith.addf %243, %249 : vector<16x64xf32>
    %251 = arith.index_cast %235 : i32 to index
    %c0_103 = arith.constant 0 : index
    %c0_104 = arith.constant 0 : index
    %252 = vector.load %arg19[%251, %c0_103, %c0_104] : memref<8x16x1xf32, #tpu.memory_space<vmem>>, vector<1x16x1xf32>
    %253 = vector.shape_cast %252 : vector<1x16x1xf32> to vector<16x1xf32>
    %254 = vector.broadcast %253 : vector<16x1xf32> to vector<16x64xf32>
    %255 = arith.mulf %250, %254 : vector<16x64xf32>
    %cst_105 = arith.constant dense<0.000000e+00> : vector<64xf32>
    %256 = vector.multi_reduction <add>, %255, %cst_105 [0] : vector<16x64xf32> to vector<64xf32>
    %257 = vector.shape_cast %256 : vector<64xf32> to vector<1x64xf32>
    %c7_i32 = arith.constant 7 : i32
    %258 = arith.addi %96, %c7_i32 : i32
    %259 = arith.index_cast %258 : i32 to index
    %c0_106 = arith.constant 0 : index
    %260 = vector.load %arg16[%259, %c0_106] : memref<8x64xf32, #tpu.memory_space<vmem>>, vector<1x64xf32>
    %261 = arith.index_cast %258 : i32 to index
    %c0_107 = arith.constant 0 : index
    %262 = vector.load %arg17[%261, %c0_107] : memref<8x64xf32, #tpu.memory_space<vmem>>, vector<1x64xf32>
    %263 = vector.broadcast %260 : vector<1x64xf32> to vector<16x64xf32>
    %264 = arith.mulf %263, %93 : vector<16x64xf32>
    %265 = math.exp %264 : vector<16x64xf32>
    %266 = arith.mulf %265, %250 : vector<16x64xf32>
    %267 = arith.index_cast %258 : i32 to index
    %c0_108 = arith.constant 0 : index
    %c0_109 = arith.constant 0 : index
    %268 = vector.load %arg18[%267, %c0_108, %c0_109] : memref<8x16x1xf32, #tpu.memory_space<vmem>>, vector<1x16x1xf32>
    %269 = vector.shape_cast %268 : vector<1x16x1xf32> to vector<16x1xf32>
    %270 = vector.broadcast %262 : vector<1x64xf32> to vector<16x64xf32>
    %271 = vector.broadcast %269 : vector<16x1xf32> to vector<16x64xf32>
    %272 = arith.mulf %270, %271 : vector<16x64xf32>
    %273 = arith.addf %266, %272 : vector<16x64xf32>
    %274 = arith.index_cast %258 : i32 to index
    %c0_110 = arith.constant 0 : index
    %c0_111 = arith.constant 0 : index
    %275 = vector.load %arg19[%274, %c0_110, %c0_111] : memref<8x16x1xf32, #tpu.memory_space<vmem>>, vector<1x16x1xf32>
    %276 = vector.shape_cast %275 : vector<1x16x1xf32> to vector<16x1xf32>
    %277 = vector.broadcast %276 : vector<16x1xf32> to vector<16x64xf32>
    %278 = arith.mulf %273, %277 : vector<16x64xf32>
    %cst_112 = arith.constant dense<0.000000e+00> : vector<64xf32>
    %279 = vector.multi_reduction <add>, %278, %cst_112 [0] : vector<16x64xf32> to vector<64xf32>
    %280 = vector.shape_cast %279 : vector<64xf32> to vector<1x64xf32>
    %281 = tpu.concatenate %119, %142, %165, %188, %211, %234, %257, %280 in 0 : vector<1x64xf32>, vector<1x64xf32>, vector<1x64xf32>, vector<1x64xf32>, vector<1x64xf32>, vector<1x64xf32>, vector<1x64xf32>, vector<1x64xf32> -> vector<8x64xf32>
    %282 = arith.index_cast %96 : i32 to index
    %c0_113 = arith.constant 0 : index
    %283 = vector.load %arg20[%282, %c0_113] : memref<8x64xf32, #tpu.memory_space<vmem>>, vector<8x64xf32>
    tpu.vector_store %arg20[%282, %c0_113], %281 {strides = array<i32>} : memref<8x64xf32, #tpu.memory_space<vmem>>, vector<8x64xf32>,
    %c1_i32_114 = arith.constant 1 : i32
    %c0_115 = arith.constant 0 : index
    %c0_116 = arith.constant 0 : index
    %284 = vector.load %arg22[%c0_115, %c0_116] : memref<16x64xf32, #tpu.memory_space<vmem>>, vector<16x64xf32>
    tpu.vector_store %arg22[%c0_115, %c0_116], %273 {strides = array<i32>} : memref<16x64xf32, #tpu.memory_space<vmem>>, vector<16x64xf32>,
    %c0_117 = arith.constant 0 : index
    %c0_118 = arith.constant 0 : index
    %285 = vector.load %arg21[%c0_117, %c0_118] : memref<8x64xf32, #tpu.memory_space<vmem>>, vector<8x64xf32>
    %cst_119 = arith.constant 0.000000e+00 : f32
    %286 = vector.broadcast %cst_119 : f32 to vector<8x64xf32>
    %287 = arith.subf %286, %285 : vector<8x64xf32>
    %288 = math.exp %287 : vector<8x64xf32>
    %cst_120 = arith.constant 1.000000e+00 : f32
    %289 = vector.broadcast %cst_120 : f32 to vector<8x64xf32>
    %290 = arith.addf %289, %288 : vector<8x64xf32>
    %cst_121 = arith.constant 1.000000e+00 : f32
    %291 = vector.broadcast %cst_121 : f32 to vector<8x64xf32>
    %292 = arith.divf %291, %290 : vector<8x64xf32>
    %293 = arith.mulf %285, %292 : vector<8x64xf32>
    %c0_122 = arith.constant 0 : index
    %c0_123 = arith.constant 0 : index
    %294 = vector.load %arg20[%c0_122, %c0_123] : memref<8x64xf32, #tpu.memory_space<vmem>>, vector<8x64xf32>
    %295 = arith.mulf %293, %294 : vector<8x64xf32>
    %296 = arith.truncf %295 : vector<8x64xf32> to vector<8x64xbf16>
    %c0_124 = arith.constant 0 : index
    %c0_125 = arith.constant 0 : index
    %297 = vector.load %arg13[%c0_124, %c0_125] : memref<64x32xbf16, #tpu.memory_space<vmem>>, vector<64x32xbf16>
    %cst_126 = arith.constant dense<0.000000e+00> : vector<8x32xf32>
    %298 = tpu.matmul %296, %297, %cst_126 {dimension_numbers = #tpu.dot_dimension_numbers<[1], [0], [0], [1], [0, 0, 1, 1], [], []>} : vector<8x64xbf16>, vector<64x32xbf16>, vector<8x32xf32> -> vector<8x32xf32>
    %c0_127 = arith.constant 0 : index
    %c0_128 = arith.constant 0 : index
    %299 = vector.load %arg14[%c0_127, %c0_128] : memref<1x32xf32, #tpu.memory_space<vmem>>, vector<1x32xf32>
    %300 = vector.broadcast %299 : vector<1x32xf32> to vector<8x32xf32>
    %301 = arith.addf %298, %300 : vector<8x32xf32>
    %302 = arith.addf %301, %4 : vector<8x32xf32>
    %c0_129 = arith.constant 0 : index
    %c0_130 = arith.constant 0 : index
    %c0_131 = arith.constant 0 : index
    %303 = vector.load %arg15[%c0_129, %c0_130, %c0_131] : memref<1x8x32xf32, #tpu.memory_space<vmem>>, vector<1x8x32xf32>
    %304 = vector.shape_cast %303 : vector<1x8x32xf32> to vector<8x32xf32>
    %305 = vector.shape_cast %302 : vector<8x32xf32> to vector<1x8x32xf32>
    tpu.vector_store %arg15[%c0_129, %c0_130, %c0_131], %305 {strides = array<i32>} : memref<1x8x32xf32, #tpu.memory_space<vmem>>, vector<1x8x32xf32>,
    return
  }
  func.func @transform_0(%arg0: i32, %arg1: i32) -> (i32, i32, i32) {
    %c0_i32 = arith.constant 0 : i32
    %c0_i32_0 = arith.constant 0 : i32
    return %arg0, %arg1, %c0_i32 : i32, i32, i32
  }
  func.func @transform_1(%arg0: i32, %arg1: i32) -> (i32, i32) {
    %c0_i32 = arith.constant 0 : i32
    %c0_i32_0 = arith.constant 0 : i32
    %c0_i32_1 = arith.constant 0 : i32
    return %c0_i32, %c0_i32_0 : i32, i32
  }
  func.func @transform_2(%arg0: i32, %arg1: i32) -> (i32, i32) {
    %c0_i32 = arith.constant 0 : i32
    %c0_i32_0 = arith.constant 0 : i32
    %c0_i32_1 = arith.constant 0 : i32
    return %c0_i32, %c0_i32_0 : i32, i32
  }
  func.func @transform_3(%arg0: i32, %arg1: i32) -> (i32, i32) {
    %c0_i32 = arith.constant 0 : i32
    %c0_i32_0 = arith.constant 0 : i32
    %c0_i32_1 = arith.constant 0 : i32
    return %c0_i32, %c0_i32_0 : i32, i32
  }
  func.func @transform_4(%arg0: i32, %arg1: i32) -> (i32, i32) {
    %c0_i32 = arith.constant 0 : i32
    %c0_i32_0 = arith.constant 0 : i32
    %c0_i32_1 = arith.constant 0 : i32
    return %c0_i32, %c0_i32_0 : i32, i32
  }
  func.func @transform_5(%arg0: i32, %arg1: i32) -> (i32, i32) {
    %c0_i32 = arith.constant 0 : i32
    %c0_i32_0 = arith.constant 0 : i32
    %c0_i32_1 = arith.constant 0 : i32
    return %c0_i32, %c0_i32_0 : i32, i32
  }
  func.func @transform_6(%arg0: i32, %arg1: i32) -> (i32, i32) {
    %c0_i32 = arith.constant 0 : i32
    %c0_i32_0 = arith.constant 0 : i32
    %c0_i32_1 = arith.constant 0 : i32
    return %c0_i32, %c0_i32_0 : i32, i32
  }
  func.func @transform_7(%arg0: i32, %arg1: i32) -> (i32, i32) {
    %c0_i32 = arith.constant 0 : i32
    %c0_i32_0 = arith.constant 0 : i32
    %c0_i32_1 = arith.constant 0 : i32
    return %c0_i32, %c0_i32_0 : i32, i32
  }
  func.func @transform_8(%arg0: i32, %arg1: i32) -> (i32, i32) {
    %c0_i32 = arith.constant 0 : i32
    %c0_i32_0 = arith.constant 0 : i32
    %c0_i32_1 = arith.constant 0 : i32
    return %c0_i32, %c0_i32_0 : i32, i32
  }
  func.func @transform_9(%arg0: i32, %arg1: i32) -> (i32, i32) {
    %c0_i32 = arith.constant 0 : i32
    %c0_i32_0 = arith.constant 0 : i32
    %c0_i32_1 = arith.constant 0 : i32
    return %c0_i32, %c0_i32_0 : i32, i32
  }
  func.func @transform_10(%arg0: i32, %arg1: i32) -> (i32, i32) {
    %c0_i32 = arith.constant 0 : i32
    %c0_i32_0 = arith.constant 0 : i32
    %c0_i32_1 = arith.constant 0 : i32
    return %c0_i32, %c0_i32_0 : i32, i32
  }
  func.func @transform_11(%arg0: i32, %arg1: i32) -> (i32, i32) {
    %c0_i32 = arith.constant 0 : i32
    %c0_i32_0 = arith.constant 0 : i32
    %c0_i32_1 = arith.constant 0 : i32
    return %c0_i32, %c0_i32_0 : i32, i32
  }
  func.func @transform_12(%arg0: i32, %arg1: i32) -> (i32, i32) {
    %c0_i32 = arith.constant 0 : i32
    %c0_i32_0 = arith.constant 0 : i32
    %c0_i32_1 = arith.constant 0 : i32
    return %c0_i32, %c0_i32_0 : i32, i32
  }
  func.func @transform_13(%arg0: i32, %arg1: i32) -> (i32, i32, i32) {
    %c0_i32 = arith.constant 0 : i32
    %c0_i32_0 = arith.constant 0 : i32
    return %arg0, %arg1, %c0_i32 : i32, i32, i32
  }
}

module attributes {stable_mosaic.version = 11 : i64} {
  func.func @kernel(%arg0: i32, %arg1: i32, %arg2: memref<1x8x32xf32, #tpu.memory_space<vmem>>, %arg3: memref<1x32xf32, #tpu.memory_space<vmem>>, %arg4: memref<32x128xbf16, #tpu.memory_space<vmem>>, %arg5: memref<1x128xf32, #tpu.memory_space<vmem>>, %arg6: memref<4x64xf32, #tpu.memory_space<vmem>>, %arg7: memref<1x64xf32, #tpu.memory_space<vmem>>, %arg8: memref<16x64xf32, #tpu.memory_space<vmem>>, %arg9: memref<64x384xbf16, #tpu.memory_space<vmem>>, %arg10: memref<1x384xf32, #tpu.memory_space<vmem>>, %arg11: memref<128x64xbf16, #tpu.memory_space<vmem>>, %arg12: memref<1x64xf32, #tpu.memory_space<vmem>>, %arg13: memref<64x32xbf16, #tpu.memory_space<vmem>>, %arg14: memref<1x32xf32, #tpu.memory_space<vmem>>, %arg15: memref<1x8x32xf32, #tpu.memory_space<vmem>>, %arg16: memref<8x64xf32, #tpu.memory_space<vmem>>, %arg17: memref<8x64xf32, #tpu.memory_space<vmem>>, %arg18: memref<8x16x1xf32, #tpu.memory_space<vmem>>, %arg19: memref<8x16x1xf32, #tpu.memory_space<vmem>>, %arg20: memref<8x64xf32, #tpu.memory_space<vmem>>, %arg21: memref<8x64xf32, #tpu.memory_space<vmem>>, %arg22: memref<16x64xf32, #tpu.memory_space<vmem>>, %arg23: memref<3x64xf32, #tpu.memory_space<vmem>>) attributes {dimension_semantics = [#tpu.dimension_semantics<parallel>, #tpu.dimension_semantics<arbitrary>], iteration_bounds = array<i64: 2, 1>, scalar_prefetch = 0 : i64, scratch_operands = 8 : i64, tpu.core_type = #tpu.core_type<tc>, window_params = [{transform_indices = @transform_0, window_bounds = array<i64: 1, 8, 32>}, {pipeline_mode = #tpu.pipeline_mode<synchronous>, transform_indices = @transform_1, window_bounds = array<i64: 1, 32>}, {pipeline_mode = #tpu.pipeline_mode<synchronous>, transform_indices = @transform_2, window_bounds = array<i64: 32, 128>}, {pipeline_mode = #tpu.pipeline_mode<synchronous>, transform_indices = @transform_3, window_bounds = array<i64: 1, 128>}, {pipeline_mode = #tpu.pipeline_mode<synchronous>, transform_indices = @transform_4, window_bounds = array<i64: 4, 64>}, {pipeline_mode = #tpu.pipeline_mode<synchronous>, transform_indices = @transform_5, window_bounds = array<i64: 1, 64>}, {pipeline_mode = #tpu.pipeline_mode<synchronous>, transform_indices = @transform_6, window_bounds = array<i64: 16, 64>}, {pipeline_mode = #tpu.pipeline_mode<synchronous>, transform_indices = @transform_7, window_bounds = array<i64: 64, 384>}, {pipeline_mode = #tpu.pipeline_mode<synchronous>, transform_indices = @transform_8, window_bounds = array<i64: 1, 384>}, {pipeline_mode = #tpu.pipeline_mode<synchronous>, transform_indices = @transform_9, window_bounds = array<i64: 128, 64>}, {pipeline_mode = #tpu.pipeline_mode<synchronous>, transform_indices = @transform_10, window_bounds = array<i64: 1, 64>}, {pipeline_mode = #tpu.pipeline_mode<synchronous>, transform_indices = @transform_11, window_bounds = array<i64: 64, 32>}, {pipeline_mode = #tpu.pipeline_mode<synchronous>, transform_indices = @transform_12, window_bounds = array<i64: 1, 32>}, {transform_indices = @transform_13, window_bounds = array<i64: 1, 8, 32>}]} {
    %c0_i32 = arith.constant 0 : i32
    %0 = arith.cmpi eq, %arg1, %c0_i32 : i32
    %1 = arith.extui %0 : i1 to i32
    %c0_i32_0 = arith.constant 0 : i32
    %2 = arith.cmpi ne, %1, %c0_i32_0 : i32
    scf.if %2 {
      %cst_132 = arith.constant 0.000000e+00 : f32
      %306 = vector.broadcast %cst_132 : f32 to vector<16x64xf32>
      %c0_133 = arith.constant 0 : index
      %c0_134 = arith.constant 0 : index
      %307 = vector.load %arg22[%c0_133, %c0_134] : memref<16x64xf32, #tpu.memory_space<vmem>>, vector<16x64xf32>
      tpu.vector_store %arg22[%c0_133, %c0_134], %306 {strides = array<i32>} : memref<16x64xf32, #tpu.memory_space<vmem>>, vector<16x64xf32>,
      %cst_135 = arith.constant 0.000000e+00 : f32
      %308 = vector.broadcast %cst_135 : f32 to vector<3x64xf32>
      %c0_136 = arith.constant 0 : index
      %c0_137 = arith.constant 0 : index
      %309 = vector.load %arg23[%c0_136, %c0_137] : memref<3x64xf32, #tpu.memory_space<vmem>>, vector<3x64xf32>
      tpu.vector_store %arg23[%c0_136, %c0_137], %308 {strides = array<i32>} : memref<3x64xf32, #tpu.memory_space<vmem>>, vector<3x64xf32>,
    } else {
    }
    %c0 = arith.constant 0 : index
    %c0_1 = arith.constant 0 : index
    %c0_2 = arith.constant 0 : index
    %3 = vector.load %arg2[%c0, %c0_1, %c0_2] : memref<1x8x32xf32, #tpu.memory_space<vmem>>, vector<1x8x32xf32>
    %4 = vector.shape_cast %3 : vector<1x8x32xf32> to vector<8x32xf32>
    %5 = arith.mulf %4, %4 : vector<8x32xf32>
    %cst = arith.constant dense<0.000000e+00> : vector<8xf32>
    %6 = vector.multi_reduction <add>, %5, %cst [1] : vector<8x32xf32> to vector<8xf32>
    %7 = vector.shape_cast %6 : vector<8xf32> to vector<8x1xf32>
    %cst_3 = arith.constant 3.200000e+01 : f32
    %8 = vector.broadcast %cst_3 : f32 to vector<8x1xf32>
    %9 = arith.divf %7, %8 : vector<8x1xf32>
    %cst_4 = arith.constant 9.99999997E-7 : f32
    %10 = vector.broadcast %cst_4 : f32 to vector<8x1xf32>
    %11 = arith.addf %9, %10 : vector<8x1xf32>
    %12 = math.rsqrt %11 : vector<8x1xf32>
    %13 = vector.broadcast %12 : vector<8x1xf32> to vector<8x32xf32>
    %14 = arith.mulf %4, %13 : vector<8x32xf32>
    %c0_5 = arith.constant 0 : index
    %c0_6 = arith.constant 0 : index
    %15 = vector.load %arg3[%c0_5, %c0_6] : memref<1x32xf32, #tpu.memory_space<vmem>>, vector<1x32xf32>
    %16 = vector.broadcast %15 : vector<1x32xf32> to vector<8x32xf32>
    %17 = arith.mulf %14, %16 : vector<8x32xf32>
    %18 = arith.truncf %17 : vector<8x32xf32> to vector<8x32xbf16>
    %c0_7 = arith.constant 0 : index
    %c0_8 = arith.constant 0 : index
    %19 = vector.load %arg4[%c0_7, %c0_8] : memref<32x128xbf16, #tpu.memory_space<vmem>>, vector<32x128xbf16>
    %cst_9 = arith.constant dense<0.000000e+00> : vector<8x128xf32>
    %20 = tpu.matmul %18, %19, %cst_9 {dimension_numbers = #tpu.dot_dimension_numbers<[1], [0], [0], [1], [0, 0, 1, 1], [], []>} : vector<8x32xbf16>, vector<32x128xbf16>, vector<8x128xf32> -> vector<8x128xf32>
    %c0_10 = arith.constant 0 : index
    %c0_11 = arith.constant 0 : index
    %21 = vector.load %arg5[%c0_10, %c0_11] : memref<1x128xf32, #tpu.memory_space<vmem>>, vector<1x128xf32>
    %22 = vector.broadcast %21 : vector<1x128xf32> to vector<8x128xf32>
    %23 = arith.addf %20, %22 : vector<8x128xf32>
    %24 = vector.extract_strided_slice %23 {offsets = [0, 0], sizes = [8, 64], strides = [1, 1]} : vector<8x128xf32> to vector<8x64xf32>
    %25 = vector.extract_strided_slice %23 {offsets = [0, 64], sizes = [8, 64], strides = [1, 1]} : vector<8x128xf32> to vector<8x64xf32>
    %c0_12 = arith.constant 0 : index
    %c0_13 = arith.constant 0 : index
    %26 = vector.load %arg21[%c0_12, %c0_13] : memref<8x64xf32, #tpu.memory_space<vmem>>, vector<8x64xf32>
    tpu.vector_store %arg21[%c0_12, %c0_13], %25 {strides = array<i32>} : memref<8x64xf32, #tpu.memory_space<vmem>>, vector<8x64xf32>,
    %c0_14 = arith.constant 0 : index
    %c0_15 = arith.constant 0 : index
    %27 = vector.load %arg23[%c0_14, %c0_15] : memref<3x64xf32, #tpu.memory_space<vmem>>, vector<3x64xf32>
    %28 = tpu.concatenate %27, %24 in 0 : vector<3x64xf32>, vector<8x64xf32> -> vector<11x64xf32>
    %c0_16 = arith.constant 0 : index
    %c0_17 = arith.constant 0 : index
    %29 = vector.load %arg7[%c0_16, %c0_17] : memref<1x64xf32, #tpu.memory_space<vmem>>, vector<1x64xf32>
    %c0_18 = arith.constant 0 : index
    %c0_19 = arith.constant 0 : index
    %30 = vector.load %arg6[%c0_18, %c0_19] : memref<4x64xf32, #tpu.memory_space<vmem>>, vector<1x64xf32>
    %31 = vector.extract_strided_slice %28 {offsets = [0, 0], sizes = [8, 64], strides = [1, 1]} : vector<11x64xf32> to vector<8x64xf32>
    %32 = vector.broadcast %30 : vector<1x64xf32> to vector<8x64xf32>
    %33 = arith.mulf %32, %31 : vector<8x64xf32>
    %34 = vector.broadcast %29 : vector<1x64xf32> to vector<8x64xf32>
    %35 = arith.addf %34, %33 : vector<8x64xf32>
    %c1 = arith.constant 1 : index
    %c0_20 = arith.constant 0 : index
    %36 = vector.load %arg6[%c1, %c0_20] : memref<4x64xf32, #tpu.memory_space<vmem>>, vector<1x64xf32>
    %37 = vector.extract_strided_slice %28 {offsets = [1, 0], sizes = [8, 64], strides = [1, 1]} : vector<11x64xf32> to vector<8x64xf32>
    %38 = vector.broadcast %36 : vector<1x64xf32> to vector<8x64xf32>
    %39 = arith.mulf %38, %37 : vector<8x64xf32>
    %40 = arith.addf %35, %39 : vector<8x64xf32>
    %c2 = arith.constant 2 : index
    %c0_21 = arith.constant 0 : index
    %41 = vector.load %arg6[%c2, %c0_21] : memref<4x64xf32, #tpu.memory_space<vmem>>, vector<1x64xf32>
    %42 = vector.extract_strided_slice %28 {offsets = [2, 0], sizes = [8, 64], strides = [1, 1]} : vector<11x64xf32> to vector<8x64xf32>
    %43 = vector.broadcast %41 : vector<1x64xf32> to vector<8x64xf32>
    %44 = arith.mulf %43, %42 : vector<8x64xf32>
    %45 = arith.addf %40, %44 : vector<8x64xf32>
    %c3 = arith.constant 3 : index
    %c0_22 = arith.constant 0 : index
    %46 = vector.load %arg6[%c3, %c0_22] : memref<4x64xf32, #tpu.memory_space<vmem>>, vector<1x64xf32>
    %47 = vector.extract_strided_slice %28 {offsets = [3, 0], sizes = [8, 64], strides = [1, 1]} : vector<11x64xf32> to vector<8x64xf32>
    %48 = vector.broadcast %46 : vector<1x64xf32> to vector<8x64xf32>
    %49 = arith.mulf %48, %47 : vector<8x64xf32>
    %50 = arith.addf %45, %49 : vector<8x64xf32>
    %51 = vector.extract_strided_slice %28 {offsets = [8, 0], sizes = [3, 64], strides = [1, 1]} : vector<11x64xf32> to vector<3x64xf32>
    %c0_23 = arith.constant 0 : index
    %c0_24 = arith.constant 0 : index
    %52 = vector.load %arg23[%c0_23, %c0_24] : memref<3x64xf32, #tpu.memory_space<vmem>>, vector<3x64xf32>
    tpu.vector_store %arg23[%c0_23, %c0_24], %51 {strides = array<i32>} : memref<3x64xf32, #tpu.memory_space<vmem>>, vector<3x64xf32>,
    %cst_25 = arith.constant 0.000000e+00 : f32
    %53 = vector.broadcast %cst_25 : f32 to vector<8x64xf32>
    %54 = arith.subf %53, %50 : vector<8x64xf32>
    %55 = math.exp %54 : vector<8x64xf32>
    %cst_26 = arith.constant 1.000000e+00 : f32
    %56 = vector.broadcast %cst_26 : f32 to vector<8x64xf32>
    %57 = arith.addf %56, %55 : vector<8x64xf32>
    %cst_27 = arith.constant 1.000000e+00 : f32
    %58 = vector.broadcast %cst_27 : f32 to vector<8x64xf32>
    %59 = arith.divf %58, %57 : vector<8x64xf32>
    %60 = arith.mulf %50, %59 : vector<8x64xf32>
    %61 = arith.truncf %60 : vector<8x64xf32> to vector<8x64xbf16>
    %c0_28 = arith.constant 0 : index
    %c0_29 = arith.constant 0 : index
    %62 = vector.load %arg9[%c0_28, %c0_29] : memref<64x384xbf16, #tpu.memory_space<vmem>>, vector<64x384xbf16>
    %cst_30 = arith.constant dense<0.000000e+00> : vector<8x384xf32>
    %63 = tpu.matmul %61, %62, %cst_30 {dimension_numbers = #tpu.dot_dimension_numbers<[1], [0], [0], [1], [0, 0, 1, 1], [], []>} : vector<8x64xbf16>, vector<64x384xbf16>, vector<8x384xf32> -> vector<8x384xf32>
    %c0_31 = arith.constant 0 : index
    %c0_32 = arith.constant 0 : index
    %64 = vector.load %arg10[%c0_31, %c0_32] : memref<1x384xf32, #tpu.memory_space<vmem>>, vector<1x384xf32>
    %65 = vector.broadcast %64 : vector<1x384xf32> to vector<8x384xf32>
    %66 = arith.addf %63, %65 : vector<8x384xf32>
    %67 = vector.extract_strided_slice %66 {offsets = [0, 128], sizes = [8, 16], strides = [1, 1]} : vector<8x384xf32> to vector<8x16xf32>
    %68 = vector.shape_cast %67 : vector<8x16xf32> to vector<8x16x1xf32>
    %c0_33 = arith.constant 0 : index
    %c0_34 = arith.constant 0 : index
    %c0_35 = arith.constant 0 : index
    %69 = vector.load %arg18[%c0_33, %c0_34, %c0_35] : memref<8x16x1xf32, #tpu.memory_space<vmem>>, vector<8x16x1xf32>
    tpu.vector_store %arg18[%c0_33, %c0_34, %c0_35], %68 {strides = array<i32>} : memref<8x16x1xf32, #tpu.memory_space<vmem>>, vector<8x16x1xf32>,
    %70 = vector.extract_strided_slice %66 {offsets = [0, 256], sizes = [8, 16], strides = [1, 1]} : vector<8x384xf32> to vector<8x16xf32>
    %71 = vector.shape_cast %70 : vector<8x16xf32> to vector<8x16x1xf32>
    %c0_36 = arith.constant 0 : index
    %c0_37 = arith.constant 0 : index
    %c0_38 = arith.constant 0 : index
    %72 = vector.load %arg19[%c0_36, %c0_37, %c0_38] : memref<8x16x1xf32, #tpu.memory_space<vmem>>, vector<8x16x1xf32>
    tpu.vector_store %arg19[%c0_36, %c0_37, %c0_38], %71 {strides = array<i32>} : memref<8x16x1xf32, #tpu.memory_space<vmem>>, vector<8x16x1xf32>,
    %73 = vector.extract_strided_slice %66 {offsets = [0, 0], sizes = [8, 128], strides = [1, 1]} : vector<8x384xf32> to vector<8x128xf32>
    %74 = arith.truncf %73 : vector<8x128xf32> to vector<8x128xbf16>
    %c0_39 = arith.constant 0 : index
    %c0_40 = arith.constant 0 : index
    %75 = vector.load %arg11[%c0_39, %c0_40] : memref<128x64xbf16, #tpu.memory_space<vmem>>, vector<128x64xbf16>
    %cst_41 = arith.constant dense<0.000000e+00> : vector<8x64xf32>
    %76 = tpu.matmul %74, %75, %cst_41 {dimension_numbers = #tpu.dot_dimension_numbers<[1], [0], [0], [1], [0, 0, 1, 1], [], []>} : vector<8x128xbf16>, vector<128x64xbf16>, vector<8x64xf32> -> vector<8x64xf32>
    %c0_42 = arith.constant 0 : index
    %c0_43 = arith.constant 0 : index
    %77 = vector.load %arg12[%c0_42, %c0_43] : memref<1x64xf32, #tpu.memory_space<vmem>>, vector<1x64xf32>
    %78 = vector.broadcast %77 : vector<1x64xf32> to vector<8x64xf32>
    %79 = arith.addf %76, %78 : vector<8x64xf32>
    %cst_44 = arith.constant 0.000000e+00 : f32
    %80 = vector.broadcast %cst_44 : f32 to vector<8x64xf32>
    %81 = arith.maximumf %79, %80 : vector<8x64xf32>
    %82 = math.absf %79 : vector<8x64xf32>
    %cst_45 = arith.constant 0.000000e+00 : f32
    %83 = vector.broadcast %cst_45 : f32 to vector<8x64xf32>
    %84 = arith.subf %83, %82 : vector<8x64xf32>
    %85 = math.exp %84 : vector<8x64xf32>
    %cst_46 = arith.constant 1.000000e+00 : f32
    %86 = vector.broadcast %cst_46 : f32 to vector<8x64xf32>
    %87 = arith.addf %86, %85 : vector<8x64xf32>
    %88 = math.log %87 : vector<8x64xf32>
    %89 = arith.addf %81, %88 : vector<8x64xf32>
    %c0_47 = arith.constant 0 : index
    %c0_48 = arith.constant 0 : index
    %90 = vector.load %arg16[%c0_47, %c0_48] : memref<8x64xf32, #tpu.memory_space<vmem>>, vector<8x64xf32>
    tpu.vector_store %arg16[%c0_47, %c0_48], %89 {strides = array<i32>} : memref<8x64xf32, #tpu.memory_space<vmem>>, vector<8x64xf32>,
    %91 = arith.mulf %89, %60 : vector<8x64xf32>
    %c0_49 = arith.constant 0 : index
    %c0_50 = arith.constant 0 : index
    %92 = vector.load %arg17[%c0_49, %c0_50] : memref<8x64xf32, #tpu.memory_space<vmem>>, vector<8x64xf32>
    tpu.vector_store %arg17[%c0_49, %c0_50], %91 {strides = array<i32>} : memref<8x64xf32, #tpu.memory_space<vmem>>, vector<8x64xf32>,
    %c0_51 = arith.constant 0 : index
    %c0_52 = arith.constant 0 : index
    %93 = vector.load %arg8[%c0_51, %c0_52] : memref<16x64xf32, #tpu.memory_space<vmem>>, vector<16x64xf32>
    %c0_53 = arith.constant 0 : index
    %c0_54 = arith.constant 0 : index
    %94 = vector.load %arg22[%c0_53, %c0_54] : memref<16x64xf32, #tpu.memory_space<vmem>>, vector<16x64xf32>
    %c0_i32_55 = arith.constant 0 : i32
    %c8_i32 = arith.constant 8 : i32
    %95 = arith.muli %c0_i32_55, %c8_i32 : i32
    %96 = tpu.assume_multiple %95, 8 : i32
    %c0_i32_56 = arith.constant 0 : i32
    %97 = arith.addi %96, %c0_i32_56 : i32
    %98 = arith.index_cast %97 : i32 to index
    %c0_57 = arith.constant 0 : index
    %99 = vector.load %arg16[%98, %c0_57] : memref<8x64xf32, #tpu.memory_space<vmem>>, vector<1x64xf32>
    %100 = arith.index_cast %97 : i32 to index
    %c0_58 = arith.constant 0 : index
    %101 = vector.load %arg17[%100, %c0_58] : memref<8x64xf32, #tpu.memory_space<vmem>>, vector<1x64xf32>
    %102 = vector.broadcast %99 : vector<1x64xf32> to vector<16x64xf32>
    %103 = arith.mulf %102, %93 : vector<16x64xf32>
    %104 = math.exp %103 : vector<16x64xf32>
    %105 = arith.mulf %104, %94 : vector<16x64xf32>
    %106 = arith.index_cast %97 : i32 to index
    %c0_59 = arith.constant 0 : index
    %c0_60 = arith.constant 0 : index
    %107 = vector.load %arg18[%106, %c0_59, %c0_60] : memref<8x16x1xf32, #tpu.memory_space<vmem>>, vector<1x16x1xf32>
    %108 = vector.shape_cast %107 : vector<1x16x1xf32> to vector<16x1xf32>
    %109 = vector.broadcast %101 : vector<1x64xf32> to vector<16x64xf32>
    %110 = vector.broadcast %108 : vector<16x1xf32> to vector<16x64xf32>
    %111 = arith.mulf %109, %110 : vector<16x64xf32>
    %112 = arith.addf %105, %111 : vector<16x64xf32>
    %113 = arith.index_cast %97 : i32 to index
    %c0_61 = arith.constant 0 : index
    %c0_62 = arith.constant 0 : index
    %114 = vector.load %arg19[%113, %c0_61, %c0_62] : memref<8x16x1xf32, #tpu.memory_space<vmem>>, vector<1x16x1xf32>
    %115 = vector.shape_cast %114 : vector<1x16x1xf32> to vector<16x1xf32>
    %116 = vector.broadcast %115 : vector<16x1xf32> to vector<16x64xf32>
    %117 = arith.mulf %112, %116 : vector<16x64xf32>
    %cst_63 = arith.constant dense<0.000000e+00> : vector<64xf32>
    %118 = vector.multi_reduction <add>, %117, %cst_63 [0] : vector<16x64xf32> to vector<64xf32>
    %119 = vector.shape_cast %118 : vector<64xf32> to vector<1x64xf32>
    %c1_i32 = arith.constant 1 : i32
    %120 = arith.addi %96, %c1_i32 : i32
    %121 = arith.index_cast %120 : i32 to index
    %c0_64 = arith.constant 0 : index
    %122 = vector.load %arg16[%121, %c0_64] : memref<8x64xf32, #tpu.memory_space<vmem>>, vector<1x64xf32>
    %123 = arith.index_cast %120 : i32 to index
    %c0_65 = arith.constant 0 : index
    %124 = vector.load %arg17[%123, %c0_65] : memref<8x64xf32, #tpu.memory_space<vmem>>, vector<1x64xf32>
    %125 = vector.broadcast %122 : vector<1x64xf32> to vector<16x64xf32>
    %126 = arith.mulf %125, %93 : vector<16x64xf32>
    %127 = math.exp %126 : vector<16x64xf32>
    %128 = arith.mulf %127, %112 : vector<16x64xf32>
    %129 = arith.index_cast %120 : i32 to index
    %c0_66 = arith.constant 0 : index
    %c0_67 = arith.constant 0 : index
    %130 = vector.load %arg18[%129, %c0_66, %c0_67] : memref<8x16x1xf32, #tpu.memory_space<vmem>>, vector<1x16x1xf32>
    %131 = vector.shape_cast %130 : vector<1x16x1xf32> to vector<16x1xf32>
    %132 = vector.broadcast %124 : vector<1x64xf32> to vector<16x64xf32>
    %133 = vector.broadcast %131 : vector<16x1xf32> to vector<16x64xf32>
    %134 = arith.mulf %132, %133 : vector<16x64xf32>
    %135 = arith.addf %128, %134 : vector<16x64xf32>
    %136 = arith.index_cast %120 : i32 to index
    %c0_68 = arith.constant 0 : index
    %c0_69 = arith.constant 0 : index
    %137 = vector.load %arg19[%136, %c0_68, %c0_69] : memref<8x16x1xf32, #tpu.memory_space<vmem>>, vector<1x16x1xf32>
    %138 = vector.shape_cast %137 : vector<1x16x1xf32> to vector<16x1xf32>
    %139 = vector.broadcast %138 : vector<16x1xf32> to vector<16x64xf32>
    %140 = arith.mulf %135, %139 : vector<16x64xf32>
    %cst_70 = arith.constant dense<0.000000e+00> : vector<64xf32>
    %141 = vector.multi_reduction <add>, %140, %cst_70 [0] : vector<16x64xf32> to vector<64xf32>
    %142 = vector.shape_cast %141 : vector<64xf32> to vector<1x64xf32>
    %c2_i32 = arith.constant 2 : i32
    %143 = arith.addi %96, %c2_i32 : i32
    %144 = arith.index_cast %143 : i32 to index
    %c0_71 = arith.constant 0 : index
    %145 = vector.load %arg16[%144, %c0_71] : memref<8x64xf32, #tpu.memory_space<vmem>>, vector<1x64xf32>
    %146 = arith.index_cast %143 : i32 to index
    %c0_72 = arith.constant 0 : index
    %147 = vector.load %arg17[%146, %c0_72] : memref<8x64xf32, #tpu.memory_space<vmem>>, vector<1x64xf32>
    %148 = vector.broadcast %145 : vector<1x64xf32> to vector<16x64xf32>
    %149 = arith.mulf %148, %93 : vector<16x64xf32>
    %150 = math.exp %149 : vector<16x64xf32>
    %151 = arith.mulf %150, %135 : vector<16x64xf32>
    %152 = arith.index_cast %143 : i32 to index
    %c0_73 = arith.constant 0 : index
    %c0_74 = arith.constant 0 : index
    %153 = vector.load %arg18[%152, %c0_73, %c0_74] : memref<8x16x1xf32, #tpu.memory_space<vmem>>, vector<1x16x1xf32>
    %154 = vector.shape_cast %153 : vector<1x16x1xf32> to vector<16x1xf32>
    %155 = vector.broadcast %147 : vector<1x64xf32> to vector<16x64xf32>
    %156 = vector.broadcast %154 : vector<16x1xf32> to vector<16x64xf32>
    %157 = arith.mulf %155, %156 : vector<16x64xf32>
    %158 = arith.addf %151, %157 : vector<16x64xf32>
    %159 = arith.index_cast %143 : i32 to index
    %c0_75 = arith.constant 0 : index
    %c0_76 = arith.constant 0 : index
    %160 = vector.load %arg19[%159, %c0_75, %c0_76] : memref<8x16x1xf32, #tpu.memory_space<vmem>>, vector<1x16x1xf32>
    %161 = vector.shape_cast %160 : vector<1x16x1xf32> to vector<16x1xf32>
    %162 = vector.broadcast %161 : vector<16x1xf32> to vector<16x64xf32>
    %163 = arith.mulf %158, %162 : vector<16x64xf32>
    %cst_77 = arith.constant dense<0.000000e+00> : vector<64xf32>
    %164 = vector.multi_reduction <add>, %163, %cst_77 [0] : vector<16x64xf32> to vector<64xf32>
    %165 = vector.shape_cast %164 : vector<64xf32> to vector<1x64xf32>
    %c3_i32 = arith.constant 3 : i32
    %166 = arith.addi %96, %c3_i32 : i32
    %167 = arith.index_cast %166 : i32 to index
    %c0_78 = arith.constant 0 : index
    %168 = vector.load %arg16[%167, %c0_78] : memref<8x64xf32, #tpu.memory_space<vmem>>, vector<1x64xf32>
    %169 = arith.index_cast %166 : i32 to index
    %c0_79 = arith.constant 0 : index
    %170 = vector.load %arg17[%169, %c0_79] : memref<8x64xf32, #tpu.memory_space<vmem>>, vector<1x64xf32>
    %171 = vector.broadcast %168 : vector<1x64xf32> to vector<16x64xf32>
    %172 = arith.mulf %171, %93 : vector<16x64xf32>
    %173 = math.exp %172 : vector<16x64xf32>
    %174 = arith.mulf %173, %158 : vector<16x64xf32>
    %175 = arith.index_cast %166 : i32 to index
    %c0_80 = arith.constant 0 : index
    %c0_81 = arith.constant 0 : index
    %176 = vector.load %arg18[%175, %c0_80, %c0_81] : memref<8x16x1xf32, #tpu.memory_space<vmem>>, vector<1x16x1xf32>
    %177 = vector.shape_cast %176 : vector<1x16x1xf32> to vector<16x1xf32>
    %178 = vector.broadcast %170 : vector<1x64xf32> to vector<16x64xf32>
    %179 = vector.broadcast %177 : vector<16x1xf32> to vector<16x64xf32>
    %180 = arith.mulf %178, %179 : vector<16x64xf32>
    %181 = arith.addf %174, %180 : vector<16x64xf32>
    %182 = arith.index_cast %166 : i32 to index
    %c0_82 = arith.constant 0 : index
    %c0_83 = arith.constant 0 : index
    %183 = vector.load %arg19[%182, %c0_82, %c0_83] : memref<8x16x1xf32, #tpu.memory_space<vmem>>, vector<1x16x1xf32>
    %184 = vector.shape_cast %183 : vector<1x16x1xf32> to vector<16x1xf32>
    %185 = vector.broadcast %184 : vector<16x1xf32> to vector<16x64xf32>
    %186 = arith.mulf %181, %185 : vector<16x64xf32>
    %cst_84 = arith.constant dense<0.000000e+00> : vector<64xf32>
    %187 = vector.multi_reduction <add>, %186, %cst_84 [0] : vector<16x64xf32> to vector<64xf32>
    %188 = vector.shape_cast %187 : vector<64xf32> to vector<1x64xf32>
    %c4_i32 = arith.constant 4 : i32
    %189 = arith.addi %96, %c4_i32 : i32
    %190 = arith.index_cast %189 : i32 to index
    %c0_85 = arith.constant 0 : index
    %191 = vector.load %arg16[%190, %c0_85] : memref<8x64xf32, #tpu.memory_space<vmem>>, vector<1x64xf32>
    %192 = arith.index_cast %189 : i32 to index
    %c0_86 = arith.constant 0 : index
    %193 = vector.load %arg17[%192, %c0_86] : memref<8x64xf32, #tpu.memory_space<vmem>>, vector<1x64xf32>
    %194 = vector.broadcast %191 : vector<1x64xf32> to vector<16x64xf32>
    %195 = arith.mulf %194, %93 : vector<16x64xf32>
    %196 = math.exp %195 : vector<16x64xf32>
    %197 = arith.mulf %196, %181 : vector<16x64xf32>
    %198 = arith.index_cast %189 : i32 to index
    %c0_87 = arith.constant 0 : index
    %c0_88 = arith.constant 0 : index
    %199 = vector.load %arg18[%198, %c0_87, %c0_88] : memref<8x16x1xf32, #tpu.memory_space<vmem>>, vector<1x16x1xf32>
    %200 = vector.shape_cast %199 : vector<1x16x1xf32> to vector<16x1xf32>
    %201 = vector.broadcast %193 : vector<1x64xf32> to vector<16x64xf32>
    %202 = vector.broadcast %200 : vector<16x1xf32> to vector<16x64xf32>
    %203 = arith.mulf %201, %202 : vector<16x64xf32>
    %204 = arith.addf %197, %203 : vector<16x64xf32>
    %205 = arith.index_cast %189 : i32 to index
    %c0_89 = arith.constant 0 : index
    %c0_90 = arith.constant 0 : index
    %206 = vector.load %arg19[%205, %c0_89, %c0_90] : memref<8x16x1xf32, #tpu.memory_space<vmem>>, vector<1x16x1xf32>
    %207 = vector.shape_cast %206 : vector<1x16x1xf32> to vector<16x1xf32>
    %208 = vector.broadcast %207 : vector<16x1xf32> to vector<16x64xf32>
    %209 = arith.mulf %204, %208 : vector<16x64xf32>
    %cst_91 = arith.constant dense<0.000000e+00> : vector<64xf32>
    %210 = vector.multi_reduction <add>, %209, %cst_91 [0] : vector<16x64xf32> to vector<64xf32>
    %211 = vector.shape_cast %210 : vector<64xf32> to vector<1x64xf32>
    %c5_i32 = arith.constant 5 : i32
    %212 = arith.addi %96, %c5_i32 : i32
    %213 = arith.index_cast %212 : i32 to index
    %c0_92 = arith.constant 0 : index
    %214 = vector.load %arg16[%213, %c0_92] : memref<8x64xf32, #tpu.memory_space<vmem>>, vector<1x64xf32>
    %215 = arith.index_cast %212 : i32 to index
    %c0_93 = arith.constant 0 : index
    %216 = vector.load %arg17[%215, %c0_93] : memref<8x64xf32, #tpu.memory_space<vmem>>, vector<1x64xf32>
    %217 = vector.broadcast %214 : vector<1x64xf32> to vector<16x64xf32>
    %218 = arith.mulf %217, %93 : vector<16x64xf32>
    %219 = math.exp %218 : vector<16x64xf32>
    %220 = arith.mulf %219, %204 : vector<16x64xf32>
    %221 = arith.index_cast %212 : i32 to index
    %c0_94 = arith.constant 0 : index
    %c0_95 = arith.constant 0 : index
    %222 = vector.load %arg18[%221, %c0_94, %c0_95] : memref<8x16x1xf32, #tpu.memory_space<vmem>>, vector<1x16x1xf32>
    %223 = vector.shape_cast %222 : vector<1x16x1xf32> to vector<16x1xf32>
    %224 = vector.broadcast %216 : vector<1x64xf32> to vector<16x64xf32>
    %225 = vector.broadcast %223 : vector<16x1xf32> to vector<16x64xf32>
    %226 = arith.mulf %224, %225 : vector<16x64xf32>
    %227 = arith.addf %220, %226 : vector<16x64xf32>
    %228 = arith.index_cast %212 : i32 to index
    %c0_96 = arith.constant 0 : index
    %c0_97 = arith.constant 0 : index
    %229 = vector.load %arg19[%228, %c0_96, %c0_97] : memref<8x16x1xf32, #tpu.memory_space<vmem>>, vector<1x16x1xf32>
    %230 = vector.shape_cast %229 : vector<1x16x1xf32> to vector<16x1xf32>
    %231 = vector.broadcast %230 : vector<16x1xf32> to vector<16x64xf32>
    %232 = arith.mulf %227, %231 : vector<16x64xf32>
    %cst_98 = arith.constant dense<0.000000e+00> : vector<64xf32>
    %233 = vector.multi_reduction <add>, %232, %cst_98 [0] : vector<16x64xf32> to vector<64xf32>
    %234 = vector.shape_cast %233 : vector<64xf32> to vector<1x64xf32>
    %c6_i32 = arith.constant 6 : i32
    %235 = arith.addi %96, %c6_i32 : i32
    %236 = arith.index_cast %235 : i32 to index
    %c0_99 = arith.constant 0 : index
    %237 = vector.load %arg16[%236, %c0_99] : memref<8x64xf32, #tpu.memory_space<vmem>>, vector<1x64xf32>
    %238 = arith.index_cast %235 : i32 to index
    %c0_100 = arith.constant 0 : index
    %239 = vector.load %arg17[%238, %c0_100] : memref<8x64xf32, #tpu.memory_space<vmem>>, vector<1x64xf32>
    %240 = vector.broadcast %237 : vector<1x64xf32> to vector<16x64xf32>
    %241 = arith.mulf %240, %93 : vector<16x64xf32>
    %242 = math.exp %241 : vector<16x64xf32>
    %243 = arith.mulf %242, %227 : vector<16x64xf32>
    %244 = arith.index_cast %235 : i32 to index
    %c0_101 = arith.constant 0 : index
    %c0_102 = arith.constant 0 : index
    %245 = vector.load %arg18[%244, %c0_101, %c0_102] : memref<8x16x1xf32, #tpu.memory_space<vmem>>, vector<1x16x1xf32>
    %246 = vector.shape_cast %245 : vector<1x16x1xf32> to vector<16x1xf32>
    %247 = vector.broadcast %239 : vector<1x64xf32> to vector<16x64xf32>
    %248 = vector.broadcast %246 : vector<16x1xf32> to vector<16x64xf32>
    %249 = arith.mulf %247, %248 : vector<16x64xf32>
    %250 = arith.addf %243, %249 : vector<16x64xf32>
    %251 = arith.index_cast %235 : i32 to index
    %c0_103 = arith.constant 0 : index
    %c0_104 = arith.constant 0 : index
    %252 = vector.load %arg19[%251, %c0_103, %c0_104] : memref<8x16x1xf32, #tpu.memory_space<vmem>>, vector<1x16x1xf32>
    %253 = vector.shape_cast %252 : vector<1x16x1xf32> to vector<16x1xf32>
    %254 = vector.broadcast %253 : vector<16x1xf32> to vector<16x64xf32>
    %255 = arith.mulf %250, %254 : vector<16x64xf32>
    %cst_105 = arith.constant dense<0.000000e+00> : vector<64xf32>
    %256 = vector.multi_reduction <add>, %255, %cst_105 [0] : vector<16x64xf32> to vector<64xf32>
    %257 = vector.shape_cast %256 : vector<64xf32> to vector<1x64xf32>
    %c7_i32 = arith.constant 7 : i32
    %258 = arith.addi %96, %c7_i32 : i32
    %259 = arith.index_cast %258 : i32 to index
    %c0_106 = arith.constant 0 : index
    %260 = vector.load %arg16[%259, %c0_106] : memref<8x64xf32, #tpu.memory_space<vmem>>, vector<1x64xf32>
    %261 = arith.index_cast %258 : i32 to index
    %c0_107 = arith.constant 0 : index
    %262 = vector.load %arg17[%261, %c0_107] : memref<8x64xf32, #tpu.memory_space<vmem>>, vector<1x64xf32>
    %263 = vector.broadcast %260 : vector<1x64xf32> to vector<16x64xf32>
    %264 = arith.mulf %263, %93 : vector<16x64xf32>
    %265 = math.exp %264 : vector<16x64xf32>
    %266 = arith.mulf %265, %250 : vector<16x64xf32>
    %267 = arith.index_cast %258 : i32 to index
    %c0_108 = arith.constant 0 : index
    %c0_109 = arith.constant 0 : index
    %268 = vector.load %arg18[%267, %c0_108, %c0_109] : memref<8x16x1xf32, #tpu.memory_space<vmem>>, vector<1x16x1xf32>
    %269 = vector.shape_cast %268 : vector<1x16x1xf32> to vector<16x1xf32>
    %270 = vector.broadcast %262 : vector<1x64xf32> to vector<16x64xf32>
    %271 = vector.broadcast %269 : vector<16x1xf32> to vector<16x64xf32>
    %272 = arith.mulf %270, %271 : vector<16x64xf32>
    %273 = arith.addf %266, %272 : vector<16x64xf32>
    %274 = arith.index_cast %258 : i32 to index
    %c0_110 = arith.constant 0 : index
    %c0_111 = arith.constant 0 : index
    %275 = vector.load %arg19[%274, %c0_110, %c0_111] : memref<8x16x1xf32, #tpu.memory_space<vmem>>, vector<1x16x1xf32>
    %276 = vector.shape_cast %275 : vector<1x16x1xf32> to vector<16x1xf32>
    %277 = vector.broadcast %276 : vector<16x1xf32> to vector<16x64xf32>
    %278 = arith.mulf %273, %277 : vector<16x64xf32>
    %cst_112 = arith.constant dense<0.000000e+00> : vector<64xf32>
    %279 = vector.multi_reduction <add>, %278, %cst_112 [0] : vector<16x64xf32> to vector<64xf32>
    %280 = vector.shape_cast %279 : vector<64xf32> to vector<1x64xf32>
    %281 = tpu.concatenate %119, %142, %165, %188, %211, %234, %257, %280 in 0 : vector<1x64xf32>, vector<1x64xf32>, vector<1x64xf32>, vector<1x64xf32>, vector<1x64xf32>, vector<1x64xf32>, vector<1x64xf32>, vector<1x64xf32> -> vector<8x64xf32>
    %282 = arith.index_cast %96 : i32 to index
    %c0_113 = arith.constant 0 : index
    %283 = vector.load %arg20[%282, %c0_113] : memref<8x64xf32, #tpu.memory_space<vmem>>, vector<8x64xf32>
    tpu.vector_store %arg20[%282, %c0_113], %281 {strides = array<i32>} : memref<8x64xf32, #tpu.memory_space<vmem>>, vector<8x64xf32>,
    %c1_i32_114 = arith.constant 1 : i32
    %c0_115 = arith.constant 0 : index
    %c0_116 = arith.constant 0 : index
    %284 = vector.load %arg22[%c0_115, %c0_116] : memref<16x64xf32, #tpu.memory_space<vmem>>, vector<16x64xf32>
    tpu.vector_store %arg22[%c0_115, %c0_116], %273 {strides = array<i32>} : memref<16x64xf32, #tpu.memory_space<vmem>>, vector<16x64xf32>,
    %c0_117 = arith.constant 0 : index
    %c0_118 = arith.constant 0 : index
    %285 = vector.load %arg21[%c0_117, %c0_118] : memref<8x64xf32, #tpu.memory_space<vmem>>, vector<8x64xf32>
    %cst_119 = arith.constant 0.000000e+00 : f32
    %286 = vector.broadcast %cst_119 : f32 to vector<8x64xf32>
    %287 = arith.subf %286, %285 : vector<8x64xf32>
    %288 = math.exp %287 : vector<8x64xf32>
    %cst_120 = arith.constant 1.000000e+00 : f32
    %289 = vector.broadcast %cst_120 : f32 to vector<8x64xf32>
    %290 = arith.addf %289, %288 : vector<8x64xf32>
    %cst_121 = arith.constant 1.000000e+00 : f32
    %291 = vector.broadcast %cst_121 : f32 to vector<8x64xf32>
    %292 = arith.divf %291, %290 : vector<8x64xf32>
    %293 = arith.mulf %285, %292 : vector<8x64xf32>
    %c0_122 = arith.constant 0 : index
    %c0_123 = arith.constant 0 : index
    %294 = vector.load %arg20[%c0_122, %c0_123] : memref<8x64xf32, #tpu.memory_space<vmem>>, vector<8x64xf32>
    %295 = arith.mulf %293, %294 : vector<8x64xf32>
    %296 = arith.truncf %295 : vector<8x64xf32> to vector<8x64xbf16>
    %c0_124 = arith.constant 0 : index
    %c0_125 = arith.constant 0 : index
    %297 = vector.load %arg13[%c0_124, %c0_125] : memref<64x32xbf16, #tpu.memory_space<vmem>>, vector<64x32xbf16>
    %cst_126 = arith.constant dense<0.000000e+00> : vector<8x32xf32>
    %298 = tpu.matmul %296, %297, %cst_126 {dimension_numbers = #tpu.dot_dimension_numbers<[1], [0], [0], [1], [0, 0, 1, 1], [], []>} : vector<8x64xbf16>, vector<64x32xbf16>, vector<8x32xf32> -> vector<8x32xf32>
    %c0_127 = arith.constant 0 : index
    %c0_128 = arith.constant 0 : index
    %299 = vector.load %arg14[%c0_127, %c0_128] : memref<1x32xf32, #tpu.memory_space<vmem>>, vector<1x32xf32>
    %300 = vector.broadcast %299 : vector<1x32xf32> to vector<8x32xf32>
    %301 = arith.addf %298, %300 : vector<8x32xf32>
    %302 = arith.addf %301, %4 : vector<8x32xf32>
    %c0_129 = arith.constant 0 : index
    %c0_130 = arith.constant 0 : index
    %c0_131 = arith.constant 0 : index
    %303 = vector.load %arg15[%c0_129, %c0_130, %c0_131] : memref<1x8x32xf32, #tpu.memory_space<vmem>>, vector<1x8x32xf32>
    %304 = vector.shape_cast %303 : vector<1x8x32xf32> to vector<8x32xf32>
    %305 = vector.shape_cast %302 : vector<8x32xf32> to vector<1x8x32xf32>
    tpu.vector_store %arg15[%c0_129, %c0_130, %c0_131], %305 {strides = array<i32>} : memref<1x8x32xf32, #tpu.memory_space<vmem>>, vector<1x8x32xf32>,
    return
  }
  func.func @transform_0(%arg0: i32, %arg1: i32) -> (i32, i32, i32) {
    %c0_i32 = arith.constant 0 : i32
    %c0_i32_0 = arith.constant 0 : i32
    return %arg0, %arg1, %c0_i32 : i32, i32, i32
  }
  func.func @transform_1(%arg0: i32, %arg1: i32) -> (i32, i32) {
    %c0_i32 = arith.constant 0 : i32
    %c0_i32_0 = arith.constant 0 : i32
    %c0_i32_1 = arith.constant 0 : i32
    return %c0_i32, %c0_i32_0 : i32, i32
  }
  func.func @transform_2(%arg0: i32, %arg1: i32) -> (i32, i32) {
    %c0_i32 = arith.constant 0 : i32
    %c0_i32_0 = arith.constant 0 : i32
    %c0_i32_1 = arith.constant 0 : i32
    return %c0_i32, %c0_i32_0 : i32, i32
  }
  func.func @transform_3(%arg0: i32, %arg1: i32) -> (i32, i32) {
    %c0_i32 = arith.constant 0 : i32
    %c0_i32_0 = arith.constant 0 : i32
    %c0_i32_1 = arith.constant 0 : i32
    return %c0_i32, %c0_i32_0 : i32, i32
  }
  func.func @transform_4(%arg0: i32, %arg1: i32) -> (i32, i32) {
    %c0_i32 = arith.constant 0 : i32
    %c0_i32_0 = arith.constant 0 : i32
    %c0_i32_1 = arith.constant 0 : i32
    return %c0_i32, %c0_i32_0 : i32, i32
  }
  func.func @transform_5(%arg0: i32, %arg1: i32) -> (i32, i32) {
    %c0_i32 = arith.constant 0 : i32
    %c0_i32_0 = arith.constant 0 : i32
    %c0_i32_1 = arith.constant 0 : i32
    return %c0_i32, %c0_i32_0 : i32, i32
  }
  func.func @transform_6(%arg0: i32, %arg1: i32) -> (i32, i32) {
    %c0_i32 = arith.constant 0 : i32
    %c0_i32_0 = arith.constant 0 : i32
    %c0_i32_1 = arith.constant 0 : i32
    return %c0_i32, %c0_i32_0 : i32, i32
  }
  func.func @transform_7(%arg0: i32, %arg1: i32) -> (i32, i32) {
    %c0_i32 = arith.constant 0 : i32
    %c0_i32_0 = arith.constant 0 : i32
    %c0_i32_1 = arith.constant 0 : i32
    return %c0_i32, %c0_i32_0 : i32, i32
  }
  func.func @transform_8(%arg0: i32, %arg1: i32) -> (i32, i32) {
    %c0_i32 = arith.constant 0 : i32
    %c0_i32_0 = arith.constant 0 : i32
    %c0_i32_1 = arith.constant 0 : i32
    return %c0_i32, %c0_i32_0 : i32, i32
  }
  func.func @transform_9(%arg0: i32, %arg1: i32) -> (i32, i32) {
    %c0_i32 = arith.constant 0 : i32
    %c0_i32_0 = arith.constant 0 : i32
    %c0_i32_1 = arith.constant 0 : i32
    return %c0_i32, %c0_i32_0 : i32, i32
  }
  func.func @transform_10(%arg0: i32, %arg1: i32) -> (i32, i32) {
    %c0_i32 = arith.constant 0 : i32
    %c0_i32_0 = arith.constant 0 : i32
    %c0_i32_1 = arith.constant 0 : i32
    return %c0_i32, %c0_i32_0 : i32, i32
  }
  func.func @transform_11(%arg0: i32, %arg1: i32) -> (i32, i32) {
    %c0_i32 = arith.constant 0 : i32
    %c0_i32_0 = arith.constant 0 : i32
    %c0_i32_1 = arith.constant 0 : i32
    return %c0_i32, %c0_i32_0 : i32, i32
  }
  func.func @transform_12(%arg0: i32, %arg1: i32) -> (i32, i32) {
    %c0_i32 = arith.constant 0 : i32
    %c0_i32_0 = arith.constant 0 : i32
    %c0_i32_1 = arith.constant 0 : i32
    return %c0_i32, %c0_i32_0 : i32, i32
  }
  func.func @transform_13(%arg0: i32, %arg1: i32) -> (i32, i32, i32) {
    %c0_i32 = arith.constant 0 : i32
    %c0_i32_0 = arith.constant 0 : i32
    return %arg0, %arg1, %c0_i32 : i32, i32, i32
  }
}

</mosaic_0001>

<llo_original>
// kernel: tpu_custom_call.1
$region0: #{tpu_custom_call.1}
  #allocation0 [shape = 'u32[]', space=smem, size = 0x4, offset = 0x4, fixed_abs, tag = 'smem constant byte address 0x4 - core index']
  #allocation1 [shape = 'u32[144,128]{1,0:T(1,128)}', space=vmem, size = 0x12000, scoped, tag = 'internal scratch']
  #allocation2 [shape = 'f32[8,64]{1,0:T(8,128)}', space=vmem, size = 0x1000, scoped, tag = 'scratch operand']
  #allocation3 [shape = 'f32[8,64]{1,0:T(8,128)}', space=vmem, size = 0x1000, scoped, tag = 'scratch operand']
  #allocation4 [shape = 'f32[8,16,1]{2,1,0:T(8,128)}', space=vmem, size = 0x10000, scoped, tag = 'scratch operand']
  #allocation5 [shape = 'f32[8,16,1]{2,1,0:T(8,128)}', space=vmem, size = 0x10000, scoped, tag = 'scratch operand']
  #allocation6 [shape = 'f32[8,64]{1,0:T(8,128)}', space=vmem, size = 0x1000, scoped, tag = 'scratch operand']
  #allocation7 [shape = 'f32[8,64]{1,0:T(8,128)}', space=vmem, size = 0x1000, scoped, tag = 'scratch operand']
  #allocation8 [shape = 'f32[16,64]{1,0:T(8,128)}', space=vmem, size = 0x2000, scoped, tag = 'scratch operand']
  #allocation9 [shape = 'f32[3,64]{1,0:T(4,128)}', space=vmem, size = 0x800, scoped, tag = 'scratch operand']
  %s0 = inlined_call_operand.vmem [shape: f32[2,8,32], index: 0, kind: input, shape index: {}]
  %s1 = inlined_call_operand.vmem [shape: f32[1,32], index: 1, kind: input, shape index: {}]
  %s2 = inlined_call_operand.vmem [shape: bf16[32,128], index: 2, kind: input, shape index: {}]
  %s3 = inlined_call_operand.vmem [shape: f32[1,128], index: 3, kind: input, shape index: {}]
  %s4 = inlined_call_operand.hbm [shape: f32[4,64], index: 4, kind: input, shape index: {}]
  %s5 = inlined_call_operand.hbm [shape: f32[1,64], index: 5, kind: input, shape index: {}]
  %s6 = inlined_call_operand.hbm [shape: f32[16,64], index: 6, kind: input, shape index: {}]
  %s7 = inlined_call_operand.vmem [shape: bf16[64,384], index: 7, kind: input, shape index: {}]
  %s8 = inlined_call_operand.hbm [shape: f32[1,384], index: 8, kind: input, shape index: {}]
  %s9 = inlined_call_operand.vmem [shape: bf16[128,64], index: 9, kind: input, shape index: {}]
  %s10 = inlined_call_operand.vmem [shape: f32[1,64], index: 10, kind: input, shape index: {}]
  %s11 = inlined_call_operand.vmem [shape: bf16[64,32], index: 11, kind: input, shape index: {}]
  %s12 = inlined_call_operand.vmem [shape: f32[1,32], index: 12, kind: input, shape index: {}]
  %s13 = inlined_call_operand.hbm [shape: f32[2,8,32], index: 13, kind: output, shape index: {}]
  %s14 = sld [smem:[#allocation0]]
  $region105: #{tpu_custom_call.1} parent=0
    _
  %s16 = ssub.s32 1, %s14
  %s17 = scalar_select 0, %s16, %s14
  $region1: #{tpu_custom_call.1} parent=0
    #allocation10 [shape = 'u8[2048]{0}', space=vmem, size = 0x800, scoped, tag = 'input window, operand 4, single buffered']
    #allocation11 [shape = 's32[2]{0}', space=sflag, size = 0x8, scoped, tag = 'scoped memory for tpu_custom_call.1']
    #allocation12 [shape = 's32[2]{0}', space=sflag, size = 0x8, scoped, tag = 'scoped memory for tpu_custom_call.1']
    #allocation13 [shape = 'u8[512]{0}', space=vmem, size = 0x400, scoped, tag = 'input window, operand 5, single buffered']
    #allocation14 [shape = 's32[1]{0}', space=sflag, size = 0x4, scoped, tag = 'scoped memory for tpu_custom_call.1']
    #allocation15 [shape = 'u8[8192]{0}', space=vmem, size = 0x2000, scoped, tag = 'input window, operand 6, single buffered']
    #allocation16 [shape = 'u8[1536]{0}', space=vmem, size = 0x800, scoped, tag = 'input window, operand 8, single buffered']
    #allocation17 [shape = 's32[1]{0}', space=sflag, size = 0x4, scoped, tag = 'scoped memory for tpu_custom_call.1']
    #allocation18 [shape = 'u8[8192]{0}', space=vmem, size = 0x2000, scoped, tag = 'output window, operand 0']
    %18 = vsyncpa [#allocation11], 0
    %19 = vsyncpa [#allocation14], 0
    %20 = vsyncpa [#allocation17], 0
    %21 = vsyncpa [#allocation12], 0
    %s22 = scalar_lea.sflag [#allocation12], 1
    %23 = vsyncpa %s22, 0
    loop: start=0, step=1, limit=4
    $region2: #{tpu_custom_call.1} parent=1 // loop_pre_header
      _
    $region3: #{tpu_custom_call.1} parent=1 // loop_header
      %s25 = sphi 0, %s29
      %p26 = scmp.ge.s32.totalorder %s25, 4
      %s32 = sphi 0, %s44
      %s33 = sphi 0, %s40
      %s34 = sphi 0, %s32
      %s35 = sphi 0, %s33
      %s36 = sphi 0, %s34
      %s37 = sphi 0, %s35
      %s49 = sphi 0, %s51
      %s52 = sphi 0, %s49
      %s53 = sphi 0, %s52
      %s69 = sphi 0, %s53
      %s73 = sphi 0, %s73
      %s75 = sphi 0, %s73
      %s76 = sphi 0, %s75
      %s90 = sphi 0, %s76
      %s94 = sphi 0, %s94
      %s96 = sphi 0, %s94
      %s97 = sphi 0, %s96
      %s111 = sphi 0, %s97
      %s115 = sphi 0, %s115
      %s117 = sphi 0, %s115
      %s118 = sphi 0, %s117
      %s132 = sphi 0, %s118
      %s136 = sphi 0, %s136
      %s138 = sphi 0, %s136
      %s139 = sphi 0, %s138
      %s153 = sphi 0, %s139
      %s157 = sphi 0, %s157
      %s159 = sphi 0, %s157
      %s160 = sphi 0, %s159
      %s174 = sphi 0, %s160
      %s178 = sphi 0, %s178
      %s180 = sphi 0, %s178
      %s181 = sphi 0, %s180
      %s195 = sphi 0, %s181
      %s199 = sphi 0, %s199
      %s201 = sphi 0, %s199
      %s202 = sphi 0, %s201
      %s216 = sphi 0, %s202
      %s220 = sphi 0, %s220
      %s222 = sphi 0, %s220
      %s223 = sphi 0, %s222
      %s237 = sphi 0, %s223
      %s241 = sphi 0, %s241
      %s243 = sphi 0, %s241
      %s244 = sphi 0, %s243
      %s258 = sphi 0, %s244
      %s262 = sphi 0, %s262
      %s264 = sphi 0, %s262
      %s265 = sphi 0, %s264
      %s279 = sphi 0, %s265
      %s283 = sphi 0, %s283
      %s285 = sphi 0, %s283
      %s286 = sphi 0, %s285
      %s300 = sphi 0, %s286
      %s304 = sphi 0, %s304
      %s306 = sphi 0, %s304
      %s307 = sphi 0, %s306
      %s321 = sphi 0, %s307
      %s329 = sphi 0, %s331
      %s332 = sphi 0, %s329
      %s333 = sphi 0, %s332
      %s349 = sphi 0, %s333
    $region4: #{tpu_custom_call.1} parent=1 // loop_header_branch
      %28 = sbr.rel (%p26) target = $region8
    $region5: #{tpu_custom_call.1} parent=1 // loop_body
      %s30 = ssub.s32 %s25, 1
      %s31 = ssub.s32 %s25, 2
      %s38 = sadd.s32 1, %s33
      %p39 = scmp.ge.s32.totalorder %s38, 1
      %s40 = scalar_select %p39, 0, %s38
      %s41 = sadd.s32 1, %s32
      %s42 = scalar_select %p39, %s41, %s32
      %p43 = scmp.ge.s32.totalorder %s42, 2
      %s44 = scalar_select %p43, 0, %s42
      %s45 = ssub.s32 %s32, %s44
      %s46 = ssub.s32 %s33, %s40
      %s47 = sor.u32 %s45, %s46
      %p48 = scmp.eq.s32.totalorder %s47, 0
      %s50 = sadd.s32 %s49, 1
      %s51 = scalar_select %p48, %s49, %s50
      %p54 = pneg %p48
      %p55 = scmp.eq.s32.totalorder %s25, 1
      %p56 = por %p54, %p55
      %p57 = scmp.ne.s32.totalorder %s49, %s52
      %p58 = scmp.eq.s32.totalorder %s25, 0
      %p59 = por %p57, %p58
      %p60 = scmp.ne.s32.totalorder %s49, %s52
      %p61 = scmp.eq.s32.totalorder %s30, 1
      %p62 = por %p60, %p61
      %p63 = scmp.ne.s32.totalorder %s52, %s53
      %p64 = scmp.eq.s32.totalorder %s30, 0
      %p65 = por %p63, %p64
      %p66 = scmp.ne.s32.totalorder %s52, %s53
      %p67 = scmp.eq.s32.totalorder %s31, 1
      %p68 = por %p66, %p67
      %p70 = scmp.ne.s32.totalorder %s53, %s69
      %p71 = scmp.eq.s32.totalorder %s31, 0
      %p72 = por %p70, %p71
      %s74 = sadd.s32 %s73, 1
      %p77 = scmp.eq.s32.totalorder %s25, 1
      %p78 = scmp.ne.s32.totalorder %s73, %s75
      %p79 = scmp.eq.s32.totalorder %s25, 0
      %p80 = por %p78, %p79
      %p81 = scmp.ne.s32.totalorder %s73, %s75
      %p82 = scmp.eq.s32.totalorder %s30, 1
      %p83 = por %p81, %p82
      %p84 = scmp.ne.s32.totalorder %s75, %s76
      %p85 = scmp.eq.s32.totalorder %s30, 0
      %p86 = por %p84, %p85
      %p87 = scmp.ne.s32.totalorder %s75, %s76
      %p88 = scmp.eq.s32.totalorder %s31, 1
      %p89 = por %p87, %p88
      %p91 = scmp.ne.s32.totalorder %s76, %s90
      %p92 = scmp.eq.s32.totalorder %s31, 0
      %p93 = por %p91, %p92
      %s95 = sadd.s32 %s94, 1
      %p98 = scmp.eq.s32.totalorder %s25, 1
      %p99 = scmp.ne.s32.totalorder %s94, %s96
      %p100 = scmp.eq.s32.totalorder %s25, 0
      %p101 = por %p99, %p100
      %p102 = scmp.ne.s32.totalorder %s94, %s96
      %p103 = scmp.eq.s32.totalorder %s30, 1
      %p104 = por %p102, %p103
      %p105 = scmp.ne.s32.totalorder %s96, %s97
      %p106 = scmp.eq.s32.totalorder %s30, 0
      %p107 = por %p105, %p106
      %p108 = scmp.ne.s32.totalorder %s96, %s97
      %p109 = scmp.eq.s32.totalorder %s31, 1
      %p110 = por %p108, %p109
      %p112 = scmp.ne.s32.totalorder %s97, %s111
      %p113 = scmp.eq.s32.totalorder %s31, 0
      %p114 = por %p112, %p113
      %s116 = sadd.s32 %s115, 1
      %p119 = scmp.eq.s32.totalorder %s25, 1
      %p120 = scmp.ne.s32.totalorder %s115, %s117
      %p121 = scmp.eq.s32.totalorder %s25, 0
      %p122 = por %p120, %p121
      %p123 = scmp.ne.s32.totalorder %s115, %s117
      %p124 = scmp.eq.s32.totalorder %s30, 1
      %p125 = por %p123, %p124
      %p126 = scmp.ne.s32.totalorder %s117, %s118
      %p127 = scmp.eq.s32.totalorder %s30, 0
      %p128 = por %p126, %p127
      %p129 = scmp.ne.s32.totalorder %s117, %s118
      %p130 = scmp.eq.s32.totalorder %s31, 1
      %p131 = por %p129, %p130
      %p133 = scmp.ne.s32.totalorder %s118, %s132
      %p134 = scmp.eq.s32.totalorder %s31, 0
      %p135 = por %p133, %p134
      %s137 = sadd.s32 %s136, 1
      %p140 = scmp.eq.s32.totalorder %s25, 1
      %p141 = scmp.ne.s32.totalorder %s136, %s138
      %p142 = scmp.eq.s32.totalorder %s25, 0
      %p143 = por %p141, %p142
      %p144 = scmp.ne.s32.totalorder %s136, %s138
      %p145 = scmp.eq.s32.totalorder %s30, 1
      %p146 = por %p144, %p145
      %p147 = scmp.ne.s32.totalorder %s138, %s139
      %p148 = scmp.eq.s32.totalorder %s30, 0
      %p149 = por %p147, %p148
      %p150 = scmp.ne.s32.totalorder %s138, %s139
      %p151 = scmp.eq.s32.totalorder %s31, 1
      %p152 = por %p150, %p151
      %p154 = scmp.ne.s32.totalorder %s139, %s153
      %p155 = scmp.eq.s32.totalorder %s31, 0
      %p156 = por %p154, %p155
      %s158 = sadd.s32 %s157, 1
      %p161 = scmp.eq.s32.totalorder %s25, 1
      %p162 = scmp.ne.s32.totalorder %s157, %s159
      %p163 = scmp.eq.s32.totalorder %s25, 0
      %p164 = por %p162, %p163
      %p165 = scmp.ne.s32.totalorder %s157, %s159
      %p166 = scmp.eq.s32.totalorder %s30, 1
      %p167 = por %p165, %p166
      %p168 = scmp.ne.s32.totalorder %s159, %s160
      %p169 = scmp.eq.s32.totalorder %s30, 0
      %p170 = por %p168, %p169
      %p171 = scmp.ne.s32.totalorder %s159, %s160
      %p172 = scmp.eq.s32.totalorder %s31, 1
      %p173 = por %p171, %p172
      %p175 = scmp.ne.s32.totalorder %s160, %s174
      %p176 = scmp.eq.s32.totalorder %s31, 0
      %p177 = por %p175, %p176
      %s179 = sadd.s32 %s178, 1
      %p182 = scmp.eq.s32.totalorder %s25, 1
      %p183 = scmp.ne.s32.totalorder %s178, %s180
      %p184 = scmp.eq.s32.totalorder %s25, 0
      %p185 = por %p183, %p184
      %p186 = scmp.ne.s32.totalorder %s178, %s180
      %p187 = scmp.eq.s32.totalorder %s30, 1
      %p188 = por %p186, %p187
      %p189 = scmp.ne.s32.totalorder %s180, %s181
      %p190 = scmp.eq.s32.totalorder %s30, 0
      %p191 = por %p189, %p190
      %p192 = scmp.ne.s32.totalorder %s180, %s181
      %p193 = scmp.eq.s32.totalorder %s31, 1
      %p194 = por %p192, %p193
      %p196 = scmp.ne.s32.totalorder %s181, %s195
      %p197 = scmp.eq.s32.totalorder %s31, 0
      %p198 = por %p196, %p197
      %s200 = sadd.s32 %s199, 1
      %p203 = scmp.eq.s32.totalorder %s25, 1
      %p204 = scmp.ne.s32.totalorder %s199, %s201
      %p205 = scmp.eq.s32.totalorder %s25, 0
      %p206 = por %p204, %p205
      %p207 = scmp.ne.s32.totalorder %s199, %s201
      %p208 = scmp.eq.s32.totalorder %s30, 1
      %p209 = por %p207, %p208
      %p210 = scmp.ne.s32.totalorder %s201, %s202
      %p211 = scmp.eq.s32.totalorder %s30, 0
      %p212 = por %p210, %p211
      %p213 = scmp.ne.s32.totalorder %s201, %s202
      %p214 = scmp.eq.s32.totalorder %s31, 1
      %p215 = por %p213, %p214
      %p217 = scmp.ne.s32.totalorder %s202, %s216
      %p218 = scmp.eq.s32.totalorder %s31, 0
      %p219 = por %p217, %p218
      %s221 = sadd.s32 %s220, 1
      %p224 = scmp.eq.s32.totalorder %s25, 1
      %p225 = scmp.ne.s32.totalorder %s220, %s222
      %p226 = scmp.eq.s32.totalorder %s25, 0
      %p227 = por %p225, %p226
      %p228 = scmp.ne.s32.totalorder %s220, %s222
      %p229 = scmp.eq.s32.totalorder %s30, 1
      %p230 = por %p228, %p229
      %p231 = scmp.ne.s32.totalorder %s222, %s223
      %p232 = scmp.eq.s32.totalorder %s30, 0
      %p233 = por %p231, %p232
      %p234 = scmp.ne.s32.totalorder %s222, %s223
      %p235 = scmp.eq.s32.totalorder %s31, 1
      %p236 = por %p234, %p235
      %p238 = scmp.ne.s32.totalorder %s223, %s237
      %p239 = scmp.eq.s32.totalorder %s31, 0
      %p240 = por %p238, %p239
      %s242 = sadd.s32 %s241, 1
      %p245 = scmp.eq.s32.totalorder %s25, 1
      %p246 = scmp.ne.s32.totalorder %s241, %s243
      %p247 = scmp.eq.s32.totalorder %s25, 0
      %p248 = por %p246, %p247
      %p249 = scmp.ne.s32.totalorder %s241, %s243
      %p250 = scmp.eq.s32.totalorder %s30, 1
      %p251 = por %p249, %p250
      %p252 = scmp.ne.s32.totalorder %s243, %s244
      %p253 = scmp.eq.s32.totalorder %s30, 0
      %p254 = por %p252, %p253
      %p255 = scmp.ne.s32.totalorder %s243, %s244
      %p256 = scmp.eq.s32.totalorder %s31, 1
      %p257 = por %p255, %p256
      %p259 = scmp.ne.s32.totalorder %s244, %s258
      %p260 = scmp.eq.s32.totalorder %s31, 0
      %p261 = por %p259, %p260
      %s263 = sadd.s32 %s262, 1
      %p266 = scmp.eq.s32.totalorder %s25, 1
      %p267 = scmp.ne.s32.totalorder %s262, %s264
      %p268 = scmp.eq.s32.totalorder %s25, 0
      %p269 = por %p267, %p268
      %p270 = scmp.ne.s32.totalorder %s262, %s264
      %p271 = scmp.eq.s32.totalorder %s30, 1
      %p272 = por %p270, %p271
      %p273 = scmp.ne.s32.totalorder %s264, %s265
      %p274 = scmp.eq.s32.totalorder %s30, 0
      %p275 = por %p273, %p274
      %p276 = scmp.ne.s32.totalorder %s264, %s265
      %p277 = scmp.eq.s32.totalorder %s31, 1
      %p278 = por %p276, %p277
      %p280 = scmp.ne.s32.totalorder %s265, %s279
      %p281 = scmp.eq.s32.totalorder %s31, 0
      %p282 = por %p280, %p281
      %s284 = sadd.s32 %s283, 1
      %p287 = scmp.eq.s32.totalorder %s25, 1
      %p288 = scmp.ne.s32.totalorder %s283, %s285
      %p289 = scmp.eq.s32.totalorder %s25, 0
      %p290 = por %p288, %p289
      %p291 = scmp.ne.s32.totalorder %s283, %s285
      %p292 = scmp.eq.s32.totalorder %s30, 1
      %p293 = por %p291, %p292
      %p294 = scmp.ne.s32.totalorder %s285, %s286
      %p295 = scmp.eq.s32.totalorder %s30, 0
      %p296 = por %p294, %p295
      %p297 = scmp.ne.s32.totalorder %s285, %s286
      %p298 = scmp.eq.s32.totalorder %s31, 1
      %p299 = por %p297, %p298
      %p301 = scmp.ne.s32.totalorder %s286, %s300
      %p302 = scmp.eq.s32.totalorder %s31, 0
      %p303 = por %p301, %p302
      %s305 = sadd.s32 %s304, 1
      %p308 = scmp.eq.s32.totalorder %s25, 1
      %p309 = scmp.ne.s32.totalorder %s304, %s306
      %p310 = scmp.eq.s32.totalorder %s25, 0
      %p311 = por %p309, %p310
      %p312 = scmp.ne.s32.totalorder %s304, %s306
      %p313 = scmp.eq.s32.totalorder %s30, 1
      %p314 = por %p312, %p313
      %p315 = scmp.ne.s32.totalorder %s306, %s307
      %p316 = scmp.eq.s32.totalorder %s30, 0
      %p317 = por %p315, %p316
      %p318 = scmp.ne.s32.totalorder %s306, %s307
      %p319 = scmp.eq.s32.totalorder %s31, 1
      %p320 = por %p318, %p319
      %p322 = scmp.ne.s32.totalorder %s307, %s321
      %p323 = scmp.eq.s32.totalorder %s31, 0
      %p324 = por %p322, %p323
      %s325 = ssub.s32 %s32, %s44
      %s326 = ssub.s32 %s33, %s40
      %s327 = sor.u32 %s325, %s326
      %p328 = scmp.eq.s32.totalorder %s327, 0
      %s330 = sadd.s32 %s329, 1
      %s331 = scalar_select %p328, %s329, %s330
      %p334 = pneg %p328
      %p335 = scmp.eq.s32.totalorder %s25, 1
      %p336 = por %p334, %p335
      %p337 = scmp.ne.s32.totalorder %s329, %s332
      %p338 = scmp.eq.s32.totalorder %s25, 0
      %p339 = por %p337, %p338
      %p340 = scmp.ne.s32.totalorder %s329, %s332
      %p341 = scmp.eq.s32.totalorder %s30, 1
      %p342 = por %p340, %p341
      %p343 = scmp.ne.s32.totalorder %s332, %s333
      %p344 = scmp.eq.s32.totalorder %s30, 0
      %p345 = por %p343, %p344
      %p346 = scmp.ne.s32.totalorder %s332, %s333
      %p347 = scmp.eq.s32.totalorder %s31, 1
      %p348 = por %p346, %p347
      %p350 = scmp.ne.s32.totalorder %s333, %s349
      %p351 = scmp.eq.s32.totalorder %s31, 0
      %p352 = por %p350, %p351
      %p353 = scmp.le.s32.totalorder 1, %s25
      %p354 = scmp.lt.s32.totalorder %s25, 3
      %p355 = pnand %p353, %p354
      %p356 = pneg %p355
      // Predicated region
      $region9: #{tpu_custom_call.1} parent=5 // pred_check
        _
      $region10: #{tpu_custom_call.1} parent=5 // pred_check_branch
        %358 = sbr.rel (%p355) target = $region12
      $region11: #{tpu_custom_call.1} parent=5 // pred_region
        %s359 = ssub.s32 %s25, 1
        // Predicated region
        $region13: #{tpu_custom_call.1} parent=11 // pred_check
          %p360 = pneg %p86
        $region14: #{tpu_custom_call.1} parent=11 // pred_check_branch
          %362 = sbr.rel (%p360) target = $region16
        $region15: #{tpu_custom_call.1} parent=11 // pred_region
          _
        $region16: #{tpu_custom_call.1} parent=11 // pred_fallthru
          _
        // Predicated region
        $region17: #{tpu_custom_call.1} parent=11 // pred_check
          %p363 = pneg %p107
        $region18: #{tpu_custom_call.1} parent=11 // pred_check_branch
          %365 = sbr.rel (%p363) target = $region20
        $region19: #{tpu_custom_call.1} parent=11 // pred_region
          _
        $region20: #{tpu_custom_call.1} parent=11 // pred_fallthru
          _
        // Predicated region
        $region21: #{tpu_custom_call.1} parent=11 // pred_check
          %p366 = pneg %p128
        $region22: #{tpu_custom_call.1} parent=11 // pred_check_branch
          %368 = sbr.rel (%p366) target = $region24
        $region23: #{tpu_custom_call.1} parent=11 // pred_region
          _
        $region24: #{tpu_custom_call.1} parent=11 // pred_fallthru
          _
        // Predicated region
        $region25: #{tpu_custom_call.1} parent=11 // pred_check
          %p369 = pneg %p149
        $region26: #{tpu_custom_call.1} parent=11 // pred_check_branch
          %371 = sbr.rel (%p369) target = $region28
        $region27: #{tpu_custom_call.1} parent=11 // pred_region
          %s373 = ssub.s32 64, 64
          %374 = vsyncadd [#allocation11], %s373
          %s376 = sshll.u32 [#allocation10], 4
          %s377 = int_to_ptr.vmem [resolvable:$true] %s376
          %379 = dma.hbm_to_vmem [thread:$0]  %s4, 64, %s377, [#allocation11]
        $region28: #{tpu_custom_call.1} parent=11 // pred_fallthru
          _
        // Predicated region
        $region29: #{tpu_custom_call.1} parent=11 // pred_check
          %p380 = pneg %p170
        $region30: #{tpu_custom_call.1} parent=11 // pred_check_branch
          %382 = sbr.rel (%p380) target = $region32
        $region31: #{tpu_custom_call.1} parent=11 // pred_region
          %s384 = ssub.s32 16, 16
          %385 = vsyncadd [#allocation14], %s384
          %s387 = sshll.u32 [#allocation13], 4
          %s388 = int_to_ptr.vmem [resolvable:$true] %s387
          %390 = dma.hbm_to_vmem [thread:$0]  %s5, 16, %s388, [#allocation14]
        $region32: #{tpu_custom_call.1} parent=11 // pred_fallthru
          _
        // Predicated region
        $region33: #{tpu_custom_call.1} parent=11 // pred_check
          %p391 = pneg %p191
        $region34: #{tpu_custom_call.1} parent=11 // pred_check_branch
          %393 = sbr.rel (%p391) target = $region36
        $region35: #{tpu_custom_call.1} parent=11 // pred_region
          %s395 = ssub.s32 256, 256
          %396 = vsyncadd [#allocation14], %s395
          %s397 = sshll.u32 [#allocation15], 4
          %s398 = int_to_ptr.vmem [resolvable:$true] %s397
          %403 = dma.hbm_to_vmem [thread:$0]  %s6, 256, %s398, [#allocation14], 128, 128, 8
        $region36: #{tpu_custom_call.1} parent=11 // pred_fallthru
          _
        // Predicated region
        $region37: #{tpu_custom_call.1} parent=11 // pred_check
          %p404 = pneg %p212
        $region38: #{tpu_custom_call.1} parent=11 // pred_check_branch
          %406 = sbr.rel (%p404) target = $region40
        $region39: #{tpu_custom_call.1} parent=11 // pred_region
          _
        $region40: #{tpu_custom_call.1} parent=11 // pred_fallthru
          _
        // Predicated region
        $region41: #{tpu_custom_call.1} parent=11 // pred_check
          %p407 = pneg %p233
        $region42: #{tpu_custom_call.1} parent=11 // pred_check_branch
          %409 = sbr.rel (%p407) target = $region44
        $region43: #{tpu_custom_call.1} parent=11 // pred_region
          %s411 = ssub.s32 48, 48
          %412 = vsyncadd [#allocation17], %s411
          %s414 = sshll.u32 [#allocation16], 4
          %s415 = int_to_ptr.vmem [resolvable:$true] %s414
          %417 = dma.hbm_to_vmem [thread:$0]  %s8, 48, %s415, [#allocation17]
        $region44: #{tpu_custom_call.1} parent=11 // pred_fallthru
          _
        // Predicated region
        $region45: #{tpu_custom_call.1} parent=11 // pred_check
          %p418 = pneg %p254
        $region46: #{tpu_custom_call.1} parent=11 // pred_check_branch
          %420 = sbr.rel (%p418) target = $region48
        $region47: #{tpu_custom_call.1} parent=11 // pred_region
          _
        $region48: #{tpu_custom_call.1} parent=11 // pred_fallthru
          _
        // Predicated region
        $region49: #{tpu_custom_call.1} parent=11 // pred_check
          %p421 = pneg %p275
        $region50: #{tpu_custom_call.1} parent=11 // pred_check_branch
          %423 = sbr.rel (%p421) target = $region52
        $region51: #{tpu_custom_call.1} parent=11 // pred_region
          _
        $region52: #{tpu_custom_call.1} parent=11 // pred_fallthru
          _
        // Predicated region
        $region53: #{tpu_custom_call.1} parent=11 // pred_check
          %p424 = pneg %p296
        $region54: #{tpu_custom_call.1} parent=11 // pred_check_branch
          %426 = sbr.rel (%p424) target = $region56
        $region55: #{tpu_custom_call.1} parent=11 // pred_region
          _
        $region56: #{tpu_custom_call.1} parent=11 // pred_fallthru
          _
        // Predicated region
        $region57: #{tpu_custom_call.1} parent=11 // pred_check
          %p427 = pneg %p317
        $region58: #{tpu_custom_call.1} parent=11 // pred_check_branch
          %429 = sbr.rel (%p427) target = $region60
        $region59: #{tpu_custom_call.1} parent=11 // pred_region
          _
        $region60: #{tpu_custom_call.1} parent=11 // pred_fallthru
          _
      $region12: #{tpu_custom_call.1} parent=5 // pred_fallthru
        _
      %p430 = scmp.lt.s32.totalorder %s25, 2
      // Predicated region
      $region61: #{tpu_custom_call.1} parent=5 // pred_check
        %p431 = pneg %p430
      $region62: #{tpu_custom_call.1} parent=5 // pred_check_branch
        %433 = sbr.rel (%p431) target = $region64
      $region63: #{tpu_custom_call.1} parent=5 // pred_region
        // Predicated region
        $region65: #{tpu_custom_call.1} parent=63 // pred_check
          %p434 = pneg %p59
        $region66: #{tpu_custom_call.1} parent=63 // pred_check_branch
          %436 = sbr.rel (%p434) target = $region68
        $region67: #{tpu_custom_call.1} parent=63 // pred_region
          %p437 = scmp.lt.s32.totalorder %s32, 1
          %s438 = scalar_select %p437, %s32, 1
          %p439 = scmp.lt.s32.totalorder %s33, 0
          %s440 = scalar_select %p439, %s33, 0
          %s441 = sadd.s32 %s440, %s438
          %s442 = smul.addr %s441, 8
          %s443 = scalar_lea.vmem %s0, %s442
        $region68: #{tpu_custom_call.1} parent=63 // pred_fallthru
          _
      $region64: #{tpu_custom_call.1} parent=5 // pred_fallthru
        _
      %p444 = scmp.le.s32.totalorder 1, %s25
      %p445 = scmp.lt.s32.totalorder %s25, 3
      %p446 = pnand %p444, %p445
      %p447 = pneg %p446
      // Predicated region
      $region69: #{tpu_custom_call.1} parent=5 // pred_check
        _
      $region70: #{tpu_custom_call.1} parent=5 // pred_check_branch
        %449 = sbr.rel (%p446) target = $region72
      $region71: #{tpu_custom_call.1} parent=5 // pred_region
        %s450 = ssub.s32 %s25, 1
        // Predicated region
        $region73: #{tpu_custom_call.1} parent=71 // pred_check
          %p451 = pneg %p149
        $region74: #{tpu_custom_call.1} parent=71 // pred_check_branch
          %453 = sbr.rel (%p451) target = $region76
        $region75: #{tpu_custom_call.1} parent=71 // pred_region
          %454 = dma.done [#allocation11], 64
        $region76: #{tpu_custom_call.1} parent=71 // pred_fallthru
          _
        // Predicated region
        $region77: #{tpu_custom_call.1} parent=71 // pred_check
          %p455 = pneg %p170
        $region78: #{tpu_custom_call.1} parent=71 // pred_check_branch
          %457 = sbr.rel (%p455) target = $region80
        $region79: #{tpu_custom_call.1} parent=71 // pred_region
          %458 = dma.done [#allocation14], 16
        $region80: #{tpu_custom_call.1} parent=71 // pred_fallthru
          _
        // Predicated region
        $region81: #{tpu_custom_call.1} parent=71 // pred_check
          %p459 = pneg %p191
        $region82: #{tpu_custom_call.1} parent=71 // pred_check_branch
          %461 = sbr.rel (%p459) target = $region84
        $region83: #{tpu_custom_call.1} parent=71 // pred_region
          %462 = dma.done [#allocation14], 256
        $region84: #{tpu_custom_call.1} parent=71 // pred_fallthru
          _
        // Predicated region
        $region85: #{tpu_custom_call.1} parent=71 // pred_check
          %p463 = pneg %p233
        $region86: #{tpu_custom_call.1} parent=71 // pred_check_branch
          %465 = sbr.rel (%p463) target = $region88
        $region87: #{tpu_custom_call.1} parent=71 // pred_region
          %466 = dma.done [#allocation17], 48
        $region88: #{tpu_custom_call.1} parent=71 // pred_fallthru
          _
        %p467 = scmp.lt.s32.totalorder %s34, 1
        %s468 = scalar_select %p467, %s34, 1
        %p469 = scmp.lt.s32.totalorder %s35, 0
        %s470 = scalar_select %p469, %s35, 0
        %s471 = sadd.s32 %s470, %s468
        %s472 = smul.addr %s471, 8
        %s473 = scalar_lea.vmem %s0, %s472
        %p474 = pneg %p65
        %p475 = pneg %p62
        %p476 = pneg %p86
        %p477 = pneg %p83
        %p478 = pneg %p107
        %p479 = pneg %p104
        %p480 = pneg %p128
        %p481 = pneg %p125
        %p482 = pneg %p149
        %p483 = pneg %p146
        %p484 = pneg %p170
        %p485 = pneg %p167
        %p486 = pneg %p191
        %p487 = pneg %p188
        %p488 = pneg %p212
        %p489 = pneg %p209
        %p490 = pneg %p233
        %p491 = pneg %p230
        %p492 = pneg %p254
        %p493 = pneg %p251
        %p494 = pneg %p275
        %p495 = pneg %p272
        %p496 = pneg %p296
        %p497 = pneg %p293
        %p498 = pneg %p317
        %p499 = pneg %p314
        %p500 = pneg %p345
        %p501 = pneg %p342
        %s502 = sand.u32 %s332, 1
        %s503 = scalar_lea.sflag [#allocation12], %s502
        %s504 = sand.u32 %s332, 1
        %s505 = smul.addr %s504, 8
        %s506 = scalar_lea.vmem [#allocation18], %s505
        %p507 = scmp.lt.s32.totalorder %s34, 1
        %s508 = scalar_select %p507, %s34, 1
        %p509 = scmp.lt.s32.totalorder %s35, 0
        %s510 = scalar_select %p509, %s35, 0
        %s511 = sadd.s32 %s510, %s508
        %s512 = smul.addr %s511, 8
        %s513 = scalar_lea.vmem %s0, %s512
        %p515 = scmp.eq.s32.totalorder %s35, 0
        // Predicated region
        $region89: #{tpu_custom_call.1} parent=71 // pred_check
          %p516 = pneg %p515
        $region90: #{tpu_custom_call.1} parent=71 // pred_check_branch
          %518 = sbr.rel (%p516) target = $region92
        $region91: #{tpu_custom_call.1} parent=71 // pred_region
          %vm519 = vcmask 523264
          %520 = vst.msk [vmem:[#allocation8] sm:$0xff] %vm519, 0.0
          %521 = vst.msk [vmem:[#allocation8 + $0x8] sm:$0xff] %vm519, 0.0
          %vm522 = vcmask 518144
          %523 = vst.msk [vmem:[#allocation9] sm:$0x7] %vm522, 0.0
        $region92: #{tpu_custom_call.1} parent=71 // pred_fallthru
          _
        %v524 = vld [vmem:[%s513] sm:$0xff]
        %v525 = vmul.f32 %v524, %v524
        %vm526 = vcmask 261120
        %v527 = vsel %vm526, %v525, 0.0
        %528 = vadd.xlane.f32.xlu0 %v527
        %v529 = vpop.xlane.xlu0 %528
        %v530 = vrcp.pop 32.0
        %v531 = vmul.f32 %v529, %v530
        %v532 = vadd.f32 %v531, 1e-06
        %v533 = vrsqrt.pop %v532
        %v534 = vmul.f32 %v524, %v533
        %v535 = vld [vmem:[%s1] sm:$0x1]
        %v537 = vlaneseq
        %v538 = vshrl.u32 %v537, 7
        %v539 = vsub.s32 0, %v538
        %v540 = vrot.slane %v535, %v539
        %v542 = vmul.f32 %v534, %v540
        %v543 = vpack.c.bf16 %v542, %v542
        %v544 = vld [vmem:[%s2] sm:$0xf]
        %v545 = vld [vmem:[%s2 + $0x4] sm:$0xf]
        %v546 = vld [vmem:[%s2 + $0x8] sm:$0xf]
        %v547 = vld [vmem:[%s2 + $0xc] sm:$0xf]
        %v548 = vld [vmem:[%s3] sm:$0x1]
        %v550 = vlaneseq
        %v551 = vshrl.u32 %v550, 7
        %v552 = vsub.s32 0, %v551
        %v553 = vrot.slane %v548, %v552
        %v559 = vunpack.c.l.b16 %v544
        %v560 = vunpack.c.l.b16 %v545
        %v561 = vunpack.c.l.b16 %v546
        %v562 = vunpack.c.l.b16 %v547
        %v563 = vpack.c.b16 %v560, %v559
        %v564 = vpack.c.b16 %v562, %v561
        %v568 = vsel %vm526, %v543, 0
        %570 = vmatprep.subr.bf16.mxu0 0
        %571 = vmatpush1.bf16.msra.mxu0 %v563
        %572 = vmatprep.subr.bf16.mxu0 0
        %573 = vmatpush1.bf16.msra.mxu0 %v564
        %574 = vmatprep.subr.bf16.mxu0 0
        %575 = vmatpush1.bf16.msra.mxu0 0
        %576 = vmatprep.subr.bf16.mxu0 0
        %577 = vmatpush1.bf16.msra.mxu0 0
        %578 = vmatprep.subr.bf16.mxu0 0
        %579 = vmatpush1.bf16.msra.mxu0 0
        %580 = vmatprep.subr.bf16.mxu0 0
        %581 = vmatpush1.bf16.msra.mxu0 0
        %582 = vmatprep.subr.bf16.mxu0 0
        %583 = vmatpush1.bf16.msra.mxu0 0
        %584 = vmatprep.subr.bf16.mxu0 0
        %585 = vmatpush1.bf16.msra.mxu0 0
        %586 = vmatprep.subr.bf16.mxu0 0
        %587 = vmatpush1.bf16.msra.mxu0 0
        %588 = vmatprep.subr.bf16.mxu0 0
        %589 = vmatpush1.bf16.msra.mxu0 0
        %590 = vmatprep.subr.bf16.mxu0 0
        %591 = vmatpush1.bf16.msra.mxu0 0
        %592 = vmatprep.subr.bf16.mxu0 0
        %593 = vmatpush1.bf16.msra.mxu0 0
        %594 = vmatprep.subr.bf16.mxu0 0
        %595 = vmatpush1.bf16.msra.mxu0 0
        %596 = vmatprep.subr.bf16.mxu0 0
        %597 = vmatpush1.bf16.msra.mxu0 0
        %598 = vmatprep.subr.bf16.mxu0 0
        %599 = vmatpush1.bf16.msra.mxu0 0
        %600 = vmatprep.subr.bf16.mxu0 0
        %601 = vmatpush1.bf16.msra.mxu0 0
        %602 = vmatprep.mubr.bf16.mxu0 0
        %603 = vmatmul.mubr.bf16.gmra.mrb[0].mxu0 %v568
        %v604 = vpop.f32.mrb[0].mxu0
        %v605 = vadd.f32 %v553, %v604
        %v606 = vpop.f32.mrb[0].mxu0
        %v607 = vpop.f32.mrb[0].mxu0
        %v608 = vpop.f32.mrb[0].mxu0
        %609 = vdwg.mxu0
        %611 = vrot.lane.b32.xlu0 %v605, 64
        %v612 = vpop.permute.xlu0 %611
        %vm614 = vcmask 523264
        %615 = vst.msk [vmem:[#allocation7] sm:$0xff] %vm614, %v612
        %v616 = vld [vmem:[#allocation9] sm:$0x7]
        %v617 = vrot.slane %v605, 5
        %vm619 = vcmask 1042432
        %v620 = vsel %vm619, %v616, %v617
        %v621 = vld [vmem:[#allocation13] sm:$0x1]
        %v622 = vld [vmem:[#allocation10] sm:$0x1]
        %v623 = vlaneseq
        %v624 = vshrl.u32 %v623, 7
        %v625 = vsub.s32 0, %v624
        %v626 = vrot.slane %v622, %v625
        %v627 = vmul.f32 %v626, %v620
        %v629 = vlaneseq
        %v630 = vshrl.u32 %v629, 7
        %v631 = vsub.s32 0, %v630
        %v632 = vrot.slane %v621, %v631
        %v634 = vadd.f32 %v632, %v627
        %v635 = vld [vmem:[#allocation10 + $0x1] sm:$0x1]
        %v636 = vlaneseq
        %v637 = vshrl.u32 %v636, 7
        %v638 = vsub.s32 0, %v637
        %v639 = vrot.slane %v635, %v638
        %v640 = vmul.f32 %v639, %v620
        %v641 = vmul.f32 %v639, %v617
        %vm644 = vcmask 1046528
        %v645 = vrot.slane %v640, 1
        %v646 = vrot.slane %v641, 1
        %v647 = vsel %vm644, %v645, %v646
        %v649 = vadd.f32 %v634, %v647
        %v650 = vld [vmem:[#allocation10 + $0x2] sm:$0x1]
        %v651 = vlaneseq
        %v652 = vshrl.u32 %v651, 7
        %v653 = vsub.s32 0, %v652
        %v654 = vrot.slane %v650, %v653
        %v655 = vmul.f32 %v654, %v620
        %v656 = vmul.f32 %v654, %v617
        %vm659 = vcmask 1045504
        %v660 = vrot.slane %v655, 2
        %v661 = vrot.slane %v656, 2
        %v662 = vsel %vm659, %v660, %v661
        %v664 = vadd.f32 %v649, %v662
        %v665 = vld [vmem:[#allocation10 + $0x3] sm:$0x1]
        %v666 = vlaneseq
        %v667 = vshrl.u32 %v666, 7
        %v668 = vsub.s32 0, %v667
        %v669 = vrot.slane %v665, %v668
        %v670 = vmul.f32 %v669, %v620
        %v671 = vmul.f32 %v669, %v617
        %vm674 = vcmask 1044480
        %v675 = vrot.slane %v670, 3
        %v676 = vrot.slane %v671, 3
        %v677 = vsel %vm674, %v675, %v676
        %v679 = vadd.f32 %v664, %v677
        %vm680 = vcmask 518144
        %681 = vst.msk [vmem:[#allocation9] sm:$0x7] %vm680, %v617
        %v682 = vsub.f32 0.0, %v679
        %v683 = vmul.f32 %v682, 1.442695
        %v684 = vpow.pop %v683
        %v685 = vadd.f32 %v684, 1.0
        %v686 = vrcp.pop %v685
        %v687 = vmul.f32 1.0, %v686
        %v688 = vmul.f32 %v679, %v687
        %v689 = vpack.c.bf16 %v688, %v688
        %v690 = vld [vmem:[%s7] sm:$0xff]
        %v691 = vld [vmem:[%s7 + $0x8] sm:$0xf]
        %v692 = vld [vmem:[%s7 + $0xc] sm:$0xff]
        %v693 = vld [vmem:[%s7 + $0x14] sm:$0xf]
        %v694 = vld [vmem:[%s7 + $0x18] sm:$0xff]
        %v695 = vld [vmem:[%s7 + $0x20] sm:$0xf]
        %v696 = vld [vmem:[%s7 + $0x24] sm:$0xff]
        %v697 = vld [vmem:[%s7 + $0x2c] sm:$0xf]
        %v698 = vld [vmem:[%s7 + $0x30] sm:$0xff]
        %v699 = vld [vmem:[%s7 + $0x38] sm:$0xf]
        %v700 = vld [vmem:[%s7 + $0x3c] sm:$0xff]
        %v701 = vld [vmem:[%s7 + $0x44] sm:$0xf]
        %v702 = vld [vmem:[%s7 + $0x48] sm:$0xff]
        %v703 = vld [vmem:[%s7 + $0x50] sm:$0xf]
        %v704 = vld [vmem:[%s7 + $0x54] sm:$0xff]
        %v705 = vld [vmem:[%s7 + $0x5c] sm:$0xf]
        %v706 = vld [vmem:[#allocation16] sm:$0x7]
        %v708 = vlaneseq
        %v709 = vshrl.u32 %v708, 7
        %v710 = vsub.s32 0, %v709
        %v711 = vrot.slane %v706, %v710
        %v712 = vlaneseq
        %v713 = vshrl.u32 %v712, 7
        %v714 = vsub.s32 1, %v713
        %v715 = vrot.slane %v706, %v714
        %v716 = vlaneseq
        %v717 = vshrl.u32 %v716, 7
        %v718 = vsub.s32 2, %v717
        %v719 = vrot.slane %v706, %v718
        %v739 = vunpack.c.l.b16 %v690
        %v740 = vunpack.c.h.b16 %v690
        %v741 = vunpack.c.l.b16 %v691
        %v742 = vunpack.c.l.b16 %v692
        %v743 = vunpack.c.h.b16 %v692
        %v744 = vunpack.c.l.b16 %v693
        %v745 = vunpack.c.l.b16 %v694
        %v746 = vunpack.c.h.b16 %v694
        %v747 = vunpack.c.l.b16 %v695
        %v748 = vunpack.c.l.b16 %v696
        %v749 = vunpack.c.h.b16 %v696
        %v750 = vunpack.c.l.b16 %v697
        %v751 = vunpack.c.l.b16 %v698
        %v752 = vunpack.c.h.b16 %v698
        %v753 = vunpack.c.l.b16 %v699
        %v754 = vunpack.c.l.b16 %v700
        %v755 = vunpack.c.h.b16 %v700
        %v756 = vunpack.c.l.b16 %v701
        %v757 = vunpack.c.l.b16 %v702
        %v758 = vunpack.c.h.b16 %v702
        %v759 = vunpack.c.l.b16 %v703
        %v760 = vunpack.c.l.b16 %v704
        %v761 = vunpack.c.h.b16 %v704
        %v762 = vunpack.c.l.b16 %v705
        %v763 = vpack.c.b16 %v742, %v739
        %v764 = vpack.c.b16 %v743, %v740
        %v765 = vpack.c.b16 %v744, %v741
        %v766 = vpack.c.b16 %v748, %v745
        %v767 = vpack.c.b16 %v749, %v746
        %v768 = vpack.c.b16 %v750, %v747
        %v769 = vpack.c.b16 %v754, %v751
        %v770 = vpack.c.b16 %v755, %v752
        %v771 = vpack.c.b16 %v756, %v753
        %v772 = vpack.c.b16 %v760, %v757
        %v773 = vpack.c.b16 %v761, %v758
        %v774 = vpack.c.b16 %v762, %v759
        %v788 = vsel %vm614, %v689, 0
        %790 = vmatprep.subr.bf16.mxu0 %v764
        %791 = vmatpush1.bf16.msra.mxu0 %v763
        %792 = vmatprep.subr.bf16.mxu0 %v767
        %793 = vmatpush1.bf16.msra.mxu0 %v766
        %794 = vmatprep.subr.bf16.mxu0 %v770
        %795 = vmatpush1.bf16.msra.mxu0 %v769
        %796 = vmatprep.subr.bf16.mxu0 %v773
        %797 = vmatpush1.bf16.msra.mxu0 %v772
        %798 = vmatprep.subr.bf16.mxu0 0
        %799 = vmatpush1.bf16.msra.mxu0 0
        %800 = vmatprep.subr.bf16.mxu0 0
        %801 = vmatpush1.bf16.msra.mxu0 0
        %802 = vmatprep.subr.bf16.mxu0 0
        %803 = vmatpush1.bf16.msra.mxu0 0
        %804 = vmatprep.subr.bf16.mxu0 0
        %805 = vmatpush1.bf16.msra.mxu0 0
        %806 = vmatprep.subr.bf16.mxu0 0
        %807 = vmatpush1.bf16.msra.mxu0 0
        %808 = vmatprep.subr.bf16.mxu0 0
        %809 = vmatpush1.bf16.msra.mxu0 0
        %810 = vmatprep.subr.bf16.mxu0 0
        %811 = vmatpush1.bf16.msra.mxu0 0
        %812 = vmatprep.subr.bf16.mxu0 0
        %813 = vmatpush1.bf16.msra.mxu0 0
        %814 = vmatprep.subr.bf16.mxu0 0
        %815 = vmatpush1.bf16.msra.mxu0 0
        %816 = vmatprep.subr.bf16.mxu0 0
        %817 = vmatpush1.bf16.msra.mxu0 0
        %818 = vmatprep.subr.bf16.mxu0 0
        %819 = vmatpush1.bf16.msra.mxu0 0
        %820 = vmatprep.subr.bf16.mxu0 0
        %821 = vmatpush1.bf16.msra.mxu0 0
        %822 = vmatprep.mubr.bf16.mxu0 0
        %823 = vmatmul.mubr.bf16.gmra.mrb[0].mxu0 %v788
        %v824 = vpop.f32.mrb[0].mxu0
        %v825 = vadd.f32 %v711, %v824
        %v826 = vpop.f32.mrb[0].mxu0
        %v827 = vadd.f32 %v715, %v826
        %v828 = vpop.f32.mrb[0].mxu0
        %v829 = vpop.f32.mrb[0].mxu0
        %830 = vdwg.mxu0
        %831 = vmatprep.subr.bf16.mxu0 0
        %832 = vmatpush1.bf16.msra.mxu0 %v765
        %833 = vmatprep.subr.bf16.mxu0 0
        %834 = vmatpush1.bf16.msra.mxu0 %v768
        %835 = vmatprep.subr.bf16.mxu0 0
        %836 = vmatpush1.bf16.msra.mxu0 %v771
        %837 = vmatprep.subr.bf16.mxu0 0
        %838 = vmatpush1.bf16.msra.mxu0 %v774
        %839 = vmatprep.subr.bf16.mxu0 0
        %840 = vmatpush1.bf16.msra.mxu0 0
        %841 = vmatprep.subr.bf16.mxu0 0
        %842 = vmatpush1.bf16.msra.mxu0 0
        %843 = vmatprep.subr.bf16.mxu0 0
        %844 = vmatpush1.bf16.msra.mxu0 0
        %845 = vmatprep.subr.bf16.mxu0 0
        %846 = vmatpush1.bf16.msra.mxu0 0
        %847 = vmatprep.subr.bf16.mxu0 0
        %848 = vmatpush1.bf16.msra.mxu0 0
        %849 = vmatprep.subr.bf16.mxu0 0
        %850 = vmatpush1.bf16.msra.mxu0 0
        %851 = vmatprep.subr.bf16.mxu0 0
        %852 = vmatpush1.bf16.msra.mxu0 0
        %853 = vmatprep.subr.bf16.mxu0 0
        %854 = vmatpush1.bf16.msra.mxu0 0
        %855 = vmatprep.subr.bf16.mxu0 0
        %856 = vmatpush1.bf16.msra.mxu0 0
        %857 = vmatprep.subr.bf16.mxu0 0
        %858 = vmatpush1.bf16.msra.mxu0 0
        %859 = vmatprep.subr.bf16.mxu0 0
        %860 = vmatpush1.bf16.msra.mxu0 0
        %861 = vmatprep.subr.bf16.mxu0 0
        %862 = vmatpush1.bf16.msra.mxu0 0
        %863 = vmatprep.mubr.bf16.mxu0 0
        %864 = vmatmul.mubr.bf16.gmra.mrb[0].mxu0 %v788
        %v865 = vpop.f32.mrb[0].mxu0
        %v866 = vadd.f32 %v719, %v865
        %v867 = vpop.f32.mrb[0].mxu0
        %v868 = vpop.f32.mrb[0].mxu0
        %v869 = vpop.f32.mrb[0].mxu0
        %870 = vdwg.mxu0
        %v871 = vlaneseq
        %v872 = vshrl.u32 %v871, 7
        %v873 = vsub.s32 0, %v872
        %v874 = vrot.slane %v827, %v873
        %876 = vbcast.lane.b32.xlu0 %v874, 256
        %v877 = vpop.permute.xlu0 %876
        %s879 = sor.u32 256, 8
        %880 = vbcast.lane.b32.xlu0 %v874, %s879
        %v881 = vpop.permute.xlu0 %880
        %v882 = vlaneseq
        %v883 = vshrl.u32 %v882, 7
        %v884 = vsub.s32 1, %v883
        %v885 = vrot.slane %v827, %v884
        %887 = vbcast.lane.b32.xlu0 %v885, 256
        %v888 = vpop.permute.xlu0 %887
        %s890 = sor.u32 256, 8
        %891 = vbcast.lane.b32.xlu0 %v885, %s890
        %v892 = vpop.permute.xlu0 %891
        %v893 = vlaneseq
        %v894 = vshrl.u32 %v893, 7
        %v895 = vsub.s32 2, %v894
        %v896 = vrot.slane %v827, %v895
        %898 = vbcast.lane.b32.xlu0 %v896, 256
        %v899 = vpop.permute.xlu0 %898
        %s901 = sor.u32 256, 8
        %902 = vbcast.lane.b32.xlu0 %v896, %s901
        %v903 = vpop.permute.xlu0 %902
        %v904 = vlaneseq
        %v905 = vshrl.u32 %v904, 7
        %v906 = vsub.s32 3, %v905
        %v907 = vrot.slane %v827, %v906
        %909 = vbcast.lane.b32.xlu0 %v907, 256
        %v910 = vpop.permute.xlu0 %909
        %s912 = sor.u32 256, 8
        %913 = vbcast.lane.b32.xlu0 %v907, %s912
        %v914 = vpop.permute.xlu0 %913
        %v915 = vlaneseq
        %v916 = vshrl.u32 %v915, 7
        %v917 = vsub.s32 4, %v916
        %v918 = vrot.slane %v827, %v917
        %920 = vbcast.lane.b32.xlu0 %v918, 256
        %v921 = vpop.permute.xlu0 %920
        %s923 = sor.u32 256, 8
        %924 = vbcast.lane.b32.xlu0 %v918, %s923
        %v925 = vpop.permute.xlu0 %924
        %v926 = vlaneseq
        %v927 = vshrl.u32 %v926, 7
        %v928 = vsub.s32 5, %v927
        %v929 = vrot.slane %v827, %v928
        %931 = vbcast.lane.b32.xlu0 %v929, 256
        %v932 = vpop.permute.xlu0 %931
        %s934 = sor.u32 256, 8
        %935 = vbcast.lane.b32.xlu0 %v929, %s934
        %v936 = vpop.permute.xlu0 %935
        %v937 = vlaneseq
        %v938 = vshrl.u32 %v937, 7
        %v939 = vsub.s32 6, %v938
        %v940 = vrot.slane %v827, %v939
        %942 = vbcast.lane.b32.xlu0 %v940, 256
        %v943 = vpop.permute.xlu0 %942
        %s945 = sor.u32 256, 8
        %946 = vbcast.lane.b32.xlu0 %v940, %s945
        %v947 = vpop.permute.xlu0 %946
        %v948 = vlaneseq
        %v949 = vshrl.u32 %v948, 7
        %v950 = vsub.s32 7, %v949
        %v951 = vrot.slane %v827, %v950
        %953 = vbcast.lane.b32.xlu0 %v951, 256
        %v954 = vpop.permute.xlu0 %953
        %s956 = sor.u32 256, 8
        %957 = vbcast.lane.b32.xlu0 %v951, %s956
        %v958 = vpop.permute.xlu0 %957
        %vm959 = vcmask 7168
        %960 = vst.msk [vmem:[#allocation4] sm:$0xff] %vm959, %v877
        %961 = vst.msk [vmem:[#allocation4 + $0x8] sm:$0xff] %vm959, %v881
        %962 = vst.msk [vmem:[#allocation4 + $0x10] sm:$0xff] %vm959, %v888
        %963 = vst.msk [vmem:[#allocation4 + $0x18] sm:$0xff] %vm959, %v892
        %964 = vst.msk [vmem:[#allocation4 + $0x20] sm:$0xff] %vm959, %v899
        %965 = vst.msk [vmem:[#allocation4 + $0x28] sm:$0xff] %vm959, %v903
        %966 = vst.msk [vmem:[#allocation4 + $0x30] sm:$0xff] %vm959, %v910
        %967 = vst.msk [vmem:[#allocation4 + $0x38] sm:$0xff] %vm959, %v914
        %968 = vst.msk [vmem:[#allocation4 + $0x40] sm:$0xff] %vm959, %v921
        %969 = vst.msk [vmem:[#allocation4 + $0x48] sm:$0xff] %vm959, %v925
        %970 = vst.msk [vmem:[#allocation4 + $0x50] sm:$0xff] %vm959, %v932
        %971 = vst.msk [vmem:[#allocation4 + $0x58] sm:$0xff] %vm959, %v936
        %972 = vst.msk [vmem:[#allocation4 + $0x60] sm:$0xff] %vm959, %v943
        %973 = vst.msk [vmem:[#allocation4 + $0x68] sm:$0xff] %vm959, %v947
        %974 = vst.msk [vmem:[#allocation4 + $0x70] sm:$0xff] %vm959, %v954
        %975 = vst.msk [vmem:[#allocation4 + $0x78] sm:$0xff] %vm959, %v958
        %v976 = vlaneseq
        %v977 = vshrl.u32 %v976, 7
        %v978 = vsub.s32 0, %v977
        %v979 = vrot.slane %v866, %v978
        %981 = vbcast.lane.b32.xlu0 %v979, 256
        %v982 = vpop.permute.xlu0 %981
        %s984 = sor.u32 256, 8
        %985 = vbcast.lane.b32.xlu0 %v979, %s984
        %v986 = vpop.permute.xlu0 %985
        %v987 = vlaneseq
        %v988 = vshrl.u32 %v987, 7
        %v989 = vsub.s32 1, %v988
        %v990 = vrot.slane %v866, %v989
        %992 = vbcast.lane.b32.xlu0 %v990, 256
        %v993 = vpop.permute.xlu0 %992
        %s995 = sor.u32 256, 8
        %996 = vbcast.lane.b32.xlu0 %v990, %s995
        %v997 = vpop.permute.xlu0 %996
        %v998 = vlaneseq
        %v999 = vshrl.u32 %v998, 7
        %v1000 = vsub.s32 2, %v999
        %v1001 = vrot.slane %v866, %v1000
        %1003 = vbcast.lane.b32.xlu0 %v1001, 256
        %v1004 = vpop.permute.xlu0 %1003
        %s1006 = sor.u32 256, 8
        %1007 = vbcast.lane.b32.xlu0 %v1001, %s1006
        %v1008 = vpop.permute.xlu0 %1007
        %v1009 = vlaneseq
        %v1010 = vshrl.u32 %v1009, 7
        %v1011 = vsub.s32 3, %v1010
        %v1012 = vrot.slane %v866, %v1011
        %1014 = vbcast.lane.b32.xlu0 %v1012, 256
        %v1015 = vpop.permute.xlu0 %1014
        %s1017 = sor.u32 256, 8
        %1018 = vbcast.lane.b32.xlu0 %v1012, %s1017
        %v1019 = vpop.permute.xlu0 %1018
        %v1020 = vlaneseq
        %v1021 = vshrl.u32 %v1020, 7
        %v1022 = vsub.s32 4, %v1021
        %v1023 = vrot.slane %v866, %v1022
        %1025 = vbcast.lane.b32.xlu0 %v1023, 256
        %v1026 = vpop.permute.xlu0 %1025
        %s1028 = sor.u32 256, 8
        %1029 = vbcast.lane.b32.xlu0 %v1023, %s1028
        %v1030 = vpop.permute.xlu0 %1029
        %v1031 = vlaneseq
        %v1032 = vshrl.u32 %v1031, 7
        %v1033 = vsub.s32 5, %v1032
        %v1034 = vrot.slane %v866, %v1033
        %1036 = vbcast.lane.b32.xlu0 %v1034, 256
        %v1037 = vpop.permute.xlu0 %1036
        %s1039 = sor.u32 256, 8
        %1040 = vbcast.lane.b32.xlu0 %v1034, %s1039
        %v1041 = vpop.permute.xlu0 %1040
        %v1042 = vlaneseq
        %v1043 = vshrl.u32 %v1042, 7
        %v1044 = vsub.s32 6, %v1043
        %v1045 = vrot.slane %v866, %v1044
        %1047 = vbcast.lane.b32.xlu0 %v1045, 256
        %v1048 = vpop.permute.xlu0 %1047
        %s1050 = sor.u32 256, 8
        %1051 = vbcast.lane.b32.xlu0 %v1045, %s1050
        %v1052 = vpop.permute.xlu0 %1051
        %v1053 = vlaneseq
        %v1054 = vshrl.u32 %v1053, 7
        %v1055 = vsub.s32 7, %v1054
        %v1056 = vrot.slane %v866, %v1055
        %1058 = vbcast.lane.b32.xlu0 %v1056, 256
        %v1059 = vpop.permute.xlu0 %1058
        %s1061 = sor.u32 256, 8
        %1062 = vbcast.lane.b32.xlu0 %v1056, %s1061
        %v1063 = vpop.permute.xlu0 %1062
        %1064 = vst.msk [vmem:[#allocation5] sm:$0xff] %vm959, %v982
        %1065 = vst.msk [vmem:[#allocation5 + $0x8] sm:$0xff] %vm959, %v986
        %1066 = vst.msk [vmem:[#allocation5 + $0x10] sm:$0xff] %vm959, %v993
        %1067 = vst.msk [vmem:[#allocation5 + $0x18] sm:$0xff] %vm959, %v997
        %1068 = vst.msk [vmem:[#allocation5 + $0x20] sm:$0xff] %vm959, %v1004
        %1069 = vst.msk [vmem:[#allocation5 + $0x28] sm:$0xff] %vm959, %v1008
        %1070 = vst.msk [vmem:[#allocation5 + $0x30] sm:$0xff] %vm959, %v1015
        %1071 = vst.msk [vmem:[#allocation5 + $0x38] sm:$0xff] %vm959, %v1019
        %1072 = vst.msk [vmem:[#allocation5 + $0x40] sm:$0xff] %vm959, %v1026
        %1073 = vst.msk [vmem:[#allocation5 + $0x48] sm:$0xff] %vm959, %v1030
        %1074 = vst.msk [vmem:[#allocation5 + $0x50] sm:$0xff] %vm959, %v1037
        %1075 = vst.msk [vmem:[#allocation5 + $0x58] sm:$0xff] %vm959, %v1041
        %1076 = vst.msk [vmem:[#allocation5 + $0x60] sm:$0xff] %vm959, %v1048
        %1077 = vst.msk [vmem:[#allocation5 + $0x68] sm:$0xff] %vm959, %v1052
        %1078 = vst.msk [vmem:[#allocation5 + $0x70] sm:$0xff] %vm959, %v1059
        %1079 = vst.msk [vmem:[#allocation5 + $0x78] sm:$0xff] %vm959, %v1063
        %v1080 = vpack.c.bf16 %v825, %v825
        %v1081 = vld [vmem:[%s9] sm:$0xf]
        %v1082 = vld [vmem:[%s9 + $0x4] sm:$0xf]
        %v1083 = vld [vmem:[%s9 + $0x8] sm:$0xf]
        %v1084 = vld [vmem:[%s9 + $0xc] sm:$0xf]
        %v1085 = vld [vmem:[%s9 + $0x10] sm:$0xf]
        %v1086 = vld [vmem:[%s9 + $0x14] sm:$0xf]
        %v1087 = vld [vmem:[%s9 + $0x18] sm:$0xf]
        %v1088 = vld [vmem:[%s9 + $0x1c] sm:$0xf]
        %v1089 = vld [vmem:[%s9 + $0x20] sm:$0xf]
        %v1090 = vld [vmem:[%s9 + $0x24] sm:$0xf]
        %v1091 = vld [vmem:[%s9 + $0x28] sm:$0xf]
        %v1092 = vld [vmem:[%s9 + $0x2c] sm:$0xf]
        %v1093 = vld [vmem:[%s9 + $0x30] sm:$0xf]
        %v1094 = vld [vmem:[%s9 + $0x34] sm:$0xf]
        %v1095 = vld [vmem:[%s9 + $0x38] sm:$0xf]
        %v1096 = vld [vmem:[%s9 + $0x3c] sm:$0xf]
        %v1097 = vld [vmem:[%s10] sm:$0x1]
        %v1099 = vlaneseq
        %v1100 = vshrl.u32 %v1099, 7
        %v1101 = vsub.s32 0, %v1100
        %v1102 = vrot.slane %v1097, %v1101
        %v1120 = vunpack.c.l.b16 %v1081
        %v1121 = vunpack.c.l.b16 %v1082
        %v1122 = vunpack.c.l.b16 %v1083
        %v1123 = vunpack.c.l.b16 %v1084
        %v1124 = vunpack.c.l.b16 %v1085
        %v1125 = vunpack.c.l.b16 %v1086
        %v1126 = vunpack.c.l.b16 %v1087
        %v1127 = vunpack.c.l.b16 %v1088
        %v1128 = vunpack.c.l.b16 %v1089
        %v1129 = vunpack.c.l.b16 %v1090
        %v1130 = vunpack.c.l.b16 %v1091
        %v1131 = vunpack.c.l.b16 %v1092
        %v1132 = vunpack.c.l.b16 %v1093
        %v1133 = vunpack.c.l.b16 %v1094
        %v1134 = vunpack.c.l.b16 %v1095
        %v1135 = vunpack.c.l.b16 %v1096
        %v1136 = vpack.c.b16 %v1121, %v1120
        %v1137 = vpack.c.b16 %v1123, %v1122
        %v1138 = vpack.c.b16 %v1125, %v1124
        %v1139 = vpack.c.b16 %v1127, %v1126
        %v1140 = vpack.c.b16 %v1129, %v1128
        %v1141 = vpack.c.b16 %v1131, %v1130
        %v1142 = vpack.c.b16 %v1133, %v1132
        %v1143 = vpack.c.b16 %v1135, %v1134
        %1152 = vmatprep.subr.bf16.mxu0 0
        %1153 = vmatpush1.bf16.msra.mxu0 %v1136
        %1154 = vmatprep.subr.bf16.mxu0 0
        %1155 = vmatpush1.bf16.msra.mxu0 %v1137
        %1156 = vmatprep.subr.bf16.mxu0 0
        %1157 = vmatpush1.bf16.msra.mxu0 %v1138
        %1158 = vmatprep.subr.bf16.mxu0 0
        %1159 = vmatpush1.bf16.msra.mxu0 %v1139
        %1160 = vmatprep.subr.bf16.mxu0 0
        %1161 = vmatpush1.bf16.msra.mxu0 %v1140
        %1162 = vmatprep.subr.bf16.mxu0 0
        %1163 = vmatpush1.bf16.msra.mxu0 %v1141
        %1164 = vmatprep.subr.bf16.mxu0 0
        %1165 = vmatpush1.bf16.msra.mxu0 %v1142
        %1166 = vmatprep.subr.bf16.mxu0 0
        %1167 = vmatpush1.bf16.msra.mxu0 %v1143
        %1168 = vmatprep.subr.bf16.mxu0 0
        %1169 = vmatpush1.bf16.msra.mxu0 0
        %1170 = vmatprep.subr.bf16.mxu0 0
        %1171 = vmatpush1.bf16.msra.mxu0 0
        %1172 = vmatprep.subr.bf16.mxu0 0
        %1173 = vmatpush1.bf16.msra.mxu0 0
        %1174 = vmatprep.subr.bf16.mxu0 0
        %1175 = vmatpush1.bf16.msra.mxu0 0
        %1176 = vmatprep.subr.bf16.mxu0 0
        %1177 = vmatpush1.bf16.msra.mxu0 0
        %1178 = vmatprep.subr.bf16.mxu0 0
        %1179 = vmatpush1.bf16.msra.mxu0 0
        %1180 = vmatprep.subr.bf16.mxu0 0
        %1181 = vmatpush1.bf16.msra.mxu0 0
        %1182 = vmatprep.subr.bf16.mxu0 0
        %1183 = vmatpush1.bf16.msra.mxu0 0
        %1184 = vmatprep.mubr.bf16.mxu0 0
        %1185 = vmatmul.mubr.bf16.gmra.mrb[0].mxu0 %v1080
        %v1186 = vpop.f32.mrb[0].mxu0
        %v1187 = vadd.f32 %v1102, %v1186
        %v1188 = vpop.f32.mrb[0].mxu0
        %v1189 = vpop.f32.mrb[0].mxu0
        %v1190 = vpop.f32.mrb[0].mxu0
        %1191 = vdwg.mxu0
        %v1192 = vmax.f32 %v1187, 0.0
        %v1193 = vand.u32 2147483647, %v1187
        %v1194 = vsub.f32 0.0, %v1193
        %v1195 = vmul.f32 %v1194, 1.442695
        %v1196 = vpow.pop %v1195
        %v1197 = vadd.f32 %v1196, 1.0
        %v1198 = vlog2.pop %v1197
        %v1199 = vmul.f32 %v1198, 0.6931472
        %v1200 = vadd.f32 %v1192, %v1199
        %1201 = vst.msk [vmem:[#allocation2] sm:$0xff] %vm614, %v1200
        %v1202 = vmul.f32 %v1200, %v688
        %1203 = vst.msk [vmem:[#allocation3] sm:$0xff] %vm614, %v1202
        %v1204 = vld [vmem:[#allocation15] sm:$0xff]
        %v1205 = vld [vmem:[#allocation15 + $0x8] sm:$0xff]
        %v1206 = vld [vmem:[#allocation8] sm:$0xff]
        %v1207 = vld [vmem:[#allocation8 + $0x8] sm:$0xff]
        %v1208 = vld [vmem:[#allocation2] sm:$0x1]
        %v1209 = vld [vmem:[#allocation3] sm:$0x1]
        %v1210 = vlaneseq
        %v1211 = vshrl.u32 %v1210, 7
        %v1212 = vsub.s32 0, %v1211
        %v1213 = vrot.slane %v1208, %v1212
        %v1214 = vmul.f32 %v1213, %v1204
        %v1215 = vmul.f32 %v1213, %v1205
        %v1216 = vmul.f32 %v1214, 1.442695
        %v1217 = vpow.pop %v1216
        %v1218 = vmul.f32 %v1215, 1.442695
        %v1219 = vpow.pop %v1218
        %v1220 = vmul.f32 %v1217, %v1206
        %v1221 = vmul.f32 %v1219, %v1207
        %s1222 = smul.u32 0, 16
        %s1223 = scalar_lea.vmem [#allocation4], %s1222
        %v1224 = vld [vmem:[%s1223] sm:$0xff]
        %v1225 = vld [vmem:[%s1223 + $0x8] sm:$0xff]
        %v1226 = vlaneseq
        %v1227 = vshrl.u32 %v1226, 7
        %v1228 = vsub.s32 0, %v1227
        %v1229 = vrot.slane %v1209, %v1228
        %1231 = vset.pattern.permute.xlu0 0
        %1232 = vperm.xlu0 %1231, %v1224
        %v1233 = vpop.permute.xlu0 %1232
        %1236 = vset.pattern.permute.xlu0 0
        %1237 = vperm.xlu0 %1236, %v1225
        %v1238 = vpop.permute.xlu0 %1237
        %v1240 = vmul.f32 %v1229, %v1233
        %v1241 = vmul.f32 %v1229, %v1238
        %v1242 = vadd.f32 %v1220, %v1240
        %v1243 = vadd.f32 %v1221, %v1241
        %s1244 = scalar_lea.vmem [#allocation5], %s1222
        %v1245 = vld [vmem:[%s1244] sm:$0xff]
        %v1246 = vld [vmem:[%s1244 + $0x8] sm:$0xff]
        %1248 = vset.pattern.permute.xlu0 0
        %1249 = vperm.xlu0 %1248, %v1245
        %v1250 = vpop.permute.xlu0 %1249
        %1253 = vset.pattern.permute.xlu0 0
        %1254 = vperm.xlu0 %1253, %v1246
        %v1255 = vpop.permute.xlu0 %1254
        %v1257 = vmul.f32 %v1242, %v1250
        %v1258 = vmul.f32 %v1243, %v1255
        %v1259 = vsel %vm614, %v1257, 0.0
        %v1260 = vsel %vm614, %v1258, 0.0
        %v1261 = vadd.f32 %v1259, %v1260
        %v1262 = vrot.slane %v1261, 4
        %v1263 = vadd.f32 %v1261, %v1262
        %v1264 = vrot.slane %v1263, 2
        %v1265 = vadd.f32 %v1263, %v1264
        %v1266 = vrot.slane %v1265, 1
        %v1267 = vadd.f32 %v1265, %v1266
        %s1268 = sadd.s32 0, 1
        %s1269 = scalar_lea.vmem [#allocation2], %s1268
        %v1270 = vld [vmem:[%s1269] sm:$0x1]
        %s1271 = scalar_lea.vmem [#allocation3], %s1268
        %v1272 = vld [vmem:[%s1271] sm:$0x1]
        %v1273 = vlaneseq
        %v1274 = vshrl.u32 %v1273, 7
        %v1275 = vsub.s32 0, %v1274
        %v1276 = vrot.slane %v1270, %v1275
        %v1277 = vmul.f32 %v1276, %v1204
        %v1278 = vmul.f32 %v1276, %v1205
        %v1279 = vmul.f32 %v1277, 1.442695
        %v1280 = vpow.pop %v1279
        %v1281 = vmul.f32 %v1278, 1.442695
        %v1282 = vpow.pop %v1281
        %v1283 = vmul.f32 %v1280, %v1242
        %v1284 = vmul.f32 %v1282, %v1243
        %s1285 = smul.u32 %s1268, 16
        %s1286 = scalar_lea.vmem [#allocation4], %s1285
        %v1287 = vld [vmem:[%s1286] sm:$0xff]
        %v1288 = vld [vmem:[%s1286 + $0x8] sm:$0xff]
        %v1289 = vlaneseq
        %v1290 = vshrl.u32 %v1289, 7
        %v1291 = vsub.s32 0, %v1290
        %v1292 = vrot.slane %v1272, %v1291
        %1294 = vset.pattern.permute.xlu0 0
        %1295 = vperm.xlu0 %1294, %v1287
        %v1296 = vpop.permute.xlu0 %1295
        %1299 = vset.pattern.permute.xlu0 0
        %1300 = vperm.xlu0 %1299, %v1288
        %v1301 = vpop.permute.xlu0 %1300
        %v1303 = vmul.f32 %v1292, %v1296
        %v1304 = vmul.f32 %v1292, %v1301
        %v1305 = vadd.f32 %v1283, %v1303
        %v1306 = vadd.f32 %v1284, %v1304
        %s1307 = scalar_lea.vmem [#allocation5], %s1285
        %v1308 = vld [vmem:[%s1307] sm:$0xff]
        %v1309 = vld [vmem:[%s1307 + $0x8] sm:$0xff]
        %1311 = vset.pattern.permute.xlu0 0
        %1312 = vperm.xlu0 %1311, %v1308
        %v1313 = vpop.permute.xlu0 %1312
        %1316 = vset.pattern.permute.xlu0 0
        %1317 = vperm.xlu0 %1316, %v1309
        %v1318 = vpop.permute.xlu0 %1317
        %v1320 = vmul.f32 %v1305, %v1313
        %v1321 = vmul.f32 %v1306, %v1318
        %v1322 = vsel %vm614, %v1320, 0.0
        %v1323 = vsel %vm614, %v1321, 0.0
        %v1324 = vadd.f32 %v1322, %v1323
        %v1325 = vrot.slane %v1324, 4
        %v1326 = vadd.f32 %v1324, %v1325
        %v1327 = vrot.slane %v1326, 2
        %v1328 = vadd.f32 %v1326, %v1327
        %v1329 = vrot.slane %v1328, 1
        %v1330 = vadd.f32 %v1328, %v1329
        %s1331 = sadd.s32 0, 2
        %s1332 = scalar_lea.vmem [#allocation2], %s1331
        %v1333 = vld [vmem:[%s1332] sm:$0x1]
        %s1334 = scalar_lea.vmem [#allocation3], %s1331
        %v1335 = vld [vmem:[%s1334] sm:$0x1]
        %v1336 = vlaneseq
        %v1337 = vshrl.u32 %v1336, 7
        %v1338 = vsub.s32 0, %v1337
        %v1339 = vrot.slane %v1333, %v1338
        %v1340 = vmul.f32 %v1339, %v1204
        %v1341 = vmul.f32 %v1339, %v1205
        %v1342 = vmul.f32 %v1340, 1.442695
        %v1343 = vpow.pop %v1342
        %v1344 = vmul.f32 %v1341, 1.442695
        %v1345 = vpow.pop %v1344
        %v1346 = vmul.f32 %v1343, %v1305
        %v1347 = vmul.f32 %v1345, %v1306
        %s1348 = smul.u32 %s1331, 16
        %s1349 = scalar_lea.vmem [#allocation4], %s1348
        %v1350 = vld [vmem:[%s1349] sm:$0xff]
        %v1351 = vld [vmem:[%s1349 + $0x8] sm:$0xff]
        %v1352 = vlaneseq
        %v1353 = vshrl.u32 %v1352, 7
        %v1354 = vsub.s32 0, %v1353
        %v1355 = vrot.slane %v1335, %v1354
        %1357 = vset.pattern.permute.xlu0 0
        %1358 = vperm.xlu0 %1357, %v1350
        %v1359 = vpop.permute.xlu0 %1358
        %1362 = vset.pattern.permute.xlu0 0
        %1363 = vperm.xlu0 %1362, %v1351
        %v1364 = vpop.permute.xlu0 %1363
        %v1366 = vmul.f32 %v1355, %v1359
        %v1367 = vmul.f32 %v1355, %v1364
        %v1368 = vadd.f32 %v1346, %v1366
        %v1369 = vadd.f32 %v1347, %v1367
        %s1370 = scalar_lea.vmem [#allocation5], %s1348
        %v1371 = vld [vmem:[%s1370] sm:$0xff]
        %v1372 = vld [vmem:[%s1370 + $0x8] sm:$0xff]
        %1374 = vset.pattern.permute.xlu0 0
        %1375 = vperm.xlu0 %1374, %v1371
        %v1376 = vpop.permute.xlu0 %1375
        %1379 = vset.pattern.permute.xlu0 0
        %1380 = vperm.xlu0 %1379, %v1372
        %v1381 = vpop.permute.xlu0 %1380
        %v1383 = vmul.f32 %v1368, %v1376
        %v1384 = vmul.f32 %v1369, %v1381
        %v1385 = vsel %vm614, %v1383, 0.0
        %v1386 = vsel %vm614, %v1384, 0.0
        %v1387 = vadd.f32 %v1385, %v1386
        %v1388 = vrot.slane %v1387, 4
        %v1389 = vadd.f32 %v1387, %v1388
        %v1390 = vrot.slane %v1389, 2
        %v1391 = vadd.f32 %v1389, %v1390
        %v1392 = vrot.slane %v1391, 1
        %v1393 = vadd.f32 %v1391, %v1392
        %s1394 = sadd.s32 0, 3
        %s1395 = scalar_lea.vmem [#allocation2], %s1394
        %v1396 = vld [vmem:[%s1395] sm:$0x1]
        %s1397 = scalar_lea.vmem [#allocation3], %s1394
        %v1398 = vld [vmem:[%s1397] sm:$0x1]
        %v1399 = vlaneseq
        %v1400 = vshrl.u32 %v1399, 7
        %v1401 = vsub.s32 0, %v1400
        %v1402 = vrot.slane %v1396, %v1401
        %v1403 = vmul.f32 %v1402, %v1204
        %v1404 = vmul.f32 %v1402, %v1205
        %v1405 = vmul.f32 %v1403, 1.442695
        %v1406 = vpow.pop %v1405
        %v1407 = vmul.f32 %v1404, 1.442695
        %v1408 = vpow.pop %v1407
        %v1409 = vmul.f32 %v1406, %v1368
        %v1410 = vmul.f32 %v1408, %v1369
        %s1411 = smul.u32 %s1394, 16
        %s1412 = scalar_lea.vmem [#allocation4], %s1411
        %v1413 = vld [vmem:[%s1412] sm:$0xff]
        %v1414 = vld [vmem:[%s1412 + $0x8] sm:$0xff]
        %v1415 = vlaneseq
        %v1416 = vshrl.u32 %v1415, 7
        %v1417 = vsub.s32 0, %v1416
        %v1418 = vrot.slane %v1398, %v1417
        %1420 = vset.pattern.permute.xlu0 0
        %1421 = vperm.xlu0 %1420, %v1413
        %v1422 = vpop.permute.xlu0 %1421
        %1425 = vset.pattern.permute.xlu0 0
        %1426 = vperm.xlu0 %1425, %v1414
        %v1427 = vpop.permute.xlu0 %1426
        %v1429 = vmul.f32 %v1418, %v1422
        %v1430 = vmul.f32 %v1418, %v1427
        %v1431 = vadd.f32 %v1409, %v1429
        %v1432 = vadd.f32 %v1410, %v1430
        %s1433 = scalar_lea.vmem [#allocation5], %s1411
        %v1434 = vld [vmem:[%s1433] sm:$0xff]
        %v1435 = vld [vmem:[%s1433 + $0x8] sm:$0xff]
        %1437 = vset.pattern.permute.xlu0 0
        %1438 = vperm.xlu0 %1437, %v1434
        %v1439 = vpop.permute.xlu0 %1438
        %1442 = vset.pattern.permute.xlu0 0
        %1443 = vperm.xlu0 %1442, %v1435
        %v1444 = vpop.permute.xlu0 %1443
        %v1446 = vmul.f32 %v1431, %v1439
        %v1447 = vmul.f32 %v1432, %v1444
        %v1448 = vsel %vm614, %v1446, 0.0
        %v1449 = vsel %vm614, %v1447, 0.0
        %v1450 = vadd.f32 %v1448, %v1449
        %v1451 = vrot.slane %v1450, 4
        %v1452 = vadd.f32 %v1450, %v1451
        %v1453 = vrot.slane %v1452, 2
        %v1454 = vadd.f32 %v1452, %v1453
        %v1455 = vrot.slane %v1454, 1
        %v1456 = vadd.f32 %v1454, %v1455
        %s1457 = sadd.s32 0, 4
        %s1458 = scalar_lea.vmem [#allocation2], %s1457
        %v1459 = vld [vmem:[%s1458] sm:$0x1]
        %s1460 = scalar_lea.vmem [#allocation3], %s1457
        %v1461 = vld [vmem:[%s1460] sm:$0x1]
        %v1462 = vlaneseq
        %v1463 = vshrl.u32 %v1462, 7
        %v1464 = vsub.s32 0, %v1463
        %v1465 = vrot.slane %v1459, %v1464
        %v1466 = vmul.f32 %v1465, %v1204
        %v1467 = vmul.f32 %v1465, %v1205
        %v1468 = vmul.f32 %v1466, 1.442695
        %v1469 = vpow.pop %v1468
        %v1470 = vmul.f32 %v1467, 1.442695
        %v1471 = vpow.pop %v1470
        %v1472 = vmul.f32 %v1469, %v1431
        %v1473 = vmul.f32 %v1471, %v1432
        %s1474 = smul.u32 %s1457, 16
        %s1475 = scalar_lea.vmem [#allocation4], %s1474
        %v1476 = vld [vmem:[%s1475] sm:$0xff]
        %v1477 = vld [vmem:[%s1475 + $0x8] sm:$0xff]
        %v1478 = vlaneseq
        %v1479 = vshrl.u32 %v1478, 7
        %v1480 = vsub.s32 0, %v1479
        %v1481 = vrot.slane %v1461, %v1480
        %1483 = vset.pattern.permute.xlu0 0
        %1484 = vperm.xlu0 %1483, %v1476
        %v1485 = vpop.permute.xlu0 %1484
        %1488 = vset.pattern.permute.xlu0 0
        %1489 = vperm.xlu0 %1488, %v1477
        %v1490 = vpop.permute.xlu0 %1489
        %v1492 = vmul.f32 %v1481, %v1485
        %v1493 = vmul.f32 %v1481, %v1490
        %v1494 = vadd.f32 %v1472, %v1492
        %v1495 = vadd.f32 %v1473, %v1493
        %s1496 = scalar_lea.vmem [#allocation5], %s1474
        %v1497 = vld [vmem:[%s1496] sm:$0xff]
        %v1498 = vld [vmem:[%s1496 + $0x8] sm:$0xff]
        %1500 = vset.pattern.permute.xlu0 0
        %1501 = vperm.xlu0 %1500, %v1497
        %v1502 = vpop.permute.xlu0 %1501
        %1505 = vset.pattern.permute.xlu0 0
        %1506 = vperm.xlu0 %1505, %v1498
        %v1507 = vpop.permute.xlu0 %1506
        %v1509 = vmul.f32 %v1494, %v1502
        %v1510 = vmul.f32 %v1495, %v1507
        %v1511 = vsel %vm614, %v1509, 0.0
        %v1512 = vsel %vm614, %v1510, 0.0
        %v1513 = vadd.f32 %v1511, %v1512
        %v1514 = vrot.slane %v1513, 4
        %v1515 = vadd.f32 %v1513, %v1514
        %v1516 = vrot.slane %v1515, 2
        %v1517 = vadd.f32 %v1515, %v1516
        %v1518 = vrot.slane %v1517, 1
        %v1519 = vadd.f32 %v1517, %v1518
        %s1520 = sadd.s32 0, 5
        %s1521 = scalar_lea.vmem [#allocation2], %s1520
        %v1522 = vld [vmem:[%s1521] sm:$0x1]
        %s1523 = scalar_lea.vmem [#allocation3], %s1520
        %v1524 = vld [vmem:[%s1523] sm:$0x1]
        %v1525 = vlaneseq
        %v1526 = vshrl.u32 %v1525, 7
        %v1527 = vsub.s32 0, %v1526
        %v1528 = vrot.slane %v1522, %v1527
        %v1529 = vmul.f32 %v1528, %v1204
        %v1530 = vmul.f32 %v1528, %v1205
        %v1531 = vmul.f32 %v1529, 1.442695
        %v1532 = vpow.pop %v1531
        %v1533 = vmul.f32 %v1530, 1.442695
        %v1534 = vpow.pop %v1533
        %v1535 = vmul.f32 %v1532, %v1494
        %v1536 = vmul.f32 %v1534, %v1495
        %s1537 = smul.u32 %s1520, 16
        %s1538 = scalar_lea.vmem [#allocation4], %s1537
        %v1539 = vld [vmem:[%s1538] sm:$0xff]
        %v1540 = vld [vmem:[%s1538 + $0x8] sm:$0xff]
        %v1541 = vlaneseq
        %v1542 = vshrl.u32 %v1541, 7
        %v1543 = vsub.s32 0, %v1542
        %v1544 = vrot.slane %v1524, %v1543
        %1546 = vset.pattern.permute.xlu0 0
        %1547 = vperm.xlu0 %1546, %v1539
        %v1548 = vpop.permute.xlu0 %1547
        %1551 = vset.pattern.permute.xlu0 0
        %1552 = vperm.xlu0 %1551, %v1540
        %v1553 = vpop.permute.xlu0 %1552
        %v1555 = vmul.f32 %v1544, %v1548
        %v1556 = vmul.f32 %v1544, %v1553
        %v1557 = vadd.f32 %v1535, %v1555
        %v1558 = vadd.f32 %v1536, %v1556
        %s1559 = scalar_lea.vmem [#allocation5], %s1537
        %v1560 = vld [vmem:[%s1559] sm:$0xff]
        %v1561 = vld [vmem:[%s1559 + $0x8] sm:$0xff]
        %1563 = vset.pattern.permute.xlu0 0
        %1564 = vperm.xlu0 %1563, %v1560
        %v1565 = vpop.permute.xlu0 %1564
        %1568 = vset.pattern.permute.xlu0 0
        %1569 = vperm.xlu0 %1568, %v1561
        %v1570 = vpop.permute.xlu0 %1569
        %v1572 = vmul.f32 %v1557, %v1565
        %v1573 = vmul.f32 %v1558, %v1570
        %v1574 = vsel %vm614, %v1572, 0.0
        %v1575 = vsel %vm614, %v1573, 0.0
        %v1576 = vadd.f32 %v1574, %v1575
        %v1577 = vrot.slane %v1576, 4
        %v1578 = vadd.f32 %v1576, %v1577
        %v1579 = vrot.slane %v1578, 2
        %v1580 = vadd.f32 %v1578, %v1579
        %v1581 = vrot.slane %v1580, 1
        %v1582 = vadd.f32 %v1580, %v1581
        %s1583 = sadd.s32 0, 6
        %s1584 = scalar_lea.vmem [#allocation2], %s1583
        %v1585 = vld [vmem:[%s1584] sm:$0x1]
        %s1586 = scalar_lea.vmem [#allocation3], %s1583
        %v1587 = vld [vmem:[%s1586] sm:$0x1]
        %v1588 = vlaneseq
        %v1589 = vshrl.u32 %v1588, 7
        %v1590 = vsub.s32 0, %v1589
        %v1591 = vrot.slane %v1585, %v1590
        %v1592 = vmul.f32 %v1591, %v1204
        %v1593 = vmul.f32 %v1591, %v1205
        %v1594 = vmul.f32 %v1592, 1.442695
        %v1595 = vpow.pop %v1594
        %v1596 = vmul.f32 %v1593, 1.442695
        %v1597 = vpow.pop %v1596
        %v1598 = vmul.f32 %v1595, %v1557
        %v1599 = vmul.f32 %v1597, %v1558
        %s1600 = smul.u32 %s1583, 16
        %s1601 = scalar_lea.vmem [#allocation4], %s1600
        %v1602 = vld [vmem:[%s1601] sm:$0xff]
        %v1603 = vld [vmem:[%s1601 + $0x8] sm:$0xff]
        %v1604 = vlaneseq
        %v1605 = vshrl.u32 %v1604, 7
        %v1606 = vsub.s32 0, %v1605
        %v1607 = vrot.slane %v1587, %v1606
        %1609 = vset.pattern.permute.xlu0 0
        %1610 = vperm.xlu0 %1609, %v1602
        %v1611 = vpop.permute.xlu0 %1610
        %1614 = vset.pattern.permute.xlu0 0
        %1615 = vperm.xlu0 %1614, %v1603
        %v1616 = vpop.permute.xlu0 %1615
        %v1618 = vmul.f32 %v1607, %v1611
        %v1619 = vmul.f32 %v1607, %v1616
        %v1620 = vadd.f32 %v1598, %v1618
        %v1621 = vadd.f32 %v1599, %v1619
        %s1622 = scalar_lea.vmem [#allocation5], %s1600
        %v1623 = vld [vmem:[%s1622] sm:$0xff]
        %v1624 = vld [vmem:[%s1622 + $0x8] sm:$0xff]
        %1626 = vset.pattern.permute.xlu0 0
        %1627 = vperm.xlu0 %1626, %v1623
        %v1628 = vpop.permute.xlu0 %1627
        %1631 = vset.pattern.permute.xlu0 0
        %1632 = vperm.xlu0 %1631, %v1624
        %v1633 = vpop.permute.xlu0 %1632
        %v1635 = vmul.f32 %v1620, %v1628
        %v1636 = vmul.f32 %v1621, %v1633
        %v1637 = vsel %vm614, %v1635, 0.0
        %v1638 = vsel %vm614, %v1636, 0.0
        %v1639 = vadd.f32 %v1637, %v1638
        %v1640 = vrot.slane %v1639, 4
        %v1641 = vadd.f32 %v1639, %v1640
        %v1642 = vrot.slane %v1641, 2
        %v1643 = vadd.f32 %v1641, %v1642
        %v1644 = vrot.slane %v1643, 1
        %v1645 = vadd.f32 %v1643, %v1644
        %s1646 = sadd.s32 0, 7
        %s1647 = scalar_lea.vmem [#allocation2], %s1646
        %v1648 = vld [vmem:[%s1647] sm:$0x1]
        %s1649 = scalar_lea.vmem [#allocation3], %s1646
        %v1650 = vld [vmem:[%s1649] sm:$0x1]
        %v1651 = vlaneseq
        %v1652 = vshrl.u32 %v1651, 7
        %v1653 = vsub.s32 0, %v1652
        %v1654 = vrot.slane %v1648, %v1653
        %v1655 = vmul.f32 %v1654, %v1204
        %v1656 = vmul.f32 %v1654, %v1205
        %v1657 = vmul.f32 %v1655, 1.442695
        %v1658 = vpow.pop %v1657
        %v1659 = vmul.f32 %v1656, 1.442695
        %v1660 = vpow.pop %v1659
        %v1661 = vmul.f32 %v1658, %v1620
        %v1662 = vmul.f32 %v1660, %v1621
        %s1663 = smul.u32 %s1646, 16
        %s1664 = scalar_lea.vmem [#allocation4], %s1663
        %v1665 = vld [vmem:[%s1664] sm:$0xff]
        %v1666 = vld [vmem:[%s1664 + $0x8] sm:$0xff]
        %v1667 = vlaneseq
        %v1668 = vshrl.u32 %v1667, 7
        %v1669 = vsub.s32 0, %v1668
        %v1670 = vrot.slane %v1650, %v1669
        %1672 = vset.pattern.permute.xlu0 0
        %1673 = vperm.xlu0 %1672, %v1665
        %v1674 = vpop.permute.xlu0 %1673
        %1677 = vset.pattern.permute.xlu0 0
        %1678 = vperm.xlu0 %1677, %v1666
        %v1679 = vpop.permute.xlu0 %1678
        %v1681 = vmul.f32 %v1670, %v1674
        %v1682 = vmul.f32 %v1670, %v1679
        %v1683 = vadd.f32 %v1661, %v1681
        %v1684 = vadd.f32 %v1662, %v1682
        %s1685 = scalar_lea.vmem [#allocation5], %s1663
        %v1686 = vld [vmem:[%s1685] sm:$0xff]
        %v1687 = vld [vmem:[%s1685 + $0x8] sm:$0xff]
        %1689 = vset.pattern.permute.xlu0 0
        %1690 = vperm.xlu0 %1689, %v1686
        %v1691 = vpop.permute.xlu0 %1690
        %1694 = vset.pattern.permute.xlu0 0
        %1695 = vperm.xlu0 %1694, %v1687
        %v1696 = vpop.permute.xlu0 %1695
        %v1698 = vmul.f32 %v1683, %v1691
        %v1699 = vmul.f32 %v1684, %v1696
        %v1700 = vsel %vm614, %v1698, 0.0
        %v1701 = vsel %vm614, %v1699, 0.0
        %v1702 = vadd.f32 %v1700, %v1701
        %v1703 = vrot.slane %v1702, 4
        %v1704 = vadd.f32 %v1702, %v1703
        %v1705 = vrot.slane %v1704, 2
        %v1706 = vadd.f32 %v1704, %v1705
        %v1707 = vrot.slane %v1706, 1
        %v1708 = vadd.f32 %v1706, %v1707
        %vm1709 = vcmask 1040384
        %v1710 = vsel %vm1709, %v1267, %v1330
        %vm1711 = vcmask 1041408
        %v1712 = vsel %vm1711, %v1710, %v1393
        %v1713 = vsel %vm619, %v1712, %v1456
        %vm1714 = vcmask 1043456
        %v1715 = vsel %vm1714, %v1713, %v1519
        %v1716 = vsel %vm674, %v1715, %v1582
        %v1717 = vsel %vm659, %v1716, %v1645
        %v1718 = vsel %vm644, %v1717, %v1708
        %1719 = vst.msk [vmem:[#allocation6] sm:$0xff] %vm614, %v1718
        %1720 = vst.msk [vmem:[#allocation8] sm:$0xff] %vm614, %v1683
        %1721 = vst.msk [vmem:[#allocation8 + $0x8] sm:$0xff] %vm614, %v1684
        %v1722 = vld [vmem:[#allocation7] sm:$0xff]
        %v1723 = vsub.f32 0.0, %v1722
        %v1724 = vmul.f32 %v1723, 1.442695
        %v1725 = vpow.pop %v1724
        %v1726 = vadd.f32 %v1725, 1.0
        %v1727 = vrcp.pop %v1726
        %v1728 = vmul.f32 1.0, %v1727
        %v1729 = vmul.f32 %v1722, %v1728
        %v1730 = vld [vmem:[#allocation6] sm:$0xff]
        %v1731 = vmul.f32 %v1729, %v1730
        %v1732 = vpack.c.bf16 %v1731, %v1731
        %v1733 = vld [vmem:[%s11] sm:$0xf]
        %v1734 = vld [vmem:[%s11 + $0x4] sm:$0xf]
        %v1735 = vld [vmem:[%s11 + $0x8] sm:$0xf]
        %v1736 = vld [vmem:[%s11 + $0xc] sm:$0xf]
        %v1737 = vld [vmem:[%s11 + $0x10] sm:$0xf]
        %v1738 = vld [vmem:[%s11 + $0x14] sm:$0xf]
        %v1739 = vld [vmem:[%s11 + $0x18] sm:$0xf]
        %v1740 = vld [vmem:[%s11 + $0x1c] sm:$0xf]
        %v1741 = vld [vmem:[%s12] sm:$0x1]
        %v1743 = vlaneseq
        %v1744 = vshrl.u32 %v1743, 7
        %v1745 = vsub.s32 0, %v1744
        %v1746 = vrot.slane %v1741, %v1745
        %v1756 = vunpack.c.l.b16 %v1733
        %v1757 = vunpack.c.l.b16 %v1734
        %v1758 = vunpack.c.l.b16 %v1735
        %v1759 = vunpack.c.l.b16 %v1736
        %v1760 = vunpack.c.l.b16 %v1737
        %v1761 = vunpack.c.l.b16 %v1738
        %v1762 = vunpack.c.l.b16 %v1739
        %v1763 = vunpack.c.l.b16 %v1740
        %v1764 = vpack.c.b16 %v1757, %v1756
        %v1765 = vpack.c.b16 %v1759, %v1758
        %v1766 = vpack.c.b16 %v1761, %v1760
        %v1767 = vpack.c.b16 %v1763, %v1762
        %v1773 = vsel %vm614, %v1732, 0
        %1775 = vmatprep.subr.bf16.mxu0 0
        %1776 = vmatpush1.bf16.msra.mxu0 %v1764
        %1777 = vmatprep.subr.bf16.mxu0 0
        %1778 = vmatpush1.bf16.msra.mxu0 %v1765
        %1779 = vmatprep.subr.bf16.mxu0 0
        %1780 = vmatpush1.bf16.msra.mxu0 %v1766
        %1781 = vmatprep.subr.bf16.mxu0 0
        %1782 = vmatpush1.bf16.msra.mxu0 %v1767
        %1783 = vmatprep.subr.bf16.mxu0 0
        %1784 = vmatpush1.bf16.msra.mxu0 0
        %1785 = vmatprep.subr.bf16.mxu0 0
        %1786 = vmatpush1.bf16.msra.mxu0 0
        %1787 = vmatprep.subr.bf16.mxu0 0
        %1788 = vmatpush1.bf16.msra.mxu0 0
        %1789 = vmatprep.subr.bf16.mxu0 0
        %1790 = vmatpush1.bf16.msra.mxu0 0
        %1791 = vmatprep.subr.bf16.mxu0 0
        %1792 = vmatpush1.bf16.msra.mxu0 0
        %1793 = vmatprep.subr.bf16.mxu0 0
        %1794 = vmatpush1.bf16.msra.mxu0 0
        %1795 = vmatprep.subr.bf16.mxu0 0
        %1796 = vmatpush1.bf16.msra.mxu0 0
        %1797 = vmatprep.subr.bf16.mxu0 0
        %1798 = vmatpush1.bf16.msra.mxu0 0
        %1799 = vmatprep.subr.bf16.mxu0 0
        %1800 = vmatpush1.bf16.msra.mxu0 0
        %1801 = vmatprep.subr.bf16.mxu0 0
        %1802 = vmatpush1.bf16.msra.mxu0 0
        %1803 = vmatprep.subr.bf16.mxu0 0
        %1804 = vmatpush1.bf16.msra.mxu0 0
        %1805 = vmatprep.subr.bf16.mxu0 0
        %1806 = vmatpush1.bf16.msra.mxu0 0
        %1807 = vmatprep.mubr.bf16.mxu0 0
        %1808 = vmatmul.mubr.bf16.gmra.mrb[0].mxu0 %v1773
        %v1809 = vpop.f32.mrb[0].mxu0
        %v1810 = vadd.f32 %v1746, %v1809
        %v1811 = vpop.f32.mrb[0].mxu0
        %v1812 = vpop.f32.mrb[0].mxu0
        %v1813 = vpop.f32.mrb[0].mxu0
        %1814 = vdwg.mxu0
        %v1815 = vadd.f32 %v1810, %v524
        %1816 = vst.msk [vmem:[%s506] sm:$0xff] %vm526, %v1815
        %s1817 = sand.u32 %s332, 1
        %s1818 = scalar_lea.sflag [#allocation12], %s1817
        %s1819 = sand.u32 %s332, 1
        %s1820 = smul.addr %s1819, 8
        %s1821 = scalar_lea.vmem [#allocation18], %s1820
        // Predicated region
        $region93: #{tpu_custom_call.1} parent=71 // pred_check
          %p1822 = pneg %p342
        $region94: #{tpu_custom_call.1} parent=71 // pred_check_branch
          %1824 = sbr.rel (%p1822) target = $region96
        $region95: #{tpu_custom_call.1} parent=71 // pred_region
          %s1826 = ssub.s32 128, 128
          %1827 = vsyncadd %s1818, %s1826
          %s1828 = sadd.s32 %s35, %s34
          %s1829 = smul.addr %s1828, 128
          %s1830 = scalar_lea.hbm %s13, %s1829
          %s1832 = sshll.u32 %s1821, 4
          %s1833 = int_to_ptr.vmem [resolvable:$true] %s1832
          %1835 = dma.vmem_to_hbm [thread:$0]  %s1833, 128, %s1830, %s1818
        $region96: #{tpu_custom_call.1} parent=71 // pred_fallthru
          _
      $region72: #{tpu_custom_call.1} parent=5 // pred_fallthru
        _
      %p1836 = scmp.le.s32.totalorder 2, %s25
      // Predicated region
      $region97: #{tpu_custom_call.1} parent=5 // pred_check
        %p1837 = pneg %p1836
      $region98: #{tpu_custom_call.1} parent=5 // pred_check_branch
        %1839 = sbr.rel (%p1837) target = $region100
      $region99: #{tpu_custom_call.1} parent=5 // pred_region
        %s1840 = ssub.s32 %s25, 2
        // Predicated region
        $region101: #{tpu_custom_call.1} parent=99 // pred_check
          %p1841 = pneg %p348
        $region102: #{tpu_custom_call.1} parent=99 // pred_check_branch
          %1843 = sbr.rel (%p1841) target = $region104
        $region103: #{tpu_custom_call.1} parent=99 // pred_region
          %s1844 = sand.u32 %s333, 1
          %s1845 = scalar_lea.sflag [#allocation12], %s1844
          %s1846 = sand.u32 %s333, 1
          %s1847 = smul.addr %s1846, 8
          %s1848 = scalar_lea.vmem [#allocation18], %s1847
          %1849 = dma.done %s1845, 128
        $region104: #{tpu_custom_call.1} parent=99 // pred_fallthru
          _
      $region100: #{tpu_custom_call.1} parent=5 // pred_fallthru
        _
    $region6: #{tpu_custom_call.1} parent=1 // loop_footer
      %s29 = sadd.s32 1, %s25
    $region7: #{tpu_custom_call.1} parent=1 // loop_footer_branch
      %24 = sbr.rel target = $region3
    $region8: #{tpu_custom_call.1} parent=1 // loop_exit
      _
    %1850 = vsyncpa [#allocation11], 1
    %s1851 = scalar_lea.sflag [#allocation11], 1
    %1852 = vsyncpa %s1851, 1
    %1853 = vsyncpa [#allocation14], 1
    %1854 = vsyncpa [#allocation17], 1
    %1855 = vsyncpa [#allocation12], 1
    %s1856 = scalar_lea.sflag [#allocation12], 1
    %1857 = vsyncpa %s1856, 1

// kernel: tpu_custom_call.1
$region0: #{tpu_custom_call.1}
  #allocation0 [shape = 'u32[]', space=smem, size = 0x4, offset = 0x4, fixed_abs, tag = 'smem constant byte address 0x4 - core index']
  #allocation1 [shape = 'u32[144,128]{1,0:T(1,128)}', space=vmem, size = 0x12000, scoped, tag = 'internal scratch']
  #allocation2 [shape = 'f32[8,64]{1,0:T(8,128)}', space=vmem, size = 0x1000, scoped, tag = 'scratch operand']
  #allocation3 [shape = 'f32[8,64]{1,0:T(8,128)}', space=vmem, size = 0x1000, scoped, tag = 'scratch operand']
  #allocation4 [shape = 'f32[8,16,1]{2,1,0:T(8,128)}', space=vmem, size = 0x10000, scoped, tag = 'scratch operand']
  #allocation5 [shape = 'f32[8,16,1]{2,1,0:T(8,128)}', space=vmem, size = 0x10000, scoped, tag = 'scratch operand']
  #allocation6 [shape = 'f32[8,64]{1,0:T(8,128)}', space=vmem, size = 0x1000, scoped, tag = 'scratch operand']
  #allocation7 [shape = 'f32[8,64]{1,0:T(8,128)}', space=vmem, size = 0x1000, scoped, tag = 'scratch operand']
  #allocation8 [shape = 'f32[16,64]{1,0:T(8,128)}', space=vmem, size = 0x2000, scoped, tag = 'scratch operand']
  #allocation9 [shape = 'f32[3,64]{1,0:T(4,128)}', space=vmem, size = 0x800, scoped, tag = 'scratch operand']
  %s0 = inlined_call_operand.vmem [shape: f32[2,8,32], index: 0, kind: input, shape index: {}]
  %s1 = inlined_call_operand.vmem [shape: f32[1,32], index: 1, kind: input, shape index: {}]
  %s2 = inlined_call_operand.vmem [shape: bf16[32,128], index: 2, kind: input, shape index: {}]
  %s3 = inlined_call_operand.vmem [shape: f32[1,128], index: 3, kind: input, shape index: {}]
  %s4 = inlined_call_operand.hbm [shape: f32[4,64], index: 4, kind: input, shape index: {}]
  %s5 = inlined_call_operand.hbm [shape: f32[1,64], index: 5, kind: input, shape index: {}]
  %s6 = inlined_call_operand.hbm [shape: f32[16,64], index: 6, kind: input, shape index: {}]
  %s7 = inlined_call_operand.vmem [shape: bf16[64,384], index: 7, kind: input, shape index: {}]
  %s8 = inlined_call_operand.hbm [shape: f32[1,384], index: 8, kind: input, shape index: {}]
  %s9 = inlined_call_operand.vmem [shape: bf16[128,64], index: 9, kind: input, shape index: {}]
  %s10 = inlined_call_operand.vmem [shape: f32[1,64], index: 10, kind: input, shape index: {}]
  %s11 = inlined_call_operand.vmem [shape: bf16[64,32], index: 11, kind: input, shape index: {}]
  %s12 = inlined_call_operand.vmem [shape: f32[1,32], index: 12, kind: input, shape index: {}]
  %s13 = inlined_call_operand.hbm [shape: f32[2,8,32], index: 13, kind: output, shape index: {}]
  %s14 = sld [smem:[#allocation0]]
  $region105: #{tpu_custom_call.1} parent=0
    _
  %s16 = ssub.s32 1, %s14
  %s17 = scalar_select 0, %s16, %s14
  $region1: #{tpu_custom_call.1} parent=0
    #allocation10 [shape = 'u8[2048]{0}', space=vmem, size = 0x800, scoped, tag = 'input window, operand 4, single buffered']
    #allocation11 [shape = 's32[2]{0}', space=sflag, size = 0x8, scoped, tag = 'scoped memory for tpu_custom_call.1']
    #allocation12 [shape = 's32[2]{0}', space=sflag, size = 0x8, scoped, tag = 'scoped memory for tpu_custom_call.1']
    #allocation13 [shape = 'u8[512]{0}', space=vmem, size = 0x400, scoped, tag = 'input window, operand 5, single buffered']
    #allocation14 [shape = 's32[1]{0}', space=sflag, size = 0x4, scoped, tag = 'scoped memory for tpu_custom_call.1']
    #allocation15 [shape = 'u8[8192]{0}', space=vmem, size = 0x2000, scoped, tag = 'input window, operand 6, single buffered']
    #allocation16 [shape = 'u8[1536]{0}', space=vmem, size = 0x800, scoped, tag = 'input window, operand 8, single buffered']
    #allocation17 [shape = 's32[1]{0}', space=sflag, size = 0x4, scoped, tag = 'scoped memory for tpu_custom_call.1']
    #allocation18 [shape = 'u8[8192]{0}', space=vmem, size = 0x2000, scoped, tag = 'output window, operand 0']
    %18 = vsyncpa [#allocation11], 0
    %19 = vsyncpa [#allocation14], 0
    %20 = vsyncpa [#allocation17], 0
    %21 = vsyncpa [#allocation12], 0
    %s22 = scalar_lea.sflag [#allocation12], 1
    %23 = vsyncpa %s22, 0
    loop: start=0, step=1, limit=4
    $region2: #{tpu_custom_call.1} parent=1 // loop_pre_header
      _
    $region3: #{tpu_custom_call.1} parent=1 // loop_header
      %s25 = sphi 0, %s29
      %p26 = scmp.ge.s32.totalorder %s25, 4
      %s32 = sphi 0, %s44
      %s33 = sphi 0, %s40
      %s34 = sphi 0, %s32
      %s35 = sphi 0, %s33
      %s36 = sphi 0, %s34
      %s37 = sphi 0, %s35
      %s49 = sphi 0, %s51
      %s52 = sphi 0, %s49
      %s53 = sphi 0, %s52
      %s69 = sphi 0, %s53
      %s73 = sphi 0, %s73
      %s75 = sphi 0, %s73
      %s76 = sphi 0, %s75
      %s90 = sphi 0, %s76
      %s94 = sphi 0, %s94
      %s96 = sphi 0, %s94
      %s97 = sphi 0, %s96
      %s111 = sphi 0, %s97
      %s115 = sphi 0, %s115
      %s117 = sphi 0, %s115
      %s118 = sphi 0, %s117
      %s132 = sphi 0, %s118
      %s136 = sphi 0, %s136
      %s138 = sphi 0, %s136
      %s139 = sphi 0, %s138
      %s153 = sphi 0, %s139
      %s157 = sphi 0, %s157
      %s159 = sphi 0, %s157
      %s160 = sphi 0, %s159
      %s174 = sphi 0, %s160
      %s178 = sphi 0, %s178
      %s180 = sphi 0, %s178
      %s181 = sphi 0, %s180
      %s195 = sphi 0, %s181
      %s199 = sphi 0, %s199
      %s201 = sphi 0, %s199
      %s202 = sphi 0, %s201
      %s216 = sphi 0, %s202
      %s220 = sphi 0, %s220
      %s222 = sphi 0, %s220
      %s223 = sphi 0, %s222
      %s237 = sphi 0, %s223
      %s241 = sphi 0, %s241
      %s243 = sphi 0, %s241
      %s244 = sphi 0, %s243
      %s258 = sphi 0, %s244
      %s262 = sphi 0, %s262
      %s264 = sphi 0, %s262
      %s265 = sphi 0, %s264
      %s279 = sphi 0, %s265
      %s283 = sphi 0, %s283
      %s285 = sphi 0, %s283
      %s286 = sphi 0, %s285
      %s300 = sphi 0, %s286
      %s304 = sphi 0, %s304
      %s306 = sphi 0, %s304
      %s307 = sphi 0, %s306
      %s321 = sphi 0, %s307
      %s329 = sphi 0, %s331
      %s332 = sphi 0, %s329
      %s333 = sphi 0, %s332
      %s349 = sphi 0, %s333
    $region4: #{tpu_custom_call.1} parent=1 // loop_header_branch
      %28 = sbr.rel (%p26) target = $region8
    $region5: #{tpu_custom_call.1} parent=1 // loop_body
      %s30 = ssub.s32 %s25, 1
      %s31 = ssub.s32 %s25, 2
      %s38 = sadd.s32 1, %s33
      %p39 = scmp.ge.s32.totalorder %s38, 1
      %s40 = scalar_select %p39, 0, %s38
      %s41 = sadd.s32 1, %s32
      %s42 = scalar_select %p39, %s41, %s32
      %p43 = scmp.ge.s32.totalorder %s42, 2
      %s44 = scalar_select %p43, 0, %s42
      %s45 = ssub.s32 %s32, %s44
      %s46 = ssub.s32 %s33, %s40
      %s47 = sor.u32 %s45, %s46
      %p48 = scmp.eq.s32.totalorder %s47, 0
      %s50 = sadd.s32 %s49, 1
      %s51 = scalar_select %p48, %s49, %s50
      %p54 = pneg %p48
      %p55 = scmp.eq.s32.totalorder %s25, 1
      %p56 = por %p54, %p55
      %p57 = scmp.ne.s32.totalorder %s49, %s52
      %p58 = scmp.eq.s32.totalorder %s25, 0
      %p59 = por %p57, %p58
      %p60 = scmp.ne.s32.totalorder %s49, %s52
      %p61 = scmp.eq.s32.totalorder %s30, 1
      %p62 = por %p60, %p61
      %p63 = scmp.ne.s32.totalorder %s52, %s53
      %p64 = scmp.eq.s32.totalorder %s30, 0
      %p65 = por %p63, %p64
      %p66 = scmp.ne.s32.totalorder %s52, %s53
      %p67 = scmp.eq.s32.totalorder %s31, 1
      %p68 = por %p66, %p67
      %p70 = scmp.ne.s32.totalorder %s53, %s69
      %p71 = scmp.eq.s32.totalorder %s31, 0
      %p72 = por %p70, %p71
      %s74 = sadd.s32 %s73, 1
      %p77 = scmp.eq.s32.totalorder %s25, 1
      %p78 = scmp.ne.s32.totalorder %s73, %s75
      %p79 = scmp.eq.s32.totalorder %s25, 0
      %p80 = por %p78, %p79
      %p81 = scmp.ne.s32.totalorder %s73, %s75
      %p82 = scmp.eq.s32.totalorder %s30, 1
      %p83 = por %p81, %p82
      %p84 = scmp.ne.s32.totalorder %s75, %s76
      %p85 = scmp.eq.s32.totalorder %s30, 0
      %p86 = por %p84, %p85
      %p87 = scmp.ne.s32.totalorder %s75, %s76
      %p88 = scmp.eq.s32.totalorder %s31, 1
      %p89 = por %p87, %p88
      %p91 = scmp.ne.s32.totalorder %s76, %s90
      %p92 = scmp.eq.s32.totalorder %s31, 0
      %p93 = por %p91, %p92
      %s95 = sadd.s32 %s94, 1
      %p98 = scmp.eq.s32.totalorder %s25, 1
      %p99 = scmp.ne.s32.totalorder %s94, %s96
      %p100 = scmp.eq.s32.totalorder %s25, 0
      %p101 = por %p99, %p100
      %p102 = scmp.ne.s32.totalorder %s94, %s96
      %p103 = scmp.eq.s32.totalorder %s30, 1
      %p104 = por %p102, %p103
      %p105 = scmp.ne.s32.totalorder %s96, %s97
      %p106 = scmp.eq.s32.totalorder %s30, 0
      %p107 = por %p105, %p106
      %p108 = scmp.ne.s32.totalorder %s96, %s97
      %p109 = scmp.eq.s32.totalorder %s31, 1
      %p110 = por %p108, %p109
      %p112 = scmp.ne.s32.totalorder %s97, %s111
      %p113 = scmp.eq.s32.totalorder %s31, 0
      %p114 = por %p112, %p113
      %s116 = sadd.s32 %s115, 1
      %p119 = scmp.eq.s32.totalorder %s25, 1
      %p120 = scmp.ne.s32.totalorder %s115, %s117
      %p121 = scmp.eq.s32.totalorder %s25, 0
      %p122 = por %p120, %p121
      %p123 = scmp.ne.s32.totalorder %s115, %s117
      %p124 = scmp.eq.s32.totalorder %s30, 1
      %p125 = por %p123, %p124
      %p126 = scmp.ne.s32.totalorder %s117, %s118
      %p127 = scmp.eq.s32.totalorder %s30, 0
      %p128 = por %p126, %p127
      %p129 = scmp.ne.s32.totalorder %s117, %s118
      %p130 = scmp.eq.s32.totalorder %s31, 1
      %p131 = por %p129, %p130
      %p133 = scmp.ne.s32.totalorder %s118, %s132
      %p134 = scmp.eq.s32.totalorder %s31, 0
      %p135 = por %p133, %p134
      %s137 = sadd.s32 %s136, 1
      %p140 = scmp.eq.s32.totalorder %s25, 1
      %p141 = scmp.ne.s32.totalorder %s136, %s138
      %p142 = scmp.eq.s32.totalorder %s25, 0
      %p143 = por %p141, %p142
      %p144 = scmp.ne.s32.totalorder %s136, %s138
      %p145 = scmp.eq.s32.totalorder %s30, 1
      %p146 = por %p144, %p145
      %p147 = scmp.ne.s32.totalorder %s138, %s139
      %p148 = scmp.eq.s32.totalorder %s30, 0
      %p149 = por %p147, %p148
      %p150 = scmp.ne.s32.totalorder %s138, %s139
      %p151 = scmp.eq.s32.totalorder %s31, 1
      %p152 = por %p150, %p151
      %p154 = scmp.ne.s32.totalorder %s139, %s153
      %p155 = scmp.eq.s32.totalorder %s31, 0
      %p156 = por %p154, %p155
      %s158 = sadd.s32 %s157, 1
      %p161 = scmp.eq.s32.totalorder %s25, 1
      %p162 = scmp.ne.s32.totalorder %s157, %s159
      %p163 = scmp.eq.s32.totalorder %s25, 0
      %p164 = por %p162, %p163
      %p165 = scmp.ne.s32.totalorder %s157, %s159
      %p166 = scmp.eq.s32.totalorder %s30, 1
      %p167 = por %p165, %p166
      %p168 = scmp.ne.s32.totalorder %s159, %s160
      %p169 = scmp.eq.s32.totalorder %s30, 0
      %p170 = por %p168, %p169
      %p171 = scmp.ne.s32.totalorder %s159, %s160
      %p172 = scmp.eq.s32.totalorder %s31, 1
      %p173 = por %p171, %p172
      %p175 = scmp.ne.s32.totalorder %s160, %s174
      %p176 = scmp.eq.s32.totalorder %s31, 0
      %p177 = por %p175, %p176
      %s179 = sadd.s32 %s178, 1
      %p182 = scmp.eq.s32.totalorder %s25, 1
      %p183 = scmp.ne.s32.totalorder %s178, %s180
      %p184 = scmp.eq.s32.totalorder %s25, 0
      %p185 = por %p183, %p184
      %p186 = scmp.ne.s32.totalorder %s178, %s180
      %p187 = scmp.eq.s32.totalorder %s30, 1
      %p188 = por %p186, %p187
      %p189 = scmp.ne.s32.totalorder %s180, %s181
      %p190 = scmp.eq.s32.totalorder %s30, 0
      %p191 = por %p189, %p190
      %p192 = scmp.ne.s32.totalorder %s180, %s181
      %p193 = scmp.eq.s32.totalorder %s31, 1
      %p194 = por %p192, %p193
      %p196 = scmp.ne.s32.totalorder %s181, %s195
      %p197 = scmp.eq.s32.totalorder %s31, 0
      %p198 = por %p196, %p197
      %s200 = sadd.s32 %s199, 1
      %p203 = scmp.eq.s32.totalorder %s25, 1
      %p204 = scmp.ne.s32.totalorder %s199, %s201
      %p205 = scmp.eq.s32.totalorder %s25, 0
      %p206 = por %p204, %p205
      %p207 = scmp.ne.s32.totalorder %s199, %s201
      %p208 = scmp.eq.s32.totalorder %s30, 1
      %p209 = por %p207, %p208
      %p210 = scmp.ne.s32.totalorder %s201, %s202
      %p211 = scmp.eq.s32.totalorder %s30, 0
      %p212 = por %p210, %p211
      %p213 = scmp.ne.s32.totalorder %s201, %s202
      %p214 = scmp.eq.s32.totalorder %s31, 1
      %p215 = por %p213, %p214
      %p217 = scmp.ne.s32.totalorder %s202, %s216
      %p218 = scmp.eq.s32.totalorder %s31, 0
      %p219 = por %p217, %p218
      %s221 = sadd.s32 %s220, 1
      %p224 = scmp.eq.s32.totalorder %s25, 1
      %p225 = scmp.ne.s32.totalorder %s220, %s222
      %p226 = scmp.eq.s32.totalorder %s25, 0
      %p227 = por %p225, %p226
      %p228 = scmp.ne.s32.totalorder %s220, %s222
      %p229 = scmp.eq.s32.totalorder %s30, 1
      %p230 = por %p228, %p229
      %p231 = scmp.ne.s32.totalorder %s222, %s223
      %p232 = scmp.eq.s32.totalorder %s30, 0
      %p233 = por %p231, %p232
      %p234 = scmp.ne.s32.totalorder %s222, %s223
      %p235 = scmp.eq.s32.totalorder %s31, 1
      %p236 = por %p234, %p235
      %p238 = scmp.ne.s32.totalorder %s223, %s237
      %p239 = scmp.eq.s32.totalorder %s31, 0
      %p240 = por %p238, %p239
      %s242 = sadd.s32 %s241, 1
      %p245 = scmp.eq.s32.totalorder %s25, 1
      %p246 = scmp.ne.s32.totalorder %s241, %s243
      %p247 = scmp.eq.s32.totalorder %s25, 0
      %p248 = por %p246, %p247
      %p249 = scmp.ne.s32.totalorder %s241, %s243
      %p250 = scmp.eq.s32.totalorder %s30, 1
      %p251 = por %p249, %p250
      %p252 = scmp.ne.s32.totalorder %s243, %s244
      %p253 = scmp.eq.s32.totalorder %s30, 0
      %p254 = por %p252, %p253
      %p255 = scmp.ne.s32.totalorder %s243, %s244
      %p256 = scmp.eq.s32.totalorder %s31, 1
      %p257 = por %p255, %p256
      %p259 = scmp.ne.s32.totalorder %s244, %s258
      %p260 = scmp.eq.s32.totalorder %s31, 0
      %p261 = por %p259, %p260
      %s263 = sadd.s32 %s262, 1
      %p266 = scmp.eq.s32.totalorder %s25, 1
      %p267 = scmp.ne.s32.totalorder %s262, %s264
      %p268 = scmp.eq.s32.totalorder %s25, 0
      %p269 = por %p267, %p268
      %p270 = scmp.ne.s32.totalorder %s262, %s264
      %p271 = scmp.eq.s32.totalorder %s30, 1
      %p272 = por %p270, %p271
      %p273 = scmp.ne.s32.totalorder %s264, %s265
      %p274 = scmp.eq.s32.totalorder %s30, 0
      %p275 = por %p273, %p274
      %p276 = scmp.ne.s32.totalorder %s264, %s265
      %p277 = scmp.eq.s32.totalorder %s31, 1
      %p278 = por %p276, %p277
      %p280 = scmp.ne.s32.totalorder %s265, %s279
      %p281 = scmp.eq.s32.totalorder %s31, 0
      %p282 = por %p280, %p281
      %s284 = sadd.s32 %s283, 1
      %p287 = scmp.eq.s32.totalorder %s25, 1
      %p288 = scmp.ne.s32.totalorder %s283, %s285
      %p289 = scmp.eq.s32.totalorder %s25, 0
      %p290 = por %p288, %p289
      %p291 = scmp.ne.s32.totalorder %s283, %s285
      %p292 = scmp.eq.s32.totalorder %s30, 1
      %p293 = por %p291, %p292
      %p294 = scmp.ne.s32.totalorder %s285, %s286
      %p295 = scmp.eq.s32.totalorder %s30, 0
      %p296 = por %p294, %p295
      %p297 = scmp.ne.s32.totalorder %s285, %s286
      %p298 = scmp.eq.s32.totalorder %s31, 1
      %p299 = por %p297, %p298
      %p301 = scmp.ne.s32.totalorder %s286, %s300
      %p302 = scmp.eq.s32.totalorder %s31, 0
      %p303 = por %p301, %p302
      %s305 = sadd.s32 %s304, 1
      %p308 = scmp.eq.s32.totalorder %s25, 1
      %p309 = scmp.ne.s32.totalorder %s304, %s306
      %p310 = scmp.eq.s32.totalorder %s25, 0
      %p311 = por %p309, %p310
      %p312 = scmp.ne.s32.totalorder %s304, %s306
      %p313 = scmp.eq.s32.totalorder %s30, 1
      %p314 = por %p312, %p313
      %p315 = scmp.ne.s32.totalorder %s306, %s307
      %p316 = scmp.eq.s32.totalorder %s30, 0
      %p317 = por %p315, %p316
      %p318 = scmp.ne.s32.totalorder %s306, %s307
      %p319 = scmp.eq.s32.totalorder %s31, 1
      %p320 = por %p318, %p319
      %p322 = scmp.ne.s32.totalorder %s307, %s321
      %p323 = scmp.eq.s32.totalorder %s31, 0
      %p324 = por %p322, %p323
      %s325 = ssub.s32 %s32, %s44
      %s326 = ssub.s32 %s33, %s40
      %s327 = sor.u32 %s325, %s326
      %p328 = scmp.eq.s32.totalorder %s327, 0
      %s330 = sadd.s32 %s329, 1
      %s331 = scalar_select %p328, %s329, %s330
      %p334 = pneg %p328
      %p335 = scmp.eq.s32.totalorder %s25, 1
      %p336 = por %p334, %p335
      %p337 = scmp.ne.s32.totalorder %s329, %s332
      %p338 = scmp.eq.s32.totalorder %s25, 0
      %p339 = por %p337, %p338
      %p340 = scmp.ne.s32.totalorder %s329, %s332
      %p341 = scmp.eq.s32.totalorder %s30, 1
      %p342 = por %p340, %p341
      %p343 = scmp.ne.s32.totalorder %s332, %s333
      %p344 = scmp.eq.s32.totalorder %s30, 0
      %p345 = por %p343, %p344
      %p346 = scmp.ne.s32.totalorder %s332, %s333
      %p347 = scmp.eq.s32.totalorder %s31, 1
      %p348 = por %p346, %p347
      %p350 = scmp.ne.s32.totalorder %s333, %s349
      %p351 = scmp.eq.s32.totalorder %s31, 0
      %p352 = por %p350, %p351
      %p353 = scmp.le.s32.totalorder 1, %s25
      %p354 = scmp.lt.s32.totalorder %s25, 3
      %p355 = pnand %p353, %p354
      %p356 = pneg %p355
      // Predicated region
      $region9: #{tpu_custom_call.1} parent=5 // pred_check
        _
      $region10: #{tpu_custom_call.1} parent=5 // pred_check_branch
        %358 = sbr.rel (%p355) target = $region12
      $region11: #{tpu_custom_call.1} parent=5 // pred_region
        %s359 = ssub.s32 %s25, 1
        // Predicated region
        $region13: #{tpu_custom_call.1} parent=11 // pred_check
          %p360 = pneg %p86
        $region14: #{tpu_custom_call.1} parent=11 // pred_check_branch
          %362 = sbr.rel (%p360) target = $region16
        $region15: #{tpu_custom_call.1} parent=11 // pred_region
          _
        $region16: #{tpu_custom_call.1} parent=11 // pred_fallthru
          _
        // Predicated region
        $region17: #{tpu_custom_call.1} parent=11 // pred_check
          %p363 = pneg %p107
        $region18: #{tpu_custom_call.1} parent=11 // pred_check_branch
          %365 = sbr.rel (%p363) target = $region20
        $region19: #{tpu_custom_call.1} parent=11 // pred_region
          _
        $region20: #{tpu_custom_call.1} parent=11 // pred_fallthru
          _
        // Predicated region
        $region21: #{tpu_custom_call.1} parent=11 // pred_check
          %p366 = pneg %p128
        $region22: #{tpu_custom_call.1} parent=11 // pred_check_branch
          %368 = sbr.rel (%p366) target = $region24
        $region23: #{tpu_custom_call.1} parent=11 // pred_region
          _
        $region24: #{tpu_custom_call.1} parent=11 // pred_fallthru
          _
        // Predicated region
        $region25: #{tpu_custom_call.1} parent=11 // pred_check
          %p369 = pneg %p149
        $region26: #{tpu_custom_call.1} parent=11 // pred_check_branch
          %371 = sbr.rel (%p369) target = $region28
        $region27: #{tpu_custom_call.1} parent=11 // pred_region
          %s373 = ssub.s32 64, 64
          %374 = vsyncadd [#allocation11], %s373
          %s376 = sshll.u32 [#allocation10], 4
          %s377 = int_to_ptr.vmem [resolvable:$true] %s376
          %379 = dma.hbm_to_vmem [thread:$0]  %s4, 64, %s377, [#allocation11]
        $region28: #{tpu_custom_call.1} parent=11 // pred_fallthru
          _
        // Predicated region
        $region29: #{tpu_custom_call.1} parent=11 // pred_check
          %p380 = pneg %p170
        $region30: #{tpu_custom_call.1} parent=11 // pred_check_branch
          %382 = sbr.rel (%p380) target = $region32
        $region31: #{tpu_custom_call.1} parent=11 // pred_region
          %s384 = ssub.s32 16, 16
          %385 = vsyncadd [#allocation14], %s384
          %s387 = sshll.u32 [#allocation13], 4
          %s388 = int_to_ptr.vmem [resolvable:$true] %s387
          %390 = dma.hbm_to_vmem [thread:$0]  %s5, 16, %s388, [#allocation14]
        $region32: #{tpu_custom_call.1} parent=11 // pred_fallthru
          _
        // Predicated region
        $region33: #{tpu_custom_call.1} parent=11 // pred_check
          %p391 = pneg %p191
        $region34: #{tpu_custom_call.1} parent=11 // pred_check_branch
          %393 = sbr.rel (%p391) target = $region36
        $region35: #{tpu_custom_call.1} parent=11 // pred_region
          %s395 = ssub.s32 256, 256
          %396 = vsyncadd [#allocation14], %s395
          %s397 = sshll.u32 [#allocation15], 4
          %s398 = int_to_ptr.vmem [resolvable:$true] %s397
          %403 = dma.hbm_to_vmem [thread:$0]  %s6, 256, %s398, [#allocation14], 128, 128, 8
        $region36: #{tpu_custom_call.1} parent=11 // pred_fallthru
          _
        // Predicated region
        $region37: #{tpu_custom_call.1} parent=11 // pred_check
          %p404 = pneg %p212
        $region38: #{tpu_custom_call.1} parent=11 // pred_check_branch
          %406 = sbr.rel (%p404) target = $region40
        $region39: #{tpu_custom_call.1} parent=11 // pred_region
          _
        $region40: #{tpu_custom_call.1} parent=11 // pred_fallthru
          _
        // Predicated region
        $region41: #{tpu_custom_call.1} parent=11 // pred_check
          %p407 = pneg %p233
        $region42: #{tpu_custom_call.1} parent=11 // pred_check_branch
          %409 = sbr.rel (%p407) target = $region44
        $region43: #{tpu_custom_call.1} parent=11 // pred_region
          %s411 = ssub.s32 48, 48
          %412 = vsyncadd [#allocation17], %s411
          %s414 = sshll.u32 [#allocation16], 4
          %s415 = int_to_ptr.vmem [resolvable:$true] %s414
          %417 = dma.hbm_to_vmem [thread:$0]  %s8, 48, %s415, [#allocation17]
        $region44: #{tpu_custom_call.1} parent=11 // pred_fallthru
          _
        // Predicated region
        $region45: #{tpu_custom_call.1} parent=11 // pred_check
          %p418 = pneg %p254
        $region46: #{tpu_custom_call.1} parent=11 // pred_check_branch
          %420 = sbr.rel (%p418) target = $region48
        $region47: #{tpu_custom_call.1} parent=11 // pred_region
          _
        $region48: #{tpu_custom_call.1} parent=11 // pred_fallthru
          _
        // Predicated region
        $region49: #{tpu_custom_call.1} parent=11 // pred_check
          %p421 = pneg %p275
        $region50: #{tpu_custom_call.1} parent=11 // pred_check_branch
          %423 = sbr.rel (%p421) target = $region52
        $region51: #{tpu_custom_call.1} parent=11 // pred_region
          _
        $region52: #{tpu_custom_call.1} parent=11 // pred_fallthru
          _
        // Predicated region
        $region53: #{tpu_custom_call.1} parent=11 // pred_check
          %p424 = pneg %p296
        $region54: #{tpu_custom_call.1} parent=11 // pred_check_branch
          %426 = sbr.rel (%p424) target = $region56
        $region55: #{tpu_custom_call.1} parent=11 // pred_region
          _
        $region56: #{tpu_custom_call.1} parent=11 // pred_fallthru
          _
        // Predicated region
        $region57: #{tpu_custom_call.1} parent=11 // pred_check
          %p427 = pneg %p317
        $region58: #{tpu_custom_call.1} parent=11 // pred_check_branch
          %429 = sbr.rel (%p427) target = $region60
        $region59: #{tpu_custom_call.1} parent=11 // pred_region
          _
        $region60: #{tpu_custom_call.1} parent=11 // pred_fallthru
          _
      $region12: #{tpu_custom_call.1} parent=5 // pred_fallthru
        _
      %p430 = scmp.lt.s32.totalorder %s25, 2
      // Predicated region
      $region61: #{tpu_custom_call.1} parent=5 // pred_check
        %p431 = pneg %p430
      $region62: #{tpu_custom_call.1} parent=5 // pred_check_branch
        %433 = sbr.rel (%p431) target = $region64
      $region63: #{tpu_custom_call.1} parent=5 // pred_region
        // Predicated region
        $region65: #{tpu_custom_call.1} parent=63 // pred_check
          %p434 = pneg %p59
        $region66: #{tpu_custom_call.1} parent=63 // pred_check_branch
          %436 = sbr.rel (%p434) target = $region68
        $region67: #{tpu_custom_call.1} parent=63 // pred_region
          %p437 = scmp.lt.s32.totalorder %s32, 1
          %s438 = scalar_select %p437, %s32, 1
          %p439 = scmp.lt.s32.totalorder %s33, 0
          %s440 = scalar_select %p439, %s33, 0
          %s441 = sadd.s32 %s440, %s438
          %s442 = smul.addr %s441, 8
          %s443 = scalar_lea.vmem %s0, %s442
        $region68: #{tpu_custom_call.1} parent=63 // pred_fallthru
          _
      $region64: #{tpu_custom_call.1} parent=5 // pred_fallthru
        _
      %p444 = scmp.le.s32.totalorder 1, %s25
      %p445 = scmp.lt.s32.totalorder %s25, 3
      %p446 = pnand %p444, %p445
      %p447 = pneg %p446
      // Predicated region
      $region69: #{tpu_custom_call.1} parent=5 // pred_check
        _
      $region70: #{tpu_custom_call.1} parent=5 // pred_check_branch
        %449 = sbr.rel (%p446) target = $region72
      $region71: #{tpu_custom_call.1} parent=5 // pred_region
        %s450 = ssub.s32 %s25, 1
        // Predicated region
        $region73: #{tpu_custom_call.1} parent=71 // pred_check
          %p451 = pneg %p149
        $region74: #{tpu_custom_call.1} parent=71 // pred_check_branch
          %453 = sbr.rel (%p451) target = $region76
        $region75: #{tpu_custom_call.1} parent=71 // pred_region
          %454 = dma.done [#allocation11], 64
        $region76: #{tpu_custom_call.1} parent=71 // pred_fallthru
          _
        // Predicated region
        $region77: #{tpu_custom_call.1} parent=71 // pred_check
          %p455 = pneg %p170
        $region78: #{tpu_custom_call.1} parent=71 // pred_check_branch
          %457 = sbr.rel (%p455) target = $region80
        $region79: #{tpu_custom_call.1} parent=71 // pred_region
          %458 = dma.done [#allocation14], 16
        $region80: #{tpu_custom_call.1} parent=71 // pred_fallthru
          _
        // Predicated region
        $region81: #{tpu_custom_call.1} parent=71 // pred_check
          %p459 = pneg %p191
        $region82: #{tpu_custom_call.1} parent=71 // pred_check_branch
          %461 = sbr.rel (%p459) target = $region84
        $region83: #{tpu_custom_call.1} parent=71 // pred_region
          %462 = dma.done [#allocation14], 256
        $region84: #{tpu_custom_call.1} parent=71 // pred_fallthru
          _
        // Predicated region
        $region85: #{tpu_custom_call.1} parent=71 // pred_check
          %p463 = pneg %p233
        $region86: #{tpu_custom_call.1} parent=71 // pred_check_branch
          %465 = sbr.rel (%p463) target = $region88
        $region87: #{tpu_custom_call.1} parent=71 // pred_region
          %466 = dma.done [#allocation17], 48
        $region88: #{tpu_custom_call.1} parent=71 // pred_fallthru
          _
        %p467 = scmp.lt.s32.totalorder %s34, 1
        %s468 = scalar_select %p467, %s34, 1
        %p469 = scmp.lt.s32.totalorder %s35, 0
        %s470 = scalar_select %p469, %s35, 0
        %s471 = sadd.s32 %s470, %s468
        %s472 = smul.addr %s471, 8
        %s473 = scalar_lea.vmem %s0, %s472
        %p474 = pneg %p65
        %p475 = pneg %p62
        %p476 = pneg %p86
        %p477 = pneg %p83
        %p478 = pneg %p107
        %p479 = pneg %p104
        %p480 = pneg %p128
        %p481 = pneg %p125
        %p482 = pneg %p149
        %p483 = pneg %p146
        %p484 = pneg %p170
        %p485 = pneg %p167
        %p486 = pneg %p191
        %p487 = pneg %p188
        %p488 = pneg %p212
        %p489 = pneg %p209
        %p490 = pneg %p233
        %p491 = pneg %p230
        %p492 = pneg %p254
        %p493 = pneg %p251
        %p494 = pneg %p275
        %p495 = pneg %p272
        %p496 = pneg %p296
        %p497 = pneg %p293
        %p498 = pneg %p317
        %p499 = pneg %p314
        %p500 = pneg %p345
        %p501 = pneg %p342
        %s502 = sand.u32 %s332, 1
        %s503 = scalar_lea.sflag [#allocation12], %s502
        %s504 = sand.u32 %s332, 1
        %s505 = smul.addr %s504, 8
        %s506 = scalar_lea.vmem [#allocation18], %s505
        %p507 = scmp.lt.s32.totalorder %s34, 1
        %s508 = scalar_select %p507, %s34, 1
        %p509 = scmp.lt.s32.totalorder %s35, 0
        %s510 = scalar_select %p509, %s35, 0
        %s511 = sadd.s32 %s510, %s508
        %s512 = smul.addr %s511, 8
        %s513 = scalar_lea.vmem %s0, %s512
        %p515 = scmp.eq.s32.totalorder %s35, 0
        // Predicated region
        $region89: #{tpu_custom_call.1} parent=71 // pred_check
          %p516 = pneg %p515
        $region90: #{tpu_custom_call.1} parent=71 // pred_check_branch
          %518 = sbr.rel (%p516) target = $region92
        $region91: #{tpu_custom_call.1} parent=71 // pred_region
          %vm519 = vcmask 523264
          %520 = vst.msk [vmem:[#allocation8] sm:$0xff] %vm519, 0.0
          %521 = vst.msk [vmem:[#allocation8 + $0x8] sm:$0xff] %vm519, 0.0
          %vm522 = vcmask 518144
          %523 = vst.msk [vmem:[#allocation9] sm:$0x7] %vm522, 0.0
        $region92: #{tpu_custom_call.1} parent=71 // pred_fallthru
          _
        %v524 = vld [vmem:[%s513] sm:$0xff]
        %v525 = vmul.f32 %v524, %v524
        %vm526 = vcmask 261120
        %v527 = vsel %vm526, %v525, 0.0
        %528 = vadd.xlane.f32.xlu0 %v527
        %v529 = vpop.xlane.xlu0 %528
        %v530 = vrcp.pop 32.0
        %v531 = vmul.f32 %v529, %v530
        %v532 = vadd.f32 %v531, 1e-06
        %v533 = vrsqrt.pop %v532
        %v534 = vmul.f32 %v524, %v533
        %v535 = vld [vmem:[%s1] sm:$0x1]
        %v537 = vlaneseq
        %v538 = vshrl.u32 %v537, 7
        %v539 = vsub.s32 0, %v538
        %v540 = vrot.slane %v535, %v539
        %v542 = vmul.f32 %v534, %v540
        %v543 = vpack.c.bf16 %v542, %v542
        %v544 = vld [vmem:[%s2] sm:$0xf]
        %v545 = vld [vmem:[%s2 + $0x4] sm:$0xf]
        %v546 = vld [vmem:[%s2 + $0x8] sm:$0xf]
        %v547 = vld [vmem:[%s2 + $0xc] sm:$0xf]
        %v548 = vld [vmem:[%s3] sm:$0x1]
        %v550 = vlaneseq
        %v551 = vshrl.u32 %v550, 7
        %v552 = vsub.s32 0, %v551
        %v553 = vrot.slane %v548, %v552
        %v559 = vunpack.c.l.b16 %v544
        %v560 = vunpack.c.l.b16 %v545
        %v561 = vunpack.c.l.b16 %v546
        %v562 = vunpack.c.l.b16 %v547
        %v563 = vpack.c.b16 %v560, %v559
        %v564 = vpack.c.b16 %v562, %v561
        %v568 = vsel %vm526, %v543, 0
        %570 = vmatprep.subr.bf16.mxu0 0
        %571 = vmatpush1.bf16.msra.mxu0 %v563
        %572 = vmatprep.subr.bf16.mxu0 0
        %573 = vmatpush1.bf16.msra.mxu0 %v564
        %574 = vmatprep.subr.bf16.mxu0 0
        %575 = vmatpush1.bf16.msra.mxu0 0
        %576 = vmatprep.subr.bf16.mxu0 0
        %577 = vmatpush1.bf16.msra.mxu0 0
        %578 = vmatprep.subr.bf16.mxu0 0
        %579 = vmatpush1.bf16.msra.mxu0 0
        %580 = vmatprep.subr.bf16.mxu0 0
        %581 = vmatpush1.bf16.msra.mxu0 0
        %582 = vmatprep.subr.bf16.mxu0 0
        %583 = vmatpush1.bf16.msra.mxu0 0
        %584 = vmatprep.subr.bf16.mxu0 0
        %585 = vmatpush1.bf16.msra.mxu0 0
        %586 = vmatprep.subr.bf16.mxu0 0
        %587 = vmatpush1.bf16.msra.mxu0 0
        %588 = vmatprep.subr.bf16.mxu0 0
        %589 = vmatpush1.bf16.msra.mxu0 0
        %590 = vmatprep.subr.bf16.mxu0 0
        %591 = vmatpush1.bf16.msra.mxu0 0
        %592 = vmatprep.subr.bf16.mxu0 0
        %593 = vmatpush1.bf16.msra.mxu0 0
        %594 = vmatprep.subr.bf16.mxu0 0
        %595 = vmatpush1.bf16.msra.mxu0 0
        %596 = vmatprep.subr.bf16.mxu0 0
        %597 = vmatpush1.bf16.msra.mxu0 0
        %598 = vmatprep.subr.bf16.mxu0 0
        %599 = vmatpush1.bf16.msra.mxu0 0
        %600 = vmatprep.subr.bf16.mxu0 0
        %601 = vmatpush1.bf16.msra.mxu0 0
        %602 = vmatprep.mubr.bf16.mxu0 0
        %603 = vmatmul.mubr.bf16.gmra.mrb[0].mxu0 %v568
        %v604 = vpop.f32.mrb[0].mxu0
        %v605 = vadd.f32 %v553, %v604
        %v606 = vpop.f32.mrb[0].mxu0
        %v607 = vpop.f32.mrb[0].mxu0
        %v608 = vpop.f32.mrb[0].mxu0
        %609 = vdwg.mxu0
        %611 = vrot.lane.b32.xlu0 %v605, 64
        %v612 = vpop.permute.xlu0 %611
        %vm614 = vcmask 523264
        %615 = vst.msk [vmem:[#allocation7] sm:$0xff] %vm614, %v612
        %v616 = vld [vmem:[#allocation9] sm:$0x7]
        %v617 = vrot.slane %v605, 5
        %vm619 = vcmask 1042432
        %v620 = vsel %vm619, %v616, %v617
        %v621 = vld [vmem:[#allocation13] sm:$0x1]
        %v622 = vld [vmem:[#allocation10] sm:$0x1]
        %v623 = vlaneseq
        %v624 = vshrl.u32 %v623, 7
        %v625 = vsub.s32 0, %v624
        %v626 = vrot.slane %v622, %v625
        %v627 = vmul.f32 %v626, %v620
        %v629 = vlaneseq
        %v630 = vshrl.u32 %v629, 7
        %v631 = vsub.s32 0, %v630
        %v632 = vrot.slane %v621, %v631
        %v634 = vadd.f32 %v632, %v627
        %v635 = vld [vmem:[#allocation10 + $0x1] sm:$0x1]
        %v636 = vlaneseq
        %v637 = vshrl.u32 %v636, 7
        %v638 = vsub.s32 0, %v637
        %v639 = vrot.slane %v635, %v638
        %v640 = vmul.f32 %v639, %v620
        %v641 = vmul.f32 %v639, %v617
        %vm644 = vcmask 1046528
        %v645 = vrot.slane %v640, 1
        %v646 = vrot.slane %v641, 1
        %v647 = vsel %vm644, %v645, %v646
        %v649 = vadd.f32 %v634, %v647
        %v650 = vld [vmem:[#allocation10 + $0x2] sm:$0x1]
        %v651 = vlaneseq
        %v652 = vshrl.u32 %v651, 7
        %v653 = vsub.s32 0, %v652
        %v654 = vrot.slane %v650, %v653
        %v655 = vmul.f32 %v654, %v620
        %v656 = vmul.f32 %v654, %v617
        %vm659 = vcmask 1045504
        %v660 = vrot.slane %v655, 2
        %v661 = vrot.slane %v656, 2
        %v662 = vsel %vm659, %v660, %v661
        %v664 = vadd.f32 %v649, %v662
        %v665 = vld [vmem:[#allocation10 + $0x3] sm:$0x1]
        %v666 = vlaneseq
        %v667 = vshrl.u32 %v666, 7
        %v668 = vsub.s32 0, %v667
        %v669 = vrot.slane %v665, %v668
        %v670 = vmul.f32 %v669, %v620
        %v671 = vmul.f32 %v669, %v617
        %vm674 = vcmask 1044480
        %v675 = vrot.slane %v670, 3
        %v676 = vrot.slane %v671, 3
        %v677 = vsel %vm674, %v675, %v676
        %v679 = vadd.f32 %v664, %v677
        %vm680 = vcmask 518144
        %681 = vst.msk [vmem:[#allocation9] sm:$0x7] %vm680, %v617
        %v682 = vsub.f32 0.0, %v679
        %v683 = vmul.f32 %v682, 1.442695
        %v684 = vpow.pop %v683
        %v685 = vadd.f32 %v684, 1.0
        %v686 = vrcp.pop %v685
        %v687 = vmul.f32 1.0, %v686
        %v688 = vmul.f32 %v679, %v687
        %v689 = vpack.c.bf16 %v688, %v688
        %v690 = vld [vmem:[%s7] sm:$0xff]
        %v691 = vld [vmem:[%s7 + $0x8] sm:$0xf]
        %v692 = vld [vmem:[%s7 + $0xc] sm:$0xff]
        %v693 = vld [vmem:[%s7 + $0x14] sm:$0xf]
        %v694 = vld [vmem:[%s7 + $0x18] sm:$0xff]
        %v695 = vld [vmem:[%s7 + $0x20] sm:$0xf]
        %v696 = vld [vmem:[%s7 + $0x24] sm:$0xff]
        %v697 = vld [vmem:[%s7 + $0x2c] sm:$0xf]
        %v698 = vld [vmem:[%s7 + $0x30] sm:$0xff]
        %v699 = vld [vmem:[%s7 + $0x38] sm:$0xf]
        %v700 = vld [vmem:[%s7 + $0x3c] sm:$0xff]
        %v701 = vld [vmem:[%s7 + $0x44] sm:$0xf]
        %v702 = vld [vmem:[%s7 + $0x48] sm:$0xff]
        %v703 = vld [vmem:[%s7 + $0x50] sm:$0xf]
        %v704 = vld [vmem:[%s7 + $0x54] sm:$0xff]
        %v705 = vld [vmem:[%s7 + $0x5c] sm:$0xf]
        %v706 = vld [vmem:[#allocation16] sm:$0x7]
        %v708 = vlaneseq
        %v709 = vshrl.u32 %v708, 7
        %v710 = vsub.s32 0, %v709
        %v711 = vrot.slane %v706, %v710
        %v712 = vlaneseq
        %v713 = vshrl.u32 %v712, 7
        %v714 = vsub.s32 1, %v713
        %v715 = vrot.slane %v706, %v714
        %v716 = vlaneseq
        %v717 = vshrl.u32 %v716, 7
        %v718 = vsub.s32 2, %v717
        %v719 = vrot.slane %v706, %v718
        %v739 = vunpack.c.l.b16 %v690
        %v740 = vunpack.c.h.b16 %v690
        %v741 = vunpack.c.l.b16 %v691
        %v742 = vunpack.c.l.b16 %v692
        %v743 = vunpack.c.h.b16 %v692
        %v744 = vunpack.c.l.b16 %v693
        %v745 = vunpack.c.l.b16 %v694
        %v746 = vunpack.c.h.b16 %v694
        %v747 = vunpack.c.l.b16 %v695
        %v748 = vunpack.c.l.b16 %v696
        %v749 = vunpack.c.h.b16 %v696
        %v750 = vunpack.c.l.b16 %v697
        %v751 = vunpack.c.l.b16 %v698
        %v752 = vunpack.c.h.b16 %v698
        %v753 = vunpack.c.l.b16 %v699
        %v754 = vunpack.c.l.b16 %v700
        %v755 = vunpack.c.h.b16 %v700
        %v756 = vunpack.c.l.b16 %v701
        %v757 = vunpack.c.l.b16 %v702
        %v758 = vunpack.c.h.b16 %v702
        %v759 = vunpack.c.l.b16 %v703
        %v760 = vunpack.c.l.b16 %v704
        %v761 = vunpack.c.h.b16 %v704
        %v762 = vunpack.c.l.b16 %v705
        %v763 = vpack.c.b16 %v742, %v739
        %v764 = vpack.c.b16 %v743, %v740
        %v765 = vpack.c.b16 %v744, %v741
        %v766 = vpack.c.b16 %v748, %v745
        %v767 = vpack.c.b16 %v749, %v746
        %v768 = vpack.c.b16 %v750, %v747
        %v769 = vpack.c.b16 %v754, %v751
        %v770 = vpack.c.b16 %v755, %v752
        %v771 = vpack.c.b16 %v756, %v753
        %v772 = vpack.c.b16 %v760, %v757
        %v773 = vpack.c.b16 %v761, %v758
        %v774 = vpack.c.b16 %v762, %v759
        %v788 = vsel %vm614, %v689, 0
        %790 = vmatprep.subr.bf16.mxu0 %v764
        %791 = vmatpush1.bf16.msra.mxu0 %v763
        %792 = vmatprep.subr.bf16.mxu0 %v767
        %793 = vmatpush1.bf16.msra.mxu0 %v766
        %794 = vmatprep.subr.bf16.mxu0 %v770
        %795 = vmatpush1.bf16.msra.mxu0 %v769
        %796 = vmatprep.subr.bf16.mxu0 %v773
        %797 = vmatpush1.bf16.msra.mxu0 %v772
        %798 = vmatprep.subr.bf16.mxu0 0
        %799 = vmatpush1.bf16.msra.mxu0 0
        %800 = vmatprep.subr.bf16.mxu0 0
        %801 = vmatpush1.bf16.msra.mxu0 0
        %802 = vmatprep.subr.bf16.mxu0 0
        %803 = vmatpush1.bf16.msra.mxu0 0
        %804 = vmatprep.subr.bf16.mxu0 0
        %805 = vmatpush1.bf16.msra.mxu0 0
        %806 = vmatprep.subr.bf16.mxu0 0
        %807 = vmatpush1.bf16.msra.mxu0 0
        %808 = vmatprep.subr.bf16.mxu0 0
        %809 = vmatpush1.bf16.msra.mxu0 0
        %810 = vmatprep.subr.bf16.mxu0 0
        %811 = vmatpush1.bf16.msra.mxu0 0
        %812 = vmatprep.subr.bf16.mxu0 0
        %813 = vmatpush1.bf16.msra.mxu0 0
        %814 = vmatprep.subr.bf16.mxu0 0
        %815 = vmatpush1.bf16.msra.mxu0 0
        %816 = vmatprep.subr.bf16.mxu0 0
        %817 = vmatpush1.bf16.msra.mxu0 0
        %818 = vmatprep.subr.bf16.mxu0 0
        %819 = vmatpush1.bf16.msra.mxu0 0
        %820 = vmatprep.subr.bf16.mxu0 0
        %821 = vmatpush1.bf16.msra.mxu0 0
        %822 = vmatprep.mubr.bf16.mxu0 0
        %823 = vmatmul.mubr.bf16.gmra.mrb[0].mxu0 %v788
        %v824 = vpop.f32.mrb[0].mxu0
        %v825 = vadd.f32 %v711, %v824
        %v826 = vpop.f32.mrb[0].mxu0
        %v827 = vadd.f32 %v715, %v826
        %v828 = vpop.f32.mrb[0].mxu0
        %v829 = vpop.f32.mrb[0].mxu0
        %830 = vdwg.mxu0
        %831 = vmatprep.subr.bf16.mxu0 0
        %832 = vmatpush1.bf16.msra.mxu0 %v765
        %833 = vmatprep.subr.bf16.mxu0 0
        %834 = vmatpush1.bf16.msra.mxu0 %v768
        %835 = vmatprep.subr.bf16.mxu0 0
        %836 = vmatpush1.bf16.msra.mxu0 %v771
        %837 = vmatprep.subr.bf16.mxu0 0
        %838 = vmatpush1.bf16.msra.mxu0 %v774
        %839 = vmatprep.subr.bf16.mxu0 0
        %840 = vmatpush1.bf16.msra.mxu0 0
        %841 = vmatprep.subr.bf16.mxu0 0
        %842 = vmatpush1.bf16.msra.mxu0 0
        %843 = vmatprep.subr.bf16.mxu0 0
        %844 = vmatpush1.bf16.msra.mxu0 0
        %845 = vmatprep.subr.bf16.mxu0 0
        %846 = vmatpush1.bf16.msra.mxu0 0
        %847 = vmatprep.subr.bf16.mxu0 0
        %848 = vmatpush1.bf16.msra.mxu0 0
        %849 = vmatprep.subr.bf16.mxu0 0
        %850 = vmatpush1.bf16.msra.mxu0 0
        %851 = vmatprep.subr.bf16.mxu0 0
        %852 = vmatpush1.bf16.msra.mxu0 0
        %853 = vmatprep.subr.bf16.mxu0 0
        %854 = vmatpush1.bf16.msra.mxu0 0
        %855 = vmatprep.subr.bf16.mxu0 0
        %856 = vmatpush1.bf16.msra.mxu0 0
        %857 = vmatprep.subr.bf16.mxu0 0
        %858 = vmatpush1.bf16.msra.mxu0 0
        %859 = vmatprep.subr.bf16.mxu0 0
        %860 = vmatpush1.bf16.msra.mxu0 0
        %861 = vmatprep.subr.bf16.mxu0 0
        %862 = vmatpush1.bf16.msra.mxu0 0
        %863 = vmatprep.mubr.bf16.mxu0 0
        %864 = vmatmul.mubr.bf16.gmra.mrb[0].mxu0 %v788
        %v865 = vpop.f32.mrb[0].mxu0
        %v866 = vadd.f32 %v719, %v865
        %v867 = vpop.f32.mrb[0].mxu0
        %v868 = vpop.f32.mrb[0].mxu0
        %v869 = vpop.f32.mrb[0].mxu0
        %870 = vdwg.mxu0
        %v871 = vlaneseq
        %v872 = vshrl.u32 %v871, 7
        %v873 = vsub.s32 0, %v872
        %v874 = vrot.slane %v827, %v873
        %876 = vbcast.lane.b32.xlu0 %v874, 256
        %v877 = vpop.permute.xlu0 %876
        %s879 = sor.u32 256, 8
        %880 = vbcast.lane.b32.xlu0 %v874, %s879
        %v881 = vpop.permute.xlu0 %880
        %v882 = vlaneseq
        %v883 = vshrl.u32 %v882, 7
        %v884 = vsub.s32 1, %v883
        %v885 = vrot.slane %v827, %v884
        %887 = vbcast.lane.b32.xlu0 %v885, 256
        %v888 = vpop.permute.xlu0 %887
        %s890 = sor.u32 256, 8
        %891 = vbcast.lane.b32.xlu0 %v885, %s890
        %v892 = vpop.permute.xlu0 %891
        %v893 = vlaneseq
        %v894 = vshrl.u32 %v893, 7
        %v895 = vsub.s32 2, %v894
        %v896 = vrot.slane %v827, %v895
        %898 = vbcast.lane.b32.xlu0 %v896, 256
        %v899 = vpop.permute.xlu0 %898
        %s901 = sor.u32 256, 8
        %902 = vbcast.lane.b32.xlu0 %v896, %s901
        %v903 = vpop.permute.xlu0 %902
        %v904 = vlaneseq
        %v905 = vshrl.u32 %v904, 7
        %v906 = vsub.s32 3, %v905
        %v907 = vrot.slane %v827, %v906
        %909 = vbcast.lane.b32.xlu0 %v907, 256
        %v910 = vpop.permute.xlu0 %909
        %s912 = sor.u32 256, 8
        %913 = vbcast.lane.b32.xlu0 %v907, %s912
        %v914 = vpop.permute.xlu0 %913
        %v915 = vlaneseq
        %v916 = vshrl.u32 %v915, 7
        %v917 = vsub.s32 4, %v916
        %v918 = vrot.slane %v827, %v917
        %920 = vbcast.lane.b32.xlu0 %v918, 256
        %v921 = vpop.permute.xlu0 %920
        %s923 = sor.u32 256, 8
        %924 = vbcast.lane.b32.xlu0 %v918, %s923
        %v925 = vpop.permute.xlu0 %924
        %v926 = vlaneseq
        %v927 = vshrl.u32 %v926, 7
        %v928 = vsub.s32 5, %v927
        %v929 = vrot.slane %v827, %v928
        %931 = vbcast.lane.b32.xlu0 %v929, 256
        %v932 = vpop.permute.xlu0 %931
        %s934 = sor.u32 256, 8
        %935 = vbcast.lane.b32.xlu0 %v929, %s934
        %v936 = vpop.permute.xlu0 %935
        %v937 = vlaneseq
        %v938 = vshrl.u32 %v937, 7
        %v939 = vsub.s32 6, %v938
        %v940 = vrot.slane %v827, %v939
        %942 = vbcast.lane.b32.xlu0 %v940, 256
        %v943 = vpop.permute.xlu0 %942
        %s945 = sor.u32 256, 8
        %946 = vbcast.lane.b32.xlu0 %v940, %s945
        %v947 = vpop.permute.xlu0 %946
        %v948 = vlaneseq
        %v949 = vshrl.u32 %v948, 7
        %v950 = vsub.s32 7, %v949
        %v951 = vrot.slane %v827, %v950
        %953 = vbcast.lane.b32.xlu0 %v951, 256
        %v954 = vpop.permute.xlu0 %953
        %s956 = sor.u32 256, 8
        %957 = vbcast.lane.b32.xlu0 %v951, %s956
        %v958 = vpop.permute.xlu0 %957
        %vm959 = vcmask 7168
        %960 = vst.msk [vmem:[#allocation4] sm:$0xff] %vm959, %v877
        %961 = vst.msk [vmem:[#allocation4 + $0x8] sm:$0xff] %vm959, %v881
        %962 = vst.msk [vmem:[#allocation4 + $0x10] sm:$0xff] %vm959, %v888
        %963 = vst.msk [vmem:[#allocation4 + $0x18] sm:$0xff] %vm959, %v892
        %964 = vst.msk [vmem:[#allocation4 + $0x20] sm:$0xff] %vm959, %v899
        %965 = vst.msk [vmem:[#allocation4 + $0x28] sm:$0xff] %vm959, %v903
        %966 = vst.msk [vmem:[#allocation4 + $0x30] sm:$0xff] %vm959, %v910
        %967 = vst.msk [vmem:[#allocation4 + $0x38] sm:$0xff] %vm959, %v914
        %968 = vst.msk [vmem:[#allocation4 + $0x40] sm:$0xff] %vm959, %v921
        %969 = vst.msk [vmem:[#allocation4 + $0x48] sm:$0xff] %vm959, %v925
        %970 = vst.msk [vmem:[#allocation4 + $0x50] sm:$0xff] %vm959, %v932
        %971 = vst.msk [vmem:[#allocation4 + $0x58] sm:$0xff] %vm959, %v936
        %972 = vst.msk [vmem:[#allocation4 + $0x60] sm:$0xff] %vm959, %v943
        %973 = vst.msk [vmem:[#allocation4 + $0x68] sm:$0xff] %vm959, %v947
        %974 = vst.msk [vmem:[#allocation4 + $0x70] sm:$0xff] %vm959, %v954
        %975 = vst.msk [vmem:[#allocation4 + $0x78] sm:$0xff] %vm959, %v958
        %v976 = vlaneseq
        %v977 = vshrl.u32 %v976, 7
        %v978 = vsub.s32 0, %v977
        %v979 = vrot.slane %v866, %v978
        %981 = vbcast.lane.b32.xlu0 %v979, 256
        %v982 = vpop.permute.xlu0 %981
        %s984 = sor.u32 256, 8
        %985 = vbcast.lane.b32.xlu0 %v979, %s984
        %v986 = vpop.permute.xlu0 %985
        %v987 = vlaneseq
        %v988 = vshrl.u32 %v987, 7
        %v989 = vsub.s32 1, %v988
        %v990 = vrot.slane %v866, %v989
        %992 = vbcast.lane.b32.xlu0 %v990, 256
        %v993 = vpop.permute.xlu0 %992
        %s995 = sor.u32 256, 8
        %996 = vbcast.lane.b32.xlu0 %v990, %s995
        %v997 = vpop.permute.xlu0 %996
        %v998 = vlaneseq
        %v999 = vshrl.u32 %v998, 7
        %v1000 = vsub.s32 2, %v999
        %v1001 = vrot.slane %v866, %v1000
        %1003 = vbcast.lane.b32.xlu0 %v1001, 256
        %v1004 = vpop.permute.xlu0 %1003
        %s1006 = sor.u32 256, 8
        %1007 = vbcast.lane.b32.xlu0 %v1001, %s1006
        %v1008 = vpop.permute.xlu0 %1007
        %v1009 = vlaneseq
        %v1010 = vshrl.u32 %v1009, 7
        %v1011 = vsub.s32 3, %v1010
        %v1012 = vrot.slane %v866, %v1011
        %1014 = vbcast.lane.b32.xlu0 %v1012, 256
        %v1015 = vpop.permute.xlu0 %1014
        %s1017 = sor.u32 256, 8
        %1018 = vbcast.lane.b32.xlu0 %v1012, %s1017
        %v1019 = vpop.permute.xlu0 %1018
        %v1020 = vlaneseq
        %v1021 = vshrl.u32 %v1020, 7
        %v1022 = vsub.s32 4, %v1021
        %v1023 = vrot.slane %v866, %v1022
        %1025 = vbcast.lane.b32.xlu0 %v1023, 256
        %v1026 = vpop.permute.xlu0 %1025
        %s1028 = sor.u32 256, 8
        %1029 = vbcast.lane.b32.xlu0 %v1023, %s1028
        %v1030 = vpop.permute.xlu0 %1029
        %v1031 = vlaneseq
        %v1032 = vshrl.u32 %v1031, 7
        %v1033 = vsub.s32 5, %v1032
        %v1034 = vrot.slane %v866, %v1033
        %1036 = vbcast.lane.b32.xlu0 %v1034, 256
        %v1037 = vpop.permute.xlu0 %1036
        %s1039 = sor.u32 256, 8
        %1040 = vbcast.lane.b32.xlu0 %v1034, %s1039
        %v1041 = vpop.permute.xlu0 %1040
        %v1042 = vlaneseq
        %v1043 = vshrl.u32 %v1042, 7
        %v1044 = vsub.s32 6, %v1043
        %v1045 = vrot.slane %v866, %v1044
        %1047 = vbcast.lane.b32.xlu0 %v1045, 256
        %v1048 = vpop.permute.xlu0 %1047
        %s1050 = sor.u32 256, 8
        %1051 = vbcast.lane.b32.xlu0 %v1045, %s1050
        %v1052 = vpop.permute.xlu0 %1051
        %v1053 = vlaneseq
        %v1054 = vshrl.u32 %v1053, 7
        %v1055 = vsub.s32 7, %v1054
        %v1056 = vrot.slane %v866, %v1055
        %1058 = vbcast.lane.b32.xlu0 %v1056, 256
        %v1059 = vpop.permute.xlu0 %1058
        %s1061 = sor.u32 256, 8
        %1062 = vbcast.lane.b32.xlu0 %v1056, %s1061
        %v1063 = vpop.permute.xlu0 %1062
        %1064 = vst.msk [vmem:[#allocation5] sm:$0xff] %vm959, %v982
        %1065 = vst.msk [vmem:[#allocation5 + $0x8] sm:$0xff] %vm959, %v986
        %1066 = vst.msk [vmem:[#allocation5 + $0x10] sm:$0xff] %vm959, %v993
        %1067 = vst.msk [vmem:[#allocation5 + $0x18] sm:$0xff] %vm959, %v997
        %1068 = vst.msk [vmem:[#allocation5 + $0x20] sm:$0xff] %vm959, %v1004
        %1069 = vst.msk [vmem:[#allocation5 + $0x28] sm:$0xff] %vm959, %v1008
        %1070 = vst.msk [vmem:[#allocation5 + $0x30] sm:$0xff] %vm959, %v1015
        %1071 = vst.msk [vmem:[#allocation5 + $0x38] sm:$0xff] %vm959, %v1019
        %1072 = vst.msk [vmem:[#allocation5 + $0x40] sm:$0xff] %vm959, %v1026
        %1073 = vst.msk [vmem:[#allocation5 + $0x48] sm:$0xff] %vm959, %v1030
        %1074 = vst.msk [vmem:[#allocation5 + $0x50] sm:$0xff] %vm959, %v1037
        %1075 = vst.msk [vmem:[#allocation5 + $0x58] sm:$0xff] %vm959, %v1041
        %1076 = vst.msk [vmem:[#allocation5 + $0x60] sm:$0xff] %vm959, %v1048
        %1077 = vst.msk [vmem:[#allocation5 + $0x68] sm:$0xff] %vm959, %v1052
        %1078 = vst.msk [vmem:[#allocation5 + $0x70] sm:$0xff] %vm959, %v1059
        %1079 = vst.msk [vmem:[#allocation5 + $0x78] sm:$0xff] %vm959, %v1063
        %v1080 = vpack.c.bf16 %v825, %v825
        %v1081 = vld [vmem:[%s9] sm:$0xf]
        %v1082 = vld [vmem:[%s9 + $0x4] sm:$0xf]
        %v1083 = vld [vmem:[%s9 + $0x8] sm:$0xf]
        %v1084 = vld [vmem:[%s9 + $0xc] sm:$0xf]
        %v1085 = vld [vmem:[%s9 + $0x10] sm:$0xf]
        %v1086 = vld [vmem:[%s9 + $0x14] sm:$0xf]
        %v1087 = vld [vmem:[%s9 + $0x18] sm:$0xf]
        %v1088 = vld [vmem:[%s9 + $0x1c] sm:$0xf]
        %v1089 = vld [vmem:[%s9 + $0x20] sm:$0xf]
        %v1090 = vld [vmem:[%s9 + $0x24] sm:$0xf]
        %v1091 = vld [vmem:[%s9 + $0x28] sm:$0xf]
        %v1092 = vld [vmem:[%s9 + $0x2c] sm:$0xf]
        %v1093 = vld [vmem:[%s9 + $0x30] sm:$0xf]
        %v1094 = vld [vmem:[%s9 + $0x34] sm:$0xf]
        %v1095 = vld [vmem:[%s9 + $0x38] sm:$0xf]
        %v1096 = vld [vmem:[%s9 + $0x3c] sm:$0xf]
        %v1097 = vld [vmem:[%s10] sm:$0x1]
        %v1099 = vlaneseq
        %v1100 = vshrl.u32 %v1099, 7
        %v1101 = vsub.s32 0, %v1100
        %v1102 = vrot.slane %v1097, %v1101
        %v1120 = vunpack.c.l.b16 %v1081
        %v1121 = vunpack.c.l.b16 %v1082
        %v1122 = vunpack.c.l.b16 %v1083
        %v1123 = vunpack.c.l.b16 %v1084
        %v1124 = vunpack.c.l.b16 %v1085
        %v1125 = vunpack.c.l.b16 %v1086
        %v1126 = vunpack.c.l.b16 %v1087
        %v1127 = vunpack.c.l.b16 %v1088
        %v1128 = vunpack.c.l.b16 %v1089
        %v1129 = vunpack.c.l.b16 %v1090
        %v1130 = vunpack.c.l.b16 %v1091
        %v1131 = vunpack.c.l.b16 %v1092
        %v1132 = vunpack.c.l.b16 %v1093
        %v1133 = vunpack.c.l.b16 %v1094
        %v1134 = vunpack.c.l.b16 %v1095
        %v1135 = vunpack.c.l.b16 %v1096
        %v1136 = vpack.c.b16 %v1121, %v1120
        %v1137 = vpack.c.b16 %v1123, %v1122
        %v1138 = vpack.c.b16 %v1125, %v1124
        %v1139 = vpack.c.b16 %v1127, %v1126
        %v1140 = vpack.c.b16 %v1129, %v1128
        %v1141 = vpack.c.b16 %v1131, %v1130
        %v1142 = vpack.c.b16 %v1133, %v1132
        %v1143 = vpack.c.b16 %v1135, %v1134
        %1152 = vmatprep.subr.bf16.mxu0 0
        %1153 = vmatpush1.bf16.msra.mxu0 %v1136
        %1154 = vmatprep.subr.bf16.mxu0 0
        %1155 = vmatpush1.bf16.msra.mxu0 %v1137
        %1156 = vmatprep.subr.bf16.mxu0 0
        %1157 = vmatpush1.bf16.msra.mxu0 %v1138
        %1158 = vmatprep.subr.bf16.mxu0 0
        %1159 = vmatpush1.bf16.msra.mxu0 %v1139
        %1160 = vmatprep.subr.bf16.mxu0 0
        %1161 = vmatpush1.bf16.msra.mxu0 %v1140
        %1162 = vmatprep.subr.bf16.mxu0 0
        %1163 = vmatpush1.bf16.msra.mxu0 %v1141
        %1164 = vmatprep.subr.bf16.mxu0 0
        %1165 = vmatpush1.bf16.msra.mxu0 %v1142
        %1166 = vmatprep.subr.bf16.mxu0 0
        %1167 = vmatpush1.bf16.msra.mxu0 %v1143
        %1168 = vmatprep.subr.bf16.mxu0 0
        %1169 = vmatpush1.bf16.msra.mxu0 0
        %1170 = vmatprep.subr.bf16.mxu0 0
        %1171 = vmatpush1.bf16.msra.mxu0 0
        %1172 = vmatprep.subr.bf16.mxu0 0
        %1173 = vmatpush1.bf16.msra.mxu0 0
        %1174 = vmatprep.subr.bf16.mxu0 0
        %1175 = vmatpush1.bf16.msra.mxu0 0
        %1176 = vmatprep.subr.bf16.mxu0 0
        %1177 = vmatpush1.bf16.msra.mxu0 0
        %1178 = vmatprep.subr.bf16.mxu0 0
        %1179 = vmatpush1.bf16.msra.mxu0 0
        %1180 = vmatprep.subr.bf16.mxu0 0
        %1181 = vmatpush1.bf16.msra.mxu0 0
        %1182 = vmatprep.subr.bf16.mxu0 0
        %1183 = vmatpush1.bf16.msra.mxu0 0
        %1184 = vmatprep.mubr.bf16.mxu0 0
        %1185 = vmatmul.mubr.bf16.gmra.mrb[0].mxu0 %v1080
        %v1186 = vpop.f32.mrb[0].mxu0
        %v1187 = vadd.f32 %v1102, %v1186
        %v1188 = vpop.f32.mrb[0].mxu0
        %v1189 = vpop.f32.mrb[0].mxu0
        %v1190 = vpop.f32.mrb[0].mxu0
        %1191 = vdwg.mxu0
        %v1192 = vmax.f32 %v1187, 0.0
        %v1193 = vand.u32 2147483647, %v1187
        %v1194 = vsub.f32 0.0, %v1193
        %v1195 = vmul.f32 %v1194, 1.442695
        %v1196 = vpow.pop %v1195
        %v1197 = vadd.f32 %v1196, 1.0
        %v1198 = vlog2.pop %v1197
        %v1199 = vmul.f32 %v1198, 0.6931472
        %v1200 = vadd.f32 %v1192, %v1199
        %1201 = vst.msk [vmem:[#allocation2] sm:$0xff] %vm614, %v1200
        %v1202 = vmul.f32 %v1200, %v688
        %1203 = vst.msk [vmem:[#allocation3] sm:$0xff] %vm614, %v1202
        %v1204 = vld [vmem:[#allocation15] sm:$0xff]
        %v1205 = vld [vmem:[#allocation15 + $0x8] sm:$0xff]
        %v1206 = vld [vmem:[#allocation8] sm:$0xff]
        %v1207 = vld [vmem:[#allocation8 + $0x8] sm:$0xff]
        %v1208 = vld [vmem:[#allocation2] sm:$0x1]
        %v1209 = vld [vmem:[#allocation3] sm:$0x1]
        %v1210 = vlaneseq
        %v1211 = vshrl.u32 %v1210, 7
        %v1212 = vsub.s32 0, %v1211
        %v1213 = vrot.slane %v1208, %v1212
        %v1214 = vmul.f32 %v1213, %v1204
        %v1215 = vmul.f32 %v1213, %v1205
        %v1216 = vmul.f32 %v1214, 1.442695
        %v1217 = vpow.pop %v1216
        %v1218 = vmul.f32 %v1215, 1.442695
        %v1219 = vpow.pop %v1218
        %v1220 = vmul.f32 %v1217, %v1206
        %v1221 = vmul.f32 %v1219, %v1207
        %s1222 = smul.u32 0, 16
        %s1223 = scalar_lea.vmem [#allocation4], %s1222
        %v1224 = vld [vmem:[%s1223] sm:$0xff]
        %v1225 = vld [vmem:[%s1223 + $0x8] sm:$0xff]
        %v1226 = vlaneseq
        %v1227 = vshrl.u32 %v1226, 7
        %v1228 = vsub.s32 0, %v1227
        %v1229 = vrot.slane %v1209, %v1228
        %1231 = vset.pattern.permute.xlu0 0
        %1232 = vperm.xlu0 %1231, %v1224
        %v1233 = vpop.permute.xlu0 %1232
        %1236 = vset.pattern.permute.xlu0 0
        %1237 = vperm.xlu0 %1236, %v1225
        %v1238 = vpop.permute.xlu0 %1237
        %v1240 = vmul.f32 %v1229, %v1233
        %v1241 = vmul.f32 %v1229, %v1238
        %v1242 = vadd.f32 %v1220, %v1240
        %v1243 = vadd.f32 %v1221, %v1241
        %s1244 = scalar_lea.vmem [#allocation5], %s1222
        %v1245 = vld [vmem:[%s1244] sm:$0xff]
        %v1246 = vld [vmem:[%s1244 + $0x8] sm:$0xff]
        %1248 = vset.pattern.permute.xlu0 0
        %1249 = vperm.xlu0 %1248, %v1245
        %v1250 = vpop.permute.xlu0 %1249
        %1253 = vset.pattern.permute.xlu0 0
        %1254 = vperm.xlu0 %1253, %v1246
        %v1255 = vpop.permute.xlu0 %1254
        %v1257 = vmul.f32 %v1242, %v1250
        %v1258 = vmul.f32 %v1243, %v1255
        %v1259 = vsel %vm614, %v1257, 0.0
        %v1260 = vsel %vm614, %v1258, 0.0
        %v1261 = vadd.f32 %v1259, %v1260
        %v1262 = vrot.slane %v1261, 4
        %v1263 = vadd.f32 %v1261, %v1262
        %v1264 = vrot.slane %v1263, 2
        %v1265 = vadd.f32 %v1263, %v1264
        %v1266 = vrot.slane %v1265, 1
        %v1267 = vadd.f32 %v1265, %v1266
        %s1268 = sadd.s32 0, 1
        %s1269 = scalar_lea.vmem [#allocation2], %s1268
        %v1270 = vld [vmem:[%s1269] sm:$0x1]
        %s1271 = scalar_lea.vmem [#allocation3], %s1268
        %v1272 = vld [vmem:[%s1271] sm:$0x1]
        %v1273 = vlaneseq
        %v1274 = vshrl.u32 %v1273, 7
        %v1275 = vsub.s32 0, %v1274
        %v1276 = vrot.slane %v1270, %v1275
        %v1277 = vmul.f32 %v1276, %v1204
        %v1278 = vmul.f32 %v1276, %v1205
        %v1279 = vmul.f32 %v1277, 1.442695
        %v1280 = vpow.pop %v1279
        %v1281 = vmul.f32 %v1278, 1.442695
        %v1282 = vpow.pop %v1281
        %v1283 = vmul.f32 %v1280, %v1242
        %v1284 = vmul.f32 %v1282, %v1243
        %s1285 = smul.u32 %s1268, 16
        %s1286 = scalar_lea.vmem [#allocation4], %s1285
        %v1287 = vld [vmem:[%s1286] sm:$0xff]
        %v1288 = vld [vmem:[%s1286 + $0x8] sm:$0xff]
        %v1289 = vlaneseq
        %v1290 = vshrl.u32 %v1289, 7
        %v1291 = vsub.s32 0, %v1290
        %v1292 = vrot.slane %v1272, %v1291
        %1294 = vset.pattern.permute.xlu0 0
        %1295 = vperm.xlu0 %1294, %v1287
        %v1296 = vpop.permute.xlu0 %1295
        %1299 = vset.pattern.permute.xlu0 0
        %1300 = vperm.xlu0 %1299, %v1288
        %v1301 = vpop.permute.xlu0 %1300
        %v1303 = vmul.f32 %v1292, %v1296
        %v1304 = vmul.f32 %v1292, %v1301
        %v1305 = vadd.f32 %v1283, %v1303
        %v1306 = vadd.f32 %v1284, %v1304
        %s1307 = scalar_lea.vmem [#allocation5], %s1285
        %v1308 = vld [vmem:[%s1307] sm:$0xff]
        %v1309 = vld [vmem:[%s1307 + $0x8] sm:$0xff]
        %1311 = vset.pattern.permute.xlu0 0
        %1312 = vperm.xlu0 %1311, %v1308
        %v1313 = vpop.permute.xlu0 %1312
        %1316 = vset.pattern.permute.xlu0 0
        %1317 = vperm.xlu0 %1316, %v1309
        %v1318 = vpop.permute.xlu0 %1317
        %v1320 = vmul.f32 %v1305, %v1313
        %v1321 = vmul.f32 %v1306, %v1318
        %v1322 = vsel %vm614, %v1320, 0.0
        %v1323 = vsel %vm614, %v1321, 0.0
        %v1324 = vadd.f32 %v1322, %v1323
        %v1325 = vrot.slane %v1324, 4
        %v1326 = vadd.f32 %v1324, %v1325
        %v1327 = vrot.slane %v1326, 2
        %v1328 = vadd.f32 %v1326, %v1327
        %v1329 = vrot.slane %v1328, 1
        %v1330 = vadd.f32 %v1328, %v1329
        %s1331 = sadd.s32 0, 2
        %s1332 = scalar_lea.vmem [#allocation2], %s1331
        %v1333 = vld [vmem:[%s1332] sm:$0x1]
        %s1334 = scalar_lea.vmem [#allocation3], %s1331
        %v1335 = vld [vmem:[%s1334] sm:$0x1]
        %v1336 = vlaneseq
        %v1337 = vshrl.u32 %v1336, 7
        %v1338 = vsub.s32 0, %v1337
        %v1339 = vrot.slane %v1333, %v1338
        %v1340 = vmul.f32 %v1339, %v1204
        %v1341 = vmul.f32 %v1339, %v1205
        %v1342 = vmul.f32 %v1340, 1.442695
        %v1343 = vpow.pop %v1342
        %v1344 = vmul.f32 %v1341, 1.442695
        %v1345 = vpow.pop %v1344
        %v1346 = vmul.f32 %v1343, %v1305
        %v1347 = vmul.f32 %v1345, %v1306
        %s1348 = smul.u32 %s1331, 16
        %s1349 = scalar_lea.vmem [#allocation4], %s1348
        %v1350 = vld [vmem:[%s1349] sm:$0xff]
        %v1351 = vld [vmem:[%s1349 + $0x8] sm:$0xff]
        %v1352 = vlaneseq
        %v1353 = vshrl.u32 %v1352, 7
        %v1354 = vsub.s32 0, %v1353
        %v1355 = vrot.slane %v1335, %v1354
        %1357 = vset.pattern.permute.xlu0 0
        %1358 = vperm.xlu0 %1357, %v1350
        %v1359 = vpop.permute.xlu0 %1358
        %1362 = vset.pattern.permute.xlu0 0
        %1363 = vperm.xlu0 %1362, %v1351
        %v1364 = vpop.permute.xlu0 %1363
        %v1366 = vmul.f32 %v1355, %v1359
        %v1367 = vmul.f32 %v1355, %v1364
        %v1368 = vadd.f32 %v1346, %v1366
        %v1369 = vadd.f32 %v1347, %v1367
        %s1370 = scalar_lea.vmem [#allocation5], %s1348
        %v1371 = vld [vmem:[%s1370] sm:$0xff]
        %v1372 = vld [vmem:[%s1370 + $0x8] sm:$0xff]
        %1374 = vset.pattern.permute.xlu0 0
        %1375 = vperm.xlu0 %1374, %v1371
        %v1376 = vpop.permute.xlu0 %1375
        %1379 = vset.pattern.permute.xlu0 0
        %1380 = vperm.xlu0 %1379, %v1372
        %v1381 = vpop.permute.xlu0 %1380
        %v1383 = vmul.f32 %v1368, %v1376
        %v1384 = vmul.f32 %v1369, %v1381
        %v1385 = vsel %vm614, %v1383, 0.0
        %v1386 = vsel %vm614, %v1384, 0.0
        %v1387 = vadd.f32 %v1385, %v1386
        %v1388 = vrot.slane %v1387, 4
        %v1389 = vadd.f32 %v1387, %v1388
        %v1390 = vrot.slane %v1389, 2
        %v1391 = vadd.f32 %v1389, %v1390
        %v1392 = vrot.slane %v1391, 1
        %v1393 = vadd.f32 %v1391, %v1392
        %s1394 = sadd.s32 0, 3
        %s1395 = scalar_lea.vmem [#allocation2], %s1394
        %v1396 = vld [vmem:[%s1395] sm:$0x1]
        %s1397 = scalar_lea.vmem [#allocation3], %s1394
        %v1398 = vld [vmem:[%s1397] sm:$0x1]
        %v1399 = vlaneseq
        %v1400 = vshrl.u32 %v1399, 7
        %v1401 = vsub.s32 0, %v1400
        %v1402 = vrot.slane %v1396, %v1401
        %v1403 = vmul.f32 %v1402, %v1204
        %v1404 = vmul.f32 %v1402, %v1205
        %v1405 = vmul.f32 %v1403, 1.442695
        %v1406 = vpow.pop %v1405
        %v1407 = vmul.f32 %v1404, 1.442695
        %v1408 = vpow.pop %v1407
        %v1409 = vmul.f32 %v1406, %v1368
        %v1410 = vmul.f32 %v1408, %v1369
        %s1411 = smul.u32 %s1394, 16
        %s1412 = scalar_lea.vmem [#allocation4], %s1411
        %v1413 = vld [vmem:[%s1412] sm:$0xff]
        %v1414 = vld [vmem:[%s1412 + $0x8] sm:$0xff]
        %v1415 = vlaneseq
        %v1416 = vshrl.u32 %v1415, 7
        %v1417 = vsub.s32 0, %v1416
        %v1418 = vrot.slane %v1398, %v1417
        %1420 = vset.pattern.permute.xlu0 0
        %1421 = vperm.xlu0 %1420, %v1413
        %v1422 = vpop.permute.xlu0 %1421
        %1425 = vset.pattern.permute.xlu0 0
        %1426 = vperm.xlu0 %1425, %v1414
        %v1427 = vpop.permute.xlu0 %1426
        %v1429 = vmul.f32 %v1418, %v1422
        %v1430 = vmul.f32 %v1418, %v1427
        %v1431 = vadd.f32 %v1409, %v1429
        %v1432 = vadd.f32 %v1410, %v1430
        %s1433 = scalar_lea.vmem [#allocation5], %s1411
        %v1434 = vld [vmem:[%s1433] sm:$0xff]
        %v1435 = vld [vmem:[%s1433 + $0x8] sm:$0xff]
        %1437 = vset.pattern.permute.xlu0 0
        %1438 = vperm.xlu0 %1437, %v1434
        %v1439 = vpop.permute.xlu0 %1438
        %1442 = vset.pattern.permute.xlu0 0
        %1443 = vperm.xlu0 %1442, %v1435
        %v1444 = vpop.permute.xlu0 %1443
        %v1446 = vmul.f32 %v1431, %v1439
        %v1447 = vmul.f32 %v1432, %v1444
        %v1448 = vsel %vm614, %v1446, 0.0
        %v1449 = vsel %vm614, %v1447, 0.0
        %v1450 = vadd.f32 %v1448, %v1449
        %v1451 = vrot.slane %v1450, 4
        %v1452 = vadd.f32 %v1450, %v1451
        %v1453 = vrot.slane %v1452, 2
        %v1454 = vadd.f32 %v1452, %v1453
        %v1455 = vrot.slane %v1454, 1
        %v1456 = vadd.f32 %v1454, %v1455
        %s1457 = sadd.s32 0, 4
        %s1458 = scalar_lea.vmem [#allocation2], %s1457
        %v1459 = vld [vmem:[%s1458] sm:$0x1]
        %s1460 = scalar_lea.vmem [#allocation3], %s1457
        %v1461 = vld [vmem:[%s1460] sm:$0x1]
        %v1462 = vlaneseq
        %v1463 = vshrl.u32 %v1462, 7
        %v1464 = vsub.s32 0, %v1463
        %v1465 = vrot.slane %v1459, %v1464
        %v1466 = vmul.f32 %v1465, %v1204
        %v1467 = vmul.f32 %v1465, %v1205
        %v1468 = vmul.f32 %v1466, 1.442695
        %v1469 = vpow.pop %v1468
        %v1470 = vmul.f32 %v1467, 1.442695
        %v1471 = vpow.pop %v1470
        %v1472 = vmul.f32 %v1469, %v1431
        %v1473 = vmul.f32 %v1471, %v1432
        %s1474 = smul.u32 %s1457, 16
        %s1475 = scalar_lea.vmem [#allocation4], %s1474
        %v1476 = vld [vmem:[%s1475] sm:$0xff]
        %v1477 = vld [vmem:[%s1475 + $0x8] sm:$0xff]
        %v1478 = vlaneseq
        %v1479 = vshrl.u32 %v1478, 7
        %v1480 = vsub.s32 0, %v1479
        %v1481 = vrot.slane %v1461, %v1480
        %1483 = vset.pattern.permute.xlu0 0
        %1484 = vperm.xlu0 %1483, %v1476
        %v1485 = vpop.permute.xlu0 %1484
        %1488 = vset.pattern.permute.xlu0 0
        %1489 = vperm.xlu0 %1488, %v1477
        %v1490 = vpop.permute.xlu0 %1489
        %v1492 = vmul.f32 %v1481, %v1485
        %v1493 = vmul.f32 %v1481, %v1490
        %v1494 = vadd.f32 %v1472, %v1492
        %v1495 = vadd.f32 %v1473, %v1493
        %s1496 = scalar_lea.vmem [#allocation5], %s1474
        %v1497 = vld [vmem:[%s1496] sm:$0xff]
        %v1498 = vld [vmem:[%s1496 + $0x8] sm:$0xff]
        %1500 = vset.pattern.permute.xlu0 0
        %1501 = vperm.xlu0 %1500, %v1497
        %v1502 = vpop.permute.xlu0 %1501
        %1505 = vset.pattern.permute.xlu0 0
        %1506 = vperm.xlu0 %1505, %v1498
        %v1507 = vpop.permute.xlu0 %1506
        %v1509 = vmul.f32 %v1494, %v1502
        %v1510 = vmul.f32 %v1495, %v1507
        %v1511 = vsel %vm614, %v1509, 0.0
        %v1512 = vsel %vm614, %v1510, 0.0
        %v1513 = vadd.f32 %v1511, %v1512
        %v1514 = vrot.slane %v1513, 4
        %v1515 = vadd.f32 %v1513, %v1514
        %v1516 = vrot.slane %v1515, 2
        %v1517 = vadd.f32 %v1515, %v1516
        %v1518 = vrot.slane %v1517, 1
        %v1519 = vadd.f32 %v1517, %v1518
        %s1520 = sadd.s32 0, 5
        %s1521 = scalar_lea.vmem [#allocation2], %s1520
        %v1522 = vld [vmem:[%s1521] sm:$0x1]
        %s1523 = scalar_lea.vmem [#allocation3], %s1520
        %v1524 = vld [vmem:[%s1523] sm:$0x1]
        %v1525 = vlaneseq
        %v1526 = vshrl.u32 %v1525, 7
        %v1527 = vsub.s32 0, %v1526
        %v1528 = vrot.slane %v1522, %v1527
        %v1529 = vmul.f32 %v1528, %v1204
        %v1530 = vmul.f32 %v1528, %v1205
        %v1531 = vmul.f32 %v1529, 1.442695
        %v1532 = vpow.pop %v1531
        %v1533 = vmul.f32 %v1530, 1.442695
        %v1534 = vpow.pop %v1533
        %v1535 = vmul.f32 %v1532, %v1494
        %v1536 = vmul.f32 %v1534, %v1495
        %s1537 = smul.u32 %s1520, 16
        %s1538 = scalar_lea.vmem [#allocation4], %s1537
        %v1539 = vld [vmem:[%s1538] sm:$0xff]
        %v1540 = vld [vmem:[%s1538 + $0x8] sm:$0xff]
        %v1541 = vlaneseq
        %v1542 = vshrl.u32 %v1541, 7
        %v1543 = vsub.s32 0, %v1542
        %v1544 = vrot.slane %v1524, %v1543
        %1546 = vset.pattern.permute.xlu0 0
        %1547 = vperm.xlu0 %1546, %v1539
        %v1548 = vpop.permute.xlu0 %1547
        %1551 = vset.pattern.permute.xlu0 0
        %1552 = vperm.xlu0 %1551, %v1540
        %v1553 = vpop.permute.xlu0 %1552
        %v1555 = vmul.f32 %v1544, %v1548
        %v1556 = vmul.f32 %v1544, %v1553
        %v1557 = vadd.f32 %v1535, %v1555
        %v1558 = vadd.f32 %v1536, %v1556
        %s1559 = scalar_lea.vmem [#allocation5], %s1537
        %v1560 = vld [vmem:[%s1559] sm:$0xff]
        %v1561 = vld [vmem:[%s1559 + $0x8] sm:$0xff]
        %1563 = vset.pattern.permute.xlu0 0
        %1564 = vperm.xlu0 %1563, %v1560
        %v1565 = vpop.permute.xlu0 %1564
        %1568 = vset.pattern.permute.xlu0 0
        %1569 = vperm.xlu0 %1568, %v1561
        %v1570 = vpop.permute.xlu0 %1569
        %v1572 = vmul.f32 %v1557, %v1565
        %v1573 = vmul.f32 %v1558, %v1570
        %v1574 = vsel %vm614, %v1572, 0.0
        %v1575 = vsel %vm614, %v1573, 0.0
        %v1576 = vadd.f32 %v1574, %v1575
        %v1577 = vrot.slane %v1576, 4
        %v1578 = vadd.f32 %v1576, %v1577
        %v1579 = vrot.slane %v1578, 2
        %v1580 = vadd.f32 %v1578, %v1579
        %v1581 = vrot.slane %v1580, 1
        %v1582 = vadd.f32 %v1580, %v1581
        %s1583 = sadd.s32 0, 6
        %s1584 = scalar_lea.vmem [#allocation2], %s1583
        %v1585 = vld [vmem:[%s1584] sm:$0x1]
        %s1586 = scalar_lea.vmem [#allocation3], %s1583
        %v1587 = vld [vmem:[%s1586] sm:$0x1]
        %v1588 = vlaneseq
        %v1589 = vshrl.u32 %v1588, 7
        %v1590 = vsub.s32 0, %v1589
        %v1591 = vrot.slane %v1585, %v1590
        %v1592 = vmul.f32 %v1591, %v1204
        %v1593 = vmul.f32 %v1591, %v1205
        %v1594 = vmul.f32 %v1592, 1.442695
        %v1595 = vpow.pop %v1594
        %v1596 = vmul.f32 %v1593, 1.442695
        %v1597 = vpow.pop %v1596
        %v1598 = vmul.f32 %v1595, %v1557
        %v1599 = vmul.f32 %v1597, %v1558
        %s1600 = smul.u32 %s1583, 16
        %s1601 = scalar_lea.vmem [#allocation4], %s1600
        %v1602 = vld [vmem:[%s1601] sm:$0xff]
        %v1603 = vld [vmem:[%s1601 + $0x8] sm:$0xff]
        %v1604 = vlaneseq
        %v1605 = vshrl.u32 %v1604, 7
        %v1606 = vsub.s32 0, %v1605
        %v1607 = vrot.slane %v1587, %v1606
        %1609 = vset.pattern.permute.xlu0 0
        %1610 = vperm.xlu0 %1609, %v1602
        %v1611 = vpop.permute.xlu0 %1610
        %1614 = vset.pattern.permute.xlu0 0
        %1615 = vperm.xlu0 %1614, %v1603
        %v1616 = vpop.permute.xlu0 %1615
        %v1618 = vmul.f32 %v1607, %v1611
        %v1619 = vmul.f32 %v1607, %v1616
        %v1620 = vadd.f32 %v1598, %v1618
        %v1621 = vadd.f32 %v1599, %v1619
        %s1622 = scalar_lea.vmem [#allocation5], %s1600
        %v1623 = vld [vmem:[%s1622] sm:$0xff]
        %v1624 = vld [vmem:[%s1622 + $0x8] sm:$0xff]
        %1626 = vset.pattern.permute.xlu0 0
        %1627 = vperm.xlu0 %1626, %v1623
        %v1628 = vpop.permute.xlu0 %1627
        %1631 = vset.pattern.permute.xlu0 0
        %1632 = vperm.xlu0 %1631, %v1624
        %v1633 = vpop.permute.xlu0 %1632
        %v1635 = vmul.f32 %v1620, %v1628
        %v1636 = vmul.f32 %v1621, %v1633
        %v1637 = vsel %vm614, %v1635, 0.0
        %v1638 = vsel %vm614, %v1636, 0.0
        %v1639 = vadd.f32 %v1637, %v1638
        %v1640 = vrot.slane %v1639, 4
        %v1641 = vadd.f32 %v1639, %v1640
        %v1642 = vrot.slane %v1641, 2
        %v1643 = vadd.f32 %v1641, %v1642
        %v1644 = vrot.slane %v1643, 1
        %v1645 = vadd.f32 %v1643, %v1644
        %s1646 = sadd.s32 0, 7
        %s1647 = scalar_lea.vmem [#allocation2], %s1646
        %v1648 = vld [vmem:[%s1647] sm:$0x1]
        %s1649 = scalar_lea.vmem [#allocation3], %s1646
        %v1650 = vld [vmem:[%s1649] sm:$0x1]
        %v1651 = vlaneseq
        %v1652 = vshrl.u32 %v1651, 7
        %v1653 = vsub.s32 0, %v1652
        %v1654 = vrot.slane %v1648, %v1653
        %v1655 = vmul.f32 %v1654, %v1204
        %v1656 = vmul.f32 %v1654, %v1205
        %v1657 = vmul.f32 %v1655, 1.442695
        %v1658 = vpow.pop %v1657
        %v1659 = vmul.f32 %v1656, 1.442695
        %v1660 = vpow.pop %v1659
        %v1661 = vmul.f32 %v1658, %v1620
        %v1662 = vmul.f32 %v1660, %v1621
        %s1663 = smul.u32 %s1646, 16
        %s1664 = scalar_lea.vmem [#allocation4], %s1663
        %v1665 = vld [vmem:[%s1664] sm:$0xff]
        %v1666 = vld [vmem:[%s1664 + $0x8] sm:$0xff]
        %v1667 = vlaneseq
        %v1668 = vshrl.u32 %v1667, 7
        %v1669 = vsub.s32 0, %v1668
        %v1670 = vrot.slane %v1650, %v1669
        %1672 = vset.pattern.permute.xlu0 0
        %1673 = vperm.xlu0 %1672, %v1665
        %v1674 = vpop.permute.xlu0 %1673
        %1677 = vset.pattern.permute.xlu0 0
        %1678 = vperm.xlu0 %1677, %v1666
        %v1679 = vpop.permute.xlu0 %1678
        %v1681 = vmul.f32 %v1670, %v1674
        %v1682 = vmul.f32 %v1670, %v1679
        %v1683 = vadd.f32 %v1661, %v1681
        %v1684 = vadd.f32 %v1662, %v1682
        %s1685 = scalar_lea.vmem [#allocation5], %s1663
        %v1686 = vld [vmem:[%s1685] sm:$0xff]
        %v1687 = vld [vmem:[%s1685 + $0x8] sm:$0xff]
        %1689 = vset.pattern.permute.xlu0 0
        %1690 = vperm.xlu0 %1689, %v1686
        %v1691 = vpop.permute.xlu0 %1690
        %1694 = vset.pattern.permute.xlu0 0
        %1695 = vperm.xlu0 %1694, %v1687
        %v1696 = vpop.permute.xlu0 %1695
        %v1698 = vmul.f32 %v1683, %v1691
        %v1699 = vmul.f32 %v1684, %v1696
        %v1700 = vsel %vm614, %v1698, 0.0
        %v1701 = vsel %vm614, %v1699, 0.0
        %v1702 = vadd.f32 %v1700, %v1701
        %v1703 = vrot.slane %v1702, 4
        %v1704 = vadd.f32 %v1702, %v1703
        %v1705 = vrot.slane %v1704, 2
        %v1706 = vadd.f32 %v1704, %v1705
        %v1707 = vrot.slane %v1706, 1
        %v1708 = vadd.f32 %v1706, %v1707
        %vm1709 = vcmask 1040384
        %v1710 = vsel %vm1709, %v1267, %v1330
        %vm1711 = vcmask 1041408
        %v1712 = vsel %vm1711, %v1710, %v1393
        %v1713 = vsel %vm619, %v1712, %v1456
        %vm1714 = vcmask 1043456
        %v1715 = vsel %vm1714, %v1713, %v1519
        %v1716 = vsel %vm674, %v1715, %v1582
        %v1717 = vsel %vm659, %v1716, %v1645
        %v1718 = vsel %vm644, %v1717, %v1708
        %1719 = vst.msk [vmem:[#allocation6] sm:$0xff] %vm614, %v1718
        %1720 = vst.msk [vmem:[#allocation8] sm:$0xff] %vm614, %v1683
        %1721 = vst.msk [vmem:[#allocation8 + $0x8] sm:$0xff] %vm614, %v1684
        %v1722 = vld [vmem:[#allocation7] sm:$0xff]
        %v1723 = vsub.f32 0.0, %v1722
        %v1724 = vmul.f32 %v1723, 1.442695
        %v1725 = vpow.pop %v1724
        %v1726 = vadd.f32 %v1725, 1.0
        %v1727 = vrcp.pop %v1726
        %v1728 = vmul.f32 1.0, %v1727
        %v1729 = vmul.f32 %v1722, %v1728
        %v1730 = vld [vmem:[#allocation6] sm:$0xff]
        %v1731 = vmul.f32 %v1729, %v1730
        %v1732 = vpack.c.bf16 %v1731, %v1731
        %v1733 = vld [vmem:[%s11] sm:$0xf]
        %v1734 = vld [vmem:[%s11 + $0x4] sm:$0xf]
        %v1735 = vld [vmem:[%s11 + $0x8] sm:$0xf]
        %v1736 = vld [vmem:[%s11 + $0xc] sm:$0xf]
        %v1737 = vld [vmem:[%s11 + $0x10] sm:$0xf]
        %v1738 = vld [vmem:[%s11 + $0x14] sm:$0xf]
        %v1739 = vld [vmem:[%s11 + $0x18] sm:$0xf]
        %v1740 = vld [vmem:[%s11 + $0x1c] sm:$0xf]
        %v1741 = vld [vmem:[%s12] sm:$0x1]
        %v1743 = vlaneseq
        %v1744 = vshrl.u32 %v1743, 7
        %v1745 = vsub.s32 0, %v1744
        %v1746 = vrot.slane %v1741, %v1745
        %v1756 = vunpack.c.l.b16 %v1733
        %v1757 = vunpack.c.l.b16 %v1734
        %v1758 = vunpack.c.l.b16 %v1735
        %v1759 = vunpack.c.l.b16 %v1736
        %v1760 = vunpack.c.l.b16 %v1737
        %v1761 = vunpack.c.l.b16 %v1738
        %v1762 = vunpack.c.l.b16 %v1739
        %v1763 = vunpack.c.l.b16 %v1740
        %v1764 = vpack.c.b16 %v1757, %v1756
        %v1765 = vpack.c.b16 %v1759, %v1758
        %v1766 = vpack.c.b16 %v1761, %v1760
        %v1767 = vpack.c.b16 %v1763, %v1762
        %v1773 = vsel %vm614, %v1732, 0
        %1775 = vmatprep.subr.bf16.mxu0 0
        %1776 = vmatpush1.bf16.msra.mxu0 %v1764
        %1777 = vmatprep.subr.bf16.mxu0 0
        %1778 = vmatpush1.bf16.msra.mxu0 %v1765
        %1779 = vmatprep.subr.bf16.mxu0 0
        %1780 = vmatpush1.bf16.msra.mxu0 %v1766
        %1781 = vmatprep.subr.bf16.mxu0 0
        %1782 = vmatpush1.bf16.msra.mxu0 %v1767
        %1783 = vmatprep.subr.bf16.mxu0 0
        %1784 = vmatpush1.bf16.msra.mxu0 0
        %1785 = vmatprep.subr.bf16.mxu0 0
        %1786 = vmatpush1.bf16.msra.mxu0 0
        %1787 = vmatprep.subr.bf16.mxu0 0
        %1788 = vmatpush1.bf16.msra.mxu0 0
        %1789 = vmatprep.subr.bf16.mxu0 0
        %1790 = vmatpush1.bf16.msra.mxu0 0
        %1791 = vmatprep.subr.bf16.mxu0 0
        %1792 = vmatpush1.bf16.msra.mxu0 0
        %1793 = vmatprep.subr.bf16.mxu0 0
        %1794 = vmatpush1.bf16.msra.mxu0 0
        %1795 = vmatprep.subr.bf16.mxu0 0
        %1796 = vmatpush1.bf16.msra.mxu0 0
        %1797 = vmatprep.subr.bf16.mxu0 0
        %1798 = vmatpush1.bf16.msra.mxu0 0
        %1799 = vmatprep.subr.bf16.mxu0 0
        %1800 = vmatpush1.bf16.msra.mxu0 0
        %1801 = vmatprep.subr.bf16.mxu0 0
        %1802 = vmatpush1.bf16.msra.mxu0 0
        %1803 = vmatprep.subr.bf16.mxu0 0
        %1804 = vmatpush1.bf16.msra.mxu0 0
        %1805 = vmatprep.subr.bf16.mxu0 0
        %1806 = vmatpush1.bf16.msra.mxu0 0
        %1807 = vmatprep.mubr.bf16.mxu0 0
        %1808 = vmatmul.mubr.bf16.gmra.mrb[0].mxu0 %v1773
        %v1809 = vpop.f32.mrb[0].mxu0
        %v1810 = vadd.f32 %v1746, %v1809
        %v1811 = vpop.f32.mrb[0].mxu0
        %v1812 = vpop.f32.mrb[0].mxu0
        %v1813 = vpop.f32.mrb[0].mxu0
        %1814 = vdwg.mxu0
        %v1815 = vadd.f32 %v1810, %v524
        %1816 = vst.msk [vmem:[%s506] sm:$0xff] %vm526, %v1815
        %s1817 = sand.u32 %s332, 1
        %s1818 = scalar_lea.sflag [#allocation12], %s1817
        %s1819 = sand.u32 %s332, 1
        %s1820 = smul.addr %s1819, 8
        %s1821 = scalar_lea.vmem [#allocation18], %s1820
        // Predicated region
        $region93: #{tpu_custom_call.1} parent=71 // pred_check
          %p1822 = pneg %p342
        $region94: #{tpu_custom_call.1} parent=71 // pred_check_branch
          %1824 = sbr.rel (%p1822) target = $region96
        $region95: #{tpu_custom_call.1} parent=71 // pred_region
          %s1826 = ssub.s32 128, 128
          %1827 = vsyncadd %s1818, %s1826
          %s1828 = sadd.s32 %s35, %s34
          %s1829 = smul.addr %s1828, 128
          %s1830 = scalar_lea.hbm %s13, %s1829
          %s1832 = sshll.u32 %s1821, 4
          %s1833 = int_to_ptr.vmem [resolvable:$true] %s1832
          %1835 = dma.vmem_to_hbm [thread:$0]  %s1833, 128, %s1830, %s1818
        $region96: #{tpu_custom_call.1} parent=71 // pred_fallthru
          _
      $region72: #{tpu_custom_call.1} parent=5 // pred_fallthru
        _
      %p1836 = scmp.le.s32.totalorder 2, %s25
      // Predicated region
      $region97: #{tpu_custom_call.1} parent=5 // pred_check
        %p1837 = pneg %p1836
      $region98: #{tpu_custom_call.1} parent=5 // pred_check_branch
        %1839 = sbr.rel (%p1837) target = $region100
      $region99: #{tpu_custom_call.1} parent=5 // pred_region
        %s1840 = ssub.s32 %s25, 2
        // Predicated region
        $region101: #{tpu_custom_call.1} parent=99 // pred_check
          %p1841 = pneg %p348
        $region102: #{tpu_custom_call.1} parent=99 // pred_check_branch
          %1843 = sbr.rel (%p1841) target = $region104
        $region103: #{tpu_custom_call.1} parent=99 // pred_region
          %s1844 = sand.u32 %s333, 1
          %s1845 = scalar_lea.sflag [#allocation12], %s1844
          %s1846 = sand.u32 %s333, 1
          %s1847 = smul.addr %s1846, 8
          %s1848 = scalar_lea.vmem [#allocation18], %s1847
          %1849 = dma.done %s1845, 128
        $region104: #{tpu_custom_call.1} parent=99 // pred_fallthru
          _
      $region100: #{tpu_custom_call.1} parent=5 // pred_fallthru
        _
    $region6: #{tpu_custom_call.1} parent=1 // loop_footer
      %s29 = sadd.s32 1, %s25
    $region7: #{tpu_custom_call.1} parent=1 // loop_footer_branch
      %24 = sbr.rel target = $region3
    $region8: #{tpu_custom_call.1} parent=1 // loop_exit
      _
    %1850 = vsyncpa [#allocation11], 1
    %s1851 = scalar_lea.sflag [#allocation11], 1
    %1852 = vsyncpa %s1851, 1
    %1853 = vsyncpa [#allocation14], 1
    %1854 = vsyncpa [#allocation17], 1
    %1855 = vsyncpa [#allocation12], 1
    %s1856 = scalar_lea.sflag [#allocation12], 1
    %1857 = vsyncpa %s1856, 1

</llo_original>
